<compile_context>
chip_gen: v6e
topology: v6e:2x2x1
jax: 0.10.0
libtpu: 0.0.40
codegen_flags: <defaults>
</compile_context>

<pallas_src>
import functools

import jax
import jax.numpy as jnp
from jax.experimental import pallas as pl
from jax.experimental.pallas import tpu as pltpu


# ---------------------------------------------------------------------------
# Kernels
# ---------------------------------------------------------------------------

def _swiglu_kernel_resident(x_ref, w_ref, bw_ref, v_ref, bv_ref, d_ref, bd_ref,
                            o_ref, *, approx_recip):
    """Full weight residency (hidden dim untiled). Grid = (M // tm,).

    x_ref : (tm, C) native dtype          w/v/d_ref : (C, C) resident weights
    bw/bv/bd : (1, C) f32 resident biases o_ref     : (tm, C)
    """
    x = x_ref[...]
    wx = jnp.dot(x, w_ref[...], preferred_element_type=jnp.float32) + bw_ref[...]
    vx = jnp.dot(x, v_ref[...], preferred_element_type=jnp.float32) + bv_ref[...]
    # SiLU in f32: vx * sigmoid(vx) = vx / (1 + exp(-vx)); exp (and the
    # approximate reciprocal on the bf16 path) run on the EUP slot.
    swished = vx * pl.reciprocal(1.0 + jnp.exp(-vx), approx=approx_recip)
    h = (wx * swished).astype(x.dtype)            # native dtype for the MXU
    out = jnp.dot(h, d_ref[...], preferred_element_type=jnp.float32) + bd_ref[...]
    o_ref[...] = out.astype(o_ref.dtype)


def _swiglu_kernel_tiled(x_ref, w_ref, bw_ref, v_ref, bv_ref, d_ref, bd_ref,
                         o_ref, acc_ref, *, approx_recip):
    """Hidden dim tiled. Grid = (M // tm, C // tn); axis 1 is the reduction.

    x_ref : (tm, C)  resident across the n axis
    w/v_ref : (C, tn)  d_ref : (tn, C)   streamed weight panels
    bw/bv_ref : (num_n, tn) f32 resident; bd_ref : (1, C) f32 resident
    acc_ref : (tm, C) f32 scratch accumulator
    """
    n = pl.program_id(1)
    last = pl.num_programs(1) - 1

    bw = bw_ref[pl.ds(n, 1), :]                   # (1, tn), resident in VMEM
    bv = bv_ref[pl.ds(n, 1), :]

    x = x_ref[...]
    wx = jnp.dot(x, w_ref[...], preferred_element_type=jnp.float32) + bw
    vx = jnp.dot(x, v_ref[...], preferred_element_type=jnp.float32) + bv
    swished = vx * pl.reciprocal(1.0 + jnp.exp(-vx), approx=approx_recip)
    h = (wx * swished).astype(x.dtype)
    d_partial = jnp.dot(h, d_ref[...], preferred_element_type=jnp.float32)

    @pl.when(n == 0)
    def _first():                                  # no zero-init + reload pass
        acc_ref[...] = d_partial

    @pl.when(jnp.logical_and(n > 0, n < last))
    def _middle():
        acc_ref[...] += d_partial

    @pl.when(jnp.logical_and(n > 0, n == last))
    def _last():                                   # no extra acc store-back
        o_ref[...] = (acc_ref[...] + d_partial + bd_ref[...]).astype(o_ref.dtype)


# ---------------------------------------------------------------------------
# Generation-aware configuration
# ---------------------------------------------------------------------------

def _tpu_vmem_budget():
    """(vmem budget bytes, #TensorCores per chip) — conservative defaults."""
    phys = None
    try:
        info = pltpu.get_tpu_info()
        phys = int(getattr(info, "vmem_capacity_bytes", 0)) or None
    except Exception:
        phys = None
    kind = ""
    try:
        kind = jax.devices()[0].device_kind.lower()
    except Exception:
        pass
    two_tc = ("v7" in kind) or ("7x" in kind)
    if phys is None:
        if two_tc:
            phys = 64 << 20                       # v7x: 64 MiB per TC
        elif ("v5" in kind) or ("v6" in kind):
            phys = 128 << 20                      # v5e / v6e
        else:
            phys = 64 << 20                       # unknown: be conservative
    # ~3/4 of physical: 48 MiB on v7x, 96 MiB on v5e/v6e; leaves headroom for
    # compiler-internal scratch and materialized temporaries.
    budget = max(32 << 20, (phys * 3) // 4)
    return budget, (2 if two_tc else 1)


def _largest_tile(total, multiple, cap):
    """Largest divisor of `total` that is a multiple of `multiple`, <= cap."""
    cap = min(cap, total)
    t = (cap // multiple) * multiple
    while t >= multiple:
        if total % t == 0:
            return t
        t -= multiple
    return None


def _even_row_tiles(M, tm, sub):
    """Shrink tm (if possible) so the parallel row axis splits evenly across
    two TensorCores (v7x megacore)."""
    num_m = M // tm
    if num_m >= 2 and num_m % 2 == 0:
        return tm
    t = tm - sub
    while t >= sub:
        if M % t == 0 and (M // t) % 2 == 0:
            return t
        t -= sub
    return tm


def _pick_config(M, C, act_itemsize, w_itemsize, vmem_budget, num_cores,
                 tm=None, tn=None):
    sub = 16 if act_itemsize < 4 else 8           # sub-32-bit packs 2x sublane
    # TODO(synk): no ragged/tail-tile handling; arbitrary (B, T, C) that do
    # not tile to (sub, 128) will fail the asserts below.
    assert M % sub == 0, (M, sub)
    assert C % 128 == 0, "ff_hidden_size must be a multiple of 128 (lane dim)"

    bias_bytes = 3 * C * 4 * 2

    if tn is None:
        # Prefer full residency of all three (C, C) weights (single-buffered):
        # removes per-row-tile weight re-streaming entirely.
        resident_bytes = 3 * C * C * w_itemsize
        min_row_bytes = 2 * 2 * C * act_itemsize + 4 * C * 4 + C * 4
        if resident_bytes + bias_bytes + sub * min_row_bytes <= vmem_budget:
            tn = C
        else:
            # Stream (C, tn)/(tn, C) panels, double-buffered, <= half budget;
            # prefer tn >= 512 to fill the 256-wide MXU and cut acc passes.
            half = vmem_budget // 2
            tn = 128
            for cand in (C, 4096, 2048, 1024, 512, 256, 128):
                if (cand <= C and C % cand == 0 and cand % 128 == 0
                        and 3 * C * cand * w_itemsize * 2 <= half):
                    tn = cand
                    break
    assert C % tn == 0 and tn % 128 == 0, (C, tn)
    num_n = C // tn

    if tm is None:
        if num_n == 1:
            w_bytes = 3 * C * C * w_itemsize              # single-buffered
            per_row = 2 * 2 * C * act_itemsize + 4 * C * 4
            desired = 512
        else:
            w_bytes = 3 * C * tn * w_itemsize * 2         # double-buffered
            per_row = 2 * 2 * C * act_itemsize + C * 4 + 4 * tn * 4
            # Weight re-stream intensity = 2*tm/itemsize FLOP/byte: go large
            # on 128 MiB single-TC parts (v6e bf16), moderate on v7x.
            desired = 1024 if (act_itemsize < 4 and num_cores == 1) else 512
        tm_cap = max(sub, (vmem_budget - w_bytes - bias_bytes) // per_row)
        tm = _largest_tile(M, sub, min(desired, tm_cap))
        assert tm is not None, "no valid row tile for M=%d (sub=%d)" % (M, sub)
        if num_cores >= 2:
            tm = _even_row_tiles(M, tm, sub)
    assert M % tm == 0 and tm % sub == 0, (M, tm, sub)
    return tm, tn


# ---------------------------------------------------------------------------
# pallas_call wrapper
# ---------------------------------------------------------------------------

@functools.partial(jax.jit,
                   static_argnames=("tm", "tn", "vmem_limit", "single_buffer"))
def _swiglu_call(x, w_t, b_w, v_t, b_v, d_t, b_d, *, tm, tn, vmem_limit,
                 single_buffer):
    B, T, C = x.shape
    M = B * T
    num_m, num_n = M // tm, C // tn
    act_itemsize = jnp.dtype(x.dtype).itemsize
    w_itemsize = jnp.dtype(w_t.dtype).itemsize
    approx_recip = x.dtype != jnp.float32          # exact sigmoid on f32 path

    x2 = x.reshape(M, C)
    bd2 = b_d.astype(jnp.float32).reshape(1, C)

    def res_spec(shape, imap):
        # Grid-invariant block -> one resident VMEM buffer is enough.
        if single_buffer:
            return pl.BlockSpec(shape, imap, pipeline_mode=pl.Buffered(1))
        return pl.BlockSpec(shape, imap)

    if num_n == 1:
        # --- full weight residency, no accumulator scratch ---------------
        bw2 = b_w.astype(jnp.float32).reshape(1, C)
        bv2 = b_v.astype(jnp.float32).reshape(1, C)
        kernel = functools.partial(_swiglu_kernel_resident,
                                   approx_recip=approx_recip)
        grid_spec = pltpu.PrefetchScalarGridSpec(
            num_scalar_prefetch=0,
            grid=(num_m,),
            in_specs=[
                pl.BlockSpec((tm, C), lambda i: (i, 0)),   # x row tile
                res_spec((C, C), lambda i: (0, 0)),        # W (gate)
                res_spec((1, C), lambda i: (0, 0)),        # b_w
                res_spec((C, C), lambda i: (0, 0)),        # V (value)
                res_spec((1, C), lambda i: (0, 0)),        # b_v
                res_spec((C, C), lambda i: (0, 0)),        # D (down_proj)
                res_spec((1, C), lambda i: (0, 0)),        # b_d
            ],
            out_specs=pl.BlockSpec((tm, C), lambda i: (i, 0)),
        )
        dims = ("parallel",)
        bytes_accessed = (2 * M * C * act_itemsize
                          + 3 * C * C * w_itemsize + 3 * C * 4)
    else:
        # --- hidden dim tiled, f32 accumulator --------------------------
        bw2 = b_w.astype(jnp.float32).reshape(num_n, tn)
        bv2 = b_v.astype(jnp.float32).reshape(num_n, tn)
        kernel = functools.partial(_swiglu_kernel_tiled,
                                   approx_recip=approx_recip)
        grid_spec = pltpu.PrefetchScalarGridSpec(
            num_scalar_prefetch=0,
            grid=(num_m, num_n),
            in_specs=[
                pl.BlockSpec((tm, C), lambda i, n: (i, 0)),    # x row tile
                pl.BlockSpec((C, tn), lambda i, n: (0, n)),    # W panel
                res_spec((num_n, tn), lambda i, n: (0, 0)),    # b_w resident
                pl.BlockSpec((C, tn), lambda i, n: (0, n)),    # V panel
                res_spec((num_n, tn), lambda i, n: (0, 0)),    # b_v resident
                pl.BlockSpec((tn, C), lambda i, n: (n, 0)),    # D panel
                res_spec((1, C), lambda i, n: (0, 0)),         # b_d resident
            ],
            out_specs=pl.BlockSpec((tm, C), lambda i, n: (i, 0)),
            scratch_shapes=[pltpu.VMEM((tm, C), jnp.float32)],
        )
        dims = ("parallel", "arbitrary")
        # Weight panels are re-fetched for every row tile -> num_m factor.
        bytes_accessed = (2 * M * C * act_itemsize
                          + num_m * 3 * C * C * w_itemsize + 3 * C * 4)

    cost = pl.CostEstimate(flops=3 * 2 * M * C * C,
                           transcendentals=M * C,
                           bytes_accessed=bytes_accessed)

    out2 = pl.pallas_call(
        kernel,
        out_shape=jax.ShapeDtypeStruct((M, C), x.dtype),
        grid_spec=grid_spec,
        compiler_params=pltpu.CompilerParams(
            dimension_semantics=dims,
            vmem_limit_bytes=int(vmem_limit),
        ),
        cost_estimate=cost,
    )(x2, w_t, bw2, v_t, bv2, d_t, bd2)
    return out2.reshape(B, T, C)


_single_buffer_ok = True   # flipped off if this jax build rejects Buffered(1)


def swiglu_pallas(x, w_t, b_w, v_t, b_v, d_t, b_d, *, tm=None, tn=None):
    """Fused SwiGLU forward.

    x   : (B, T, C)
    *_t : (C, C) weights in (in, out) layout (PyTorch Linear.weight.T)
    b_* : (C,)   biases
    """
    global _single_buffer_ok
    B, T, C = x.shape
    M = B * T
    assert w_t.shape == v_t.shape == d_t.shape == (C, C)
    assert w_t.dtype == v_t.dtype == d_t.dtype == x.dtype

    budget, num_cores = _tpu_vmem_budget()
    tm, tn = _pick_config(M, C,
                          jnp.dtype(x.dtype).itemsize,
                          jnp.dtype(w_t.dtype).itemsize,
                          budget, num_cores, tm=tm, tn=tn)

    if _single_buffer_ok:
        try:
            return _swiglu_call(x, w_t, b_w, v_t, b_v, d_t, b_d,
                                tm=tm, tn=tn, vmem_limit=budget,
                                single_buffer=True)
        except Exception:
            _single_buffer_ok = False
    return _swiglu_call(x, w_t, b_w, v_t, b_v, d_t, b_d,
                        tm=tm, tn=tn, vmem_limit=budget, single_buffer=False)


def swiglu_reference(x, w_t, b_w, v_t, b_v, d_t, b_d):
    """Mixed-precision reference matching the kernel's accumulation scheme
    (for f32 inputs this is the PyTorch forward)."""
    f32 = jnp.float32
    hi = jax.lax.Precision.HIGHEST
    wx = jnp.dot(x, w_t, precision=hi, preferred_element_type=f32) + b_w.astype(f32)
    vx = jnp.dot(x, v_t, precision=hi, preferred_element_type=f32) + b_v.astype(f32)
    h = (wx * (vx * jax.nn.sigmoid(vx))).astype(x.dtype)
    out = jnp.dot(h, d_t, precision=hi, preferred_element_type=f32) + b_d.astype(f32)
    return out.astype(x.dtype)


if __name__ == "__main__":
    # Small deterministic shapes. LLaMA_2_CONFIG in model.py lacks the
    # 'ff_hidden_size' key; pick C = 256 (lane-aligned). M = B*T = 512 keeps
    # at least 2 row tiles available on 2-TensorCore parts.
    B, T, C = 2, 256, 256
    key = jax.random.PRNGKey(0)
    kx, kw, kbw, kv, kbv, kd, kbd = jax.random.split(key, 7)

    bound = 1.0 / (C ** 0.5)
    x = jax.random.normal(kx, (B, T, C), dtype=jnp.float32)
    w_t = jax.random.uniform(kw, (C, C), jnp.float32, -bound, bound)   # (in, out)
    b_w = jax.random.uniform(kbw, (C,), jnp.float32, -bound, bound)
    v_t = jax.random.uniform(kv, (C, C), jnp.float32, -bound, bound)
    b_v = jax.random.uniform(kbv, (C,), jnp.float32, -bound, bound)
    d_t = jax.random.uniform(kd, (C, C), jnp.float32, -bound, bound)
    b_d = jax.random.uniform(kbd, (C,), jnp.float32, -bound, bound)

    ref = swiglu_reference(x, w_t, b_w, v_t, b_v, d_t, b_d)

    # --- f32, auto config (weight-resident kernel on all current gens) ---
    out = jax.block_until_ready(swiglu_pallas(x, w_t, b_w, v_t, b_v, d_t, b_d))
    assert out.shape == x.shape, "input shape does not match SwiGLU shape"
    assert jnp.allclose(out, ref, atol=2e-3, rtol=2e-3), (
        "f32 mismatch, max abs diff = %e" % float(jnp.max(jnp.abs(out - ref))))

    # --- f32, forced hidden-dim tiling (exercises the accumulator kernel) ---
    out_t = jax.block_until_ready(
        swiglu_pallas(x, w_t, b_w, v_t, b_v, d_t, b_d, tm=128, tn=128))
    assert jnp.allclose(out_t, ref, atol=2e-3, rtol=2e-3), (
        "tiled f32 mismatch, max abs diff = %e"
        % float(jnp.max(jnp.abs(out_t - ref))))

    # --- bf16 path (native-dtype matmuls, f32 accumulation/elementwise) ---
    bf16 = jnp.bfloat16
    xb, wb, vb, db = (a.astype(bf16) for a in (x, w_t, v_t, d_t))
    outb = jax.block_until_ready(swiglu_pallas(xb, wb, b_w, vb, b_v, db, b_d))
    refb = swiglu_reference(xb, wb, b_w, vb, b_v, db, b_d)
    assert outb.shape == x.shape, "input shape does not match SwiGLU shape"
    diffb = float(jnp.max(jnp.abs(outb.astype(jnp.float32)
                                  - refb.astype(jnp.float32))))
    assert diffb < 1e-2, "bf16 mismatch, max abs diff = %e" % diffb

    # TODO(synk): the reference module's debug `print(f'SwiGLU shape: ...')`
    # is intentionally not reproduced inside the kernel.
    print("KERNEL_OK")
</pallas_src>

<mosaic_0001>
module attributes {stable_mosaic.version = 11 : i64} {
  func.func @_swiglu_kernel_resident(%arg0: i32, %arg1: memref<512x256xf32, #tpu.memory_space<vmem>>, %arg2: memref<256x256xf32, #tpu.memory_space<vmem>>, %arg3: memref<1x256xf32, #tpu.memory_space<vmem>>, %arg4: memref<256x256xf32, #tpu.memory_space<vmem>>, %arg5: memref<1x256xf32, #tpu.memory_space<vmem>>, %arg6: memref<256x256xf32, #tpu.memory_space<vmem>>, %arg7: memref<1x256xf32, #tpu.memory_space<vmem>>, %arg8: memref<512x256xf32, #tpu.memory_space<vmem>>) attributes {dimension_semantics = [#tpu.dimension_semantics<parallel>], iteration_bounds = array<i64: 1>, scalar_prefetch = 0 : i64, scratch_operands = 0 : i64, tpu.core_type = #tpu.core_type<tc>, window_params = [{transform_indices = @transform_0, window_bounds = array<i64: 512, 256>}, {pipeline_mode = #tpu.pipeline_mode<synchronous>, transform_indices = @transform_1, window_bounds = array<i64: 256, 256>}, {pipeline_mode = #tpu.pipeline_mode<synchronous>, transform_indices = @transform_2, window_bounds = array<i64: 1, 256>}, {pipeline_mode = #tpu.pipeline_mode<synchronous>, transform_indices = @transform_3, window_bounds = array<i64: 256, 256>}, {pipeline_mode = #tpu.pipeline_mode<synchronous>, transform_indices = @transform_4, window_bounds = array<i64: 1, 256>}, {pipeline_mode = #tpu.pipeline_mode<synchronous>, transform_indices = @transform_5, window_bounds = array<i64: 256, 256>}, {pipeline_mode = #tpu.pipeline_mode<synchronous>, transform_indices = @transform_6, window_bounds = array<i64: 1, 256>}, {transform_indices = @transform_7, window_bounds = array<i64: 512, 256>}]} {
    %c0 = arith.constant 0 : index
    %c0_0 = arith.constant 0 : index
    %0 = vector.load %arg1[%c0, %c0_0] : memref<512x256xf32, #tpu.memory_space<vmem>>, vector<512x256xf32>
    %c0_1 = arith.constant 0 : index
    %c0_2 = arith.constant 0 : index
    %1 = vector.load %arg2[%c0_1, %c0_2] : memref<256x256xf32, #tpu.memory_space<vmem>>, vector<256x256xf32>
    %cst = arith.constant dense<0.000000e+00> : vector<512x256xf32>
    %2 = tpu.matmul %0, %1, %cst {dimension_numbers = #tpu.dot_dimension_numbers<[1], [0], [0], [1], [0, 0, 1, 1], [], []>} : vector<512x256xf32>, vector<256x256xf32>, vector<512x256xf32> -> vector<512x256xf32>
    %c0_3 = arith.constant 0 : index
    %c0_4 = arith.constant 0 : index
    %3 = vector.load %arg3[%c0_3, %c0_4] : memref<1x256xf32, #tpu.memory_space<vmem>>, vector<1x256xf32>
    %4 = vector.broadcast %3 : vector<1x256xf32> to vector<512x256xf32>
    %5 = arith.addf %2, %4 : vector<512x256xf32>
    %c0_5 = arith.constant 0 : index
    %c0_6 = arith.constant 0 : index
    %6 = vector.load %arg4[%c0_5, %c0_6] : memref<256x256xf32, #tpu.memory_space<vmem>>, vector<256x256xf32>
    %cst_7 = arith.constant dense<0.000000e+00> : vector<512x256xf32>
    %7 = tpu.matmul %0, %6, %cst_7 {dimension_numbers = #tpu.dot_dimension_numbers<[1], [0], [0], [1], [0, 0, 1, 1], [], []>} : vector<512x256xf32>, vector<256x256xf32>, vector<512x256xf32> -> vector<512x256xf32>
    %c0_8 = arith.constant 0 : index
    %c0_9 = arith.constant 0 : index
    %8 = vector.load %arg5[%c0_8, %c0_9] : memref<1x256xf32, #tpu.memory_space<vmem>>, vector<1x256xf32>
    %9 = vector.broadcast %8 : vector<1x256xf32> to vector<512x256xf32>
    %10 = arith.addf %7, %9 : vector<512x256xf32>
    %cst_10 = arith.constant 0.000000e+00 : f32
    %11 = vector.broadcast %cst_10 : f32 to vector<512x256xf32>
    %12 = arith.subf %11, %10 : vector<512x256xf32>
    %13 = math.exp %12 : vector<512x256xf32>
    %cst_11 = arith.constant 1.000000e+00 : f32
    %14 = vector.broadcast %cst_11 : f32 to vector<512x256xf32>
    %15 = arith.addf %14, %13 : vector<512x256xf32>
    %16 = tpu.reciprocal %15 : vector<512x256xf32> -> vector<512x256xf32>
    %17 = arith.mulf %10, %16 : vector<512x256xf32>
    %18 = arith.mulf %5, %17 : vector<512x256xf32>
    %c0_12 = arith.constant 0 : index
    %c0_13 = arith.constant 0 : index
    %19 = vector.load %arg6[%c0_12, %c0_13] : memref<256x256xf32, #tpu.memory_space<vmem>>, vector<256x256xf32>
    %cst_14 = arith.constant dense<0.000000e+00> : vector<512x256xf32>
    %20 = tpu.matmul %18, %19, %cst_14 {dimension_numbers = #tpu.dot_dimension_numbers<[1], [0], [0], [1], [0, 0, 1, 1], [], []>} : vector<512x256xf32>, vector<256x256xf32>, vector<512x256xf32> -> vector<512x256xf32>
    %c0_15 = arith.constant 0 : index
    %c0_16 = arith.constant 0 : index
    %21 = vector.load %arg7[%c0_15, %c0_16] : memref<1x256xf32, #tpu.memory_space<vmem>>, vector<1x256xf32>
    %22 = vector.broadcast %21 : vector<1x256xf32> to vector<512x256xf32>
    %23 = arith.addf %20, %22 : vector<512x256xf32>
    %c0_17 = arith.constant 0 : index
    %c0_18 = arith.constant 0 : index
    %24 = vector.load %arg8[%c0_17, %c0_18] : memref<512x256xf32, #tpu.memory_space<vmem>>, vector<512x256xf32>
    tpu.vector_store %arg8[%c0_17, %c0_18], %23 {strides = array<i32>} : memref<512x256xf32, #tpu.memory_space<vmem>>, vector<512x256xf32>,
    return
  }
  func.func @transform_0(%arg0: i32) -> (i32, i32) {
    %c0_i32 = arith.constant 0 : i32
    %c0_i32_0 = arith.constant 0 : i32
    return %arg0, %c0_i32 : i32, i32
  }
  func.func @transform_1(%arg0: i32) -> (i32, i32) {
    %c0_i32 = arith.constant 0 : i32
    %c0_i32_0 = arith.constant 0 : i32
    %c0_i32_1 = arith.constant 0 : i32
    return %c0_i32, %c0_i32_0 : i32, i32
  }
  func.func @transform_2(%arg0: i32) -> (i32, i32) {
    %c0_i32 = arith.constant 0 : i32
    %c0_i32_0 = arith.constant 0 : i32
    %c0_i32_1 = arith.constant 0 : i32
    return %c0_i32, %c0_i32_0 : i32, i32
  }
  func.func @transform_3(%arg0: i32) -> (i32, i32) {
    %c0_i32 = arith.constant 0 : i32
    %c0_i32_0 = arith.constant 0 : i32
    %c0_i32_1 = arith.constant 0 : i32
    return %c0_i32, %c0_i32_0 : i32, i32
  }
  func.func @transform_4(%arg0: i32) -> (i32, i32) {
    %c0_i32 = arith.constant 0 : i32
    %c0_i32_0 = arith.constant 0 : i32
    %c0_i32_1 = arith.constant 0 : i32
    return %c0_i32, %c0_i32_0 : i32, i32
  }
  func.func @transform_5(%arg0: i32) -> (i32, i32) {
    %c0_i32 = arith.constant 0 : i32
    %c0_i32_0 = arith.constant 0 : i32
    %c0_i32_1 = arith.constant 0 : i32
    return %c0_i32, %c0_i32_0 : i32, i32
  }
  func.func @transform_6(%arg0: i32) -> (i32, i32) {
    %c0_i32 = arith.constant 0 : i32
    %c0_i32_0 = arith.constant 0 : i32
    %c0_i32_1 = arith.constant 0 : i32
    return %c0_i32, %c0_i32_0 : i32, i32
  }
  func.func @transform_7(%arg0: i32) -> (i32, i32) {
    %c0_i32 = arith.constant 0 : i32
    %c0_i32_0 = arith.constant 0 : i32
    return %arg0, %c0_i32 : i32, i32
  }
}

module attributes {stable_mosaic.version = 11 : i64} {
  func.func @_swiglu_kernel_resident(%arg0: i32, %arg1: memref<512x256xf32, #tpu.memory_space<vmem>>, %arg2: memref<256x256xf32, #tpu.memory_space<vmem>>, %arg3: memref<1x256xf32, #tpu.memory_space<vmem>>, %arg4: memref<256x256xf32, #tpu.memory_space<vmem>>, %arg5: memref<1x256xf32, #tpu.memory_space<vmem>>, %arg6: memref<256x256xf32, #tpu.memory_space<vmem>>, %arg7: memref<1x256xf32, #tpu.memory_space<vmem>>, %arg8: memref<512x256xf32, #tpu.memory_space<vmem>>) attributes {dimension_semantics = [#tpu.dimension_semantics<parallel>], iteration_bounds = array<i64: 1>, scalar_prefetch = 0 : i64, scratch_operands = 0 : i64, tpu.core_type = #tpu.core_type<tc>, window_params = [{transform_indices = @transform_0, window_bounds = array<i64: 512, 256>}, {pipeline_mode = #tpu.pipeline_mode<synchronous>, transform_indices = @transform_1, window_bounds = array<i64: 256, 256>}, {pipeline_mode = #tpu.pipeline_mode<synchronous>, transform_indices = @transform_2, window_bounds = array<i64: 1, 256>}, {pipeline_mode = #tpu.pipeline_mode<synchronous>, transform_indices = @transform_3, window_bounds = array<i64: 256, 256>}, {pipeline_mode = #tpu.pipeline_mode<synchronous>, transform_indices = @transform_4, window_bounds = array<i64: 1, 256>}, {pipeline_mode = #tpu.pipeline_mode<synchronous>, transform_indices = @transform_5, window_bounds = array<i64: 256, 256>}, {pipeline_mode = #tpu.pipeline_mode<synchronous>, transform_indices = @transform_6, window_bounds = array<i64: 1, 256>}, {transform_indices = @transform_7, window_bounds = array<i64: 512, 256>}]} {
    %c0 = arith.constant 0 : index
    %c0_0 = arith.constant 0 : index
    %0 = vector.load %arg1[%c0, %c0_0] : memref<512x256xf32, #tpu.memory_space<vmem>>, vector<512x256xf32>
    %c0_1 = arith.constant 0 : index
    %c0_2 = arith.constant 0 : index
    %1 = vector.load %arg2[%c0_1, %c0_2] : memref<256x256xf32, #tpu.memory_space<vmem>>, vector<256x256xf32>
    %cst = arith.constant dense<0.000000e+00> : vector<512x256xf32>
    %2 = tpu.matmul %0, %1, %cst {dimension_numbers = #tpu.dot_dimension_numbers<[1], [0], [0], [1], [0, 0, 1, 1], [], []>} : vector<512x256xf32>, vector<256x256xf32>, vector<512x256xf32> -> vector<512x256xf32>
    %c0_3 = arith.constant 0 : index
    %c0_4 = arith.constant 0 : index
    %3 = vector.load %arg3[%c0_3, %c0_4] : memref<1x256xf32, #tpu.memory_space<vmem>>, vector<1x256xf32>
    %4 = vector.broadcast %3 : vector<1x256xf32> to vector<512x256xf32>
    %5 = arith.addf %2, %4 : vector<512x256xf32>
    %c0_5 = arith.constant 0 : index
    %c0_6 = arith.constant 0 : index
    %6 = vector.load %arg4[%c0_5, %c0_6] : memref<256x256xf32, #tpu.memory_space<vmem>>, vector<256x256xf32>
    %cst_7 = arith.constant dense<0.000000e+00> : vector<512x256xf32>
    %7 = tpu.matmul %0, %6, %cst_7 {dimension_numbers = #tpu.dot_dimension_numbers<[1], [0], [0], [1], [0, 0, 1, 1], [], []>} : vector<512x256xf32>, vector<256x256xf32>, vector<512x256xf32> -> vector<512x256xf32>
    %c0_8 = arith.constant 0 : index
    %c0_9 = arith.constant 0 : index
    %8 = vector.load %arg5[%c0_8, %c0_9] : memref<1x256xf32, #tpu.memory_space<vmem>>, vector<1x256xf32>
    %9 = vector.broadcast %8 : vector<1x256xf32> to vector<512x256xf32>
    %10 = arith.addf %7, %9 : vector<512x256xf32>
    %cst_10 = arith.constant 0.000000e+00 : f32
    %11 = vector.broadcast %cst_10 : f32 to vector<512x256xf32>
    %12 = arith.subf %11, %10 : vector<512x256xf32>
    %13 = math.exp %12 : vector<512x256xf32>
    %cst_11 = arith.constant 1.000000e+00 : f32
    %14 = vector.broadcast %cst_11 : f32 to vector<512x256xf32>
    %15 = arith.addf %14, %13 : vector<512x256xf32>
    %16 = tpu.reciprocal %15 : vector<512x256xf32> -> vector<512x256xf32>
    %17 = arith.mulf %10, %16 : vector<512x256xf32>
    %18 = arith.mulf %5, %17 : vector<512x256xf32>
    %c0_12 = arith.constant 0 : index
    %c0_13 = arith.constant 0 : index
    %19 = vector.load %arg6[%c0_12, %c0_13] : memref<256x256xf32, #tpu.memory_space<vmem>>, vector<256x256xf32>
    %cst_14 = arith.constant dense<0.000000e+00> : vector<512x256xf32>
    %20 = tpu.matmul %18, %19, %cst_14 {dimension_numbers = #tpu.dot_dimension_numbers<[1], [0], [0], [1], [0, 0, 1, 1], [], []>} : vector<512x256xf32>, vector<256x256xf32>, vector<512x256xf32> -> vector<512x256xf32>
    %c0_15 = arith.constant 0 : index
    %c0_16 = arith.constant 0 : index
    %21 = vector.load %arg7[%c0_15, %c0_16] : memref<1x256xf32, #tpu.memory_space<vmem>>, vector<1x256xf32>
    %22 = vector.broadcast %21 : vector<1x256xf32> to vector<512x256xf32>
    %23 = arith.addf %20, %22 : vector<512x256xf32>
    %c0_17 = arith.constant 0 : index
    %c0_18 = arith.constant 0 : index
    %24 = vector.load %arg8[%c0_17, %c0_18] : memref<512x256xf32, #tpu.memory_space<vmem>>, vector<512x256xf32>
    tpu.vector_store %arg8[%c0_17, %c0_18], %23 {strides = array<i32>} : memref<512x256xf32, #tpu.memory_space<vmem>>, vector<512x256xf32>,
    return
  }
  func.func @transform_0(%arg0: i32) -> (i32, i32) {
    %c0_i32 = arith.constant 0 : i32
    %c0_i32_0 = arith.constant 0 : i32
    return %arg0, %c0_i32 : i32, i32
  }
  func.func @transform_1(%arg0: i32) -> (i32, i32) {
    %c0_i32 = arith.constant 0 : i32
    %c0_i32_0 = arith.constant 0 : i32
    %c0_i32_1 = arith.constant 0 : i32
    return %c0_i32, %c0_i32_0 : i32, i32
  }
  func.func @transform_2(%arg0: i32) -> (i32, i32) {
    %c0_i32 = arith.constant 0 : i32
    %c0_i32_0 = arith.constant 0 : i32
    %c0_i32_1 = arith.constant 0 : i32
    return %c0_i32, %c0_i32_0 : i32, i32
  }
  func.func @transform_3(%arg0: i32) -> (i32, i32) {
    %c0_i32 = arith.constant 0 : i32
    %c0_i32_0 = arith.constant 0 : i32
    %c0_i32_1 = arith.constant 0 : i32
    return %c0_i32, %c0_i32_0 : i32, i32
  }
  func.func @transform_4(%arg0: i32) -> (i32, i32) {
    %c0_i32 = arith.constant 0 : i32
    %c0_i32_0 = arith.constant 0 : i32
    %c0_i32_1 = arith.constant 0 : i32
    return %c0_i32, %c0_i32_0 : i32, i32
  }
  func.func @transform_5(%arg0: i32) -> (i32, i32) {
    %c0_i32 = arith.constant 0 : i32
    %c0_i32_0 = arith.constant 0 : i32
    %c0_i32_1 = arith.constant 0 : i32
    return %c0_i32, %c0_i32_0 : i32, i32
  }
  func.func @transform_6(%arg0: i32) -> (i32, i32) {
    %c0_i32 = arith.constant 0 : i32
    %c0_i32_0 = arith.constant 0 : i32
    %c0_i32_1 = arith.constant 0 : i32
    return %c0_i32, %c0_i32_0 : i32, i32
  }
  func.func @transform_7(%arg0: i32) -> (i32, i32) {
    %c0_i32 = arith.constant 0 : i32
    %c0_i32_0 = arith.constant 0 : i32
    return %arg0, %c0_i32 : i32, i32
  }
}

</mosaic_0001>

<llo_original>
// kernel: _swiglu_call.1
$region0: #{_swiglu_call.1}
  #allocation0 [shape = 'u32[]', space=smem, size = 0x4, offset = 0x4, fixed_abs, tag = 'smem constant byte address 0x4 - core index']
  #allocation1 [shape = 'u32[144,128]{1,0:T(1,128)}', space=vmem, size = 0x12000, scoped, tag = 'internal scratch']
  %s0 = inlined_call_operand.hbm [shape: f32[512,256], index: 0, kind: input, shape index: {}]
  %s1 = inlined_call_operand.hbm [shape: f32[256,256], index: 1, kind: input, shape index: {}]
  %s2 = inlined_call_operand.vmem [shape: f32[1,256], index: 2, kind: input, shape index: {}]
  %s3 = inlined_call_operand.hbm [shape: f32[256,256], index: 3, kind: input, shape index: {}]
  %s4 = inlined_call_operand.vmem [shape: f32[1,256], index: 4, kind: input, shape index: {}]
  %s5 = inlined_call_operand.hbm [shape: f32[256,256], index: 5, kind: input, shape index: {}]
  %s6 = inlined_call_operand.vmem [shape: f32[1,256], index: 6, kind: input, shape index: {}]
  %s7 = inlined_call_operand.hbm [shape: f32[512,256], index: 7, kind: output, shape index: {}]
  %s8 = sld [smem:[#allocation0]]
  $region54: #{_swiglu_call.1} parent=0
    _
  %s10 = ssub.s32 1, %s8
  %s11 = scalar_select 0, %s10, %s8
  $region1: #{_swiglu_call.1} parent=0
    #allocation2 [shape = 'u8[524288]{0}', space=vmem, size = 0x80000, scoped, tag = 'input window, operand 0, single buffered']
    #allocation3 [shape = 's32[1]{0}', space=sflag, size = 0x4, scoped, tag = 'scoped memory for _swiglu_call.1']
    #allocation4 [shape = 's32[1]{0}', space=sflag, size = 0x4, scoped, tag = 'scoped memory for _swiglu_call.1']
    #allocation5 [shape = 'u8[262144]{0}', space=vmem, size = 0x40000, scoped, tag = 'input window, operand 1, single buffered']
    #allocation6 [shape = 's32[1]{0}', space=sflag, size = 0x4, scoped, tag = 'scoped memory for _swiglu_call.1']
    #allocation7 [shape = 'u8[262144]{0}', space=vmem, size = 0x40000, scoped, tag = 'input window, operand 3, single buffered']
    #allocation8 [shape = 'u8[262144]{0}', space=vmem, size = 0x40000, scoped, tag = 'input window, operand 5, single buffered']
    #allocation9 [shape = 's32[1]{0}', space=sflag, size = 0x4, scoped, tag = 'scoped memory for _swiglu_call.1']
    #allocation10 [shape = 'u8[524288]{0}', space=vmem, size = 0x80000, scoped, tag = 'output window, operand 0, single buffered']
    %12 = vsyncpa [#allocation3], 0
    %13 = vsyncpa [#allocation6], 0
    %14 = vsyncpa [#allocation9], 0
    %15 = vsyncpa [#allocation4], 0
    // Predicated region
    $region2: #{_swiglu_call.1} parent=1 // pred_check
      _
    $region3: #{_swiglu_call.1} parent=1 // pred_check_branch
      %17 = sbr.rel (0) target = $region5
    $region4: #{_swiglu_call.1} parent=1 // pred_region
      %s19 = ssub.s32 16384, 16384
      %20 = vsyncadd [#allocation3], %s19
      %s21 = sshll.u32 [#allocation2], 4
      %s22 = int_to_ptr.vmem [resolvable:$true] %s21
      %27 = dma.hbm_to_vmem [thread:$0]  %s0, 16384, %s22, [#allocation3], 256, 256, 16
    $region5: #{_swiglu_call.1} parent=1 // pred_fallthru
      _
    // Predicated region
    $region6: #{_swiglu_call.1} parent=1 // pred_check
      _
    $region7: #{_swiglu_call.1} parent=1 // pred_check_branch
      %29 = sbr.rel (0) target = $region9
    $region8: #{_swiglu_call.1} parent=1 // pred_region
      %s31 = ssub.s32 8192, 8192
      %32 = vsyncadd [#allocation6], %s31
      %s33 = sshll.u32 [#allocation5], 4
      %s34 = int_to_ptr.vmem [resolvable:$true] %s33
      %39 = dma.hbm_to_vmem [thread:$0]  %s1, 8192, %s34, [#allocation6], 256, 256, 16
    $region9: #{_swiglu_call.1} parent=1 // pred_fallthru
      _
    // Predicated region
    $region10: #{_swiglu_call.1} parent=1 // pred_check
      _
    $region11: #{_swiglu_call.1} parent=1 // pred_check_branch
      %41 = sbr.rel (0) target = $region13
    $region12: #{_swiglu_call.1} parent=1 // pred_region
      _
    $region13: #{_swiglu_call.1} parent=1 // pred_fallthru
      _
    // Predicated region
    $region14: #{_swiglu_call.1} parent=1 // pred_check
      _
    $region15: #{_swiglu_call.1} parent=1 // pred_check_branch
      %43 = sbr.rel (0) target = $region17
    $region16: #{_swiglu_call.1} parent=1 // pred_region
      %s45 = ssub.s32 8192, 8192
      %46 = vsyncadd [#allocation6], %s45
      %s47 = sshll.u32 [#allocation7], 4
      %s48 = int_to_ptr.vmem [resolvable:$true] %s47
      %53 = dma.hbm_to_vmem [thread:$0]  %s3, 8192, %s48, [#allocation6], 256, 256, 16
    $region17: #{_swiglu_call.1} parent=1 // pred_fallthru
      _
    // Predicated region
    $region18: #{_swiglu_call.1} parent=1 // pred_check
      _
    $region19: #{_swiglu_call.1} parent=1 // pred_check_branch
      %55 = sbr.rel (0) target = $region21
    $region20: #{_swiglu_call.1} parent=1 // pred_region
      _
    $region21: #{_swiglu_call.1} parent=1 // pred_fallthru
      _
    // Predicated region
    $region22: #{_swiglu_call.1} parent=1 // pred_check
      _
    $region23: #{_swiglu_call.1} parent=1 // pred_check_branch
      %57 = sbr.rel (0) target = $region25
    $region24: #{_swiglu_call.1} parent=1 // pred_region
      %s59 = ssub.s32 8192, 8192
      %60 = vsyncadd [#allocation9], %s59
      %s61 = sshll.u32 [#allocation8], 4
      %s62 = int_to_ptr.vmem [resolvable:$true] %s61
      %67 = dma.hbm_to_vmem [thread:$0]  %s5, 8192, %s62, [#allocation9], 256, 256, 16
    $region25: #{_swiglu_call.1} parent=1 // pred_fallthru
      _
    // Predicated region
    $region26: #{_swiglu_call.1} parent=1 // pred_check
      _
    $region27: #{_swiglu_call.1} parent=1 // pred_check_branch
      %69 = sbr.rel (0) target = $region29
    $region28: #{_swiglu_call.1} parent=1 // pred_region
      _
    $region29: #{_swiglu_call.1} parent=1 // pred_fallthru
      _
    // Predicated region
    $region30: #{_swiglu_call.1} parent=1 // pred_check
      _
    $region31: #{_swiglu_call.1} parent=1 // pred_check_branch
      %71 = sbr.rel (0) target = $region33
    $region32: #{_swiglu_call.1} parent=1 // pred_region
      %72 = dma.done [#allocation3], 16384
    $region33: #{_swiglu_call.1} parent=1 // pred_fallthru
      _
    // Predicated region
    $region34: #{_swiglu_call.1} parent=1 // pred_check
      _
    $region35: #{_swiglu_call.1} parent=1 // pred_check_branch
      %74 = sbr.rel (0) target = $region37
    $region36: #{_swiglu_call.1} parent=1 // pred_region
      %75 = dma.done [#allocation6], 8192
    $region37: #{_swiglu_call.1} parent=1 // pred_fallthru
      _
    // Predicated region
    $region38: #{_swiglu_call.1} parent=1 // pred_check
      _
    $region39: #{_swiglu_call.1} parent=1 // pred_check_branch
      %77 = sbr.rel (0) target = $region41
    $region40: #{_swiglu_call.1} parent=1 // pred_region
      %78 = dma.done [#allocation6], 8192
    $region41: #{_swiglu_call.1} parent=1 // pred_fallthru
      _
    // Predicated region
    $region42: #{_swiglu_call.1} parent=1 // pred_check
      _
    $region43: #{_swiglu_call.1} parent=1 // pred_check_branch
      %80 = sbr.rel (0) target = $region45
    $region44: #{_swiglu_call.1} parent=1 // pred_region
      %81 = dma.done [#allocation9], 8192
    $region45: #{_swiglu_call.1} parent=1 // pred_fallthru
      _
    %v82 = vld [vmem:[#allocation2] sm:$0xff]
    %v83 = vld [vmem:[#allocation2 + $0x8] sm:$0xff]
    %v84 = vld [vmem:[#allocation2 + $0x10] sm:$0xff]
    %v85 = vld [vmem:[#allocation2 + $0x18] sm:$0xff]
    %v86 = vld [vmem:[#allocation2 + $0x20] sm:$0xff]
    %v87 = vld [vmem:[#allocation2 + $0x28] sm:$0xff]
    %v88 = vld [vmem:[#allocation2 + $0x30] sm:$0xff]
    %v89 = vld [vmem:[#allocation2 + $0x38] sm:$0xff]
    %v90 = vld [vmem:[#allocation2 + $0x40] sm:$0xff]
    %v91 = vld [vmem:[#allocation2 + $0x48] sm:$0xff]
    %v92 = vld [vmem:[#allocation2 + $0x50] sm:$0xff]
    %v93 = vld [vmem:[#allocation2 + $0x58] sm:$0xff]
    %v94 = vld [vmem:[#allocation2 + $0x60] sm:$0xff]
    %v95 = vld [vmem:[#allocation2 + $0x68] sm:$0xff]
    %v96 = vld [vmem:[#allocation2 + $0x70] sm:$0xff]
    %v97 = vld [vmem:[#allocation2 + $0x78] sm:$0xff]
    %v98 = vld [vmem:[#allocation2 + $0x80] sm:$0xff]
    %v99 = vld [vmem:[#allocation2 + $0x88] sm:$0xff]
    %v100 = vld [vmem:[#allocation2 + $0x90] sm:$0xff]
    %v101 = vld [vmem:[#allocation2 + $0x98] sm:$0xff]
    %v102 = vld [vmem:[#allocation2 + $0xa0] sm:$0xff]
    %v103 = vld [vmem:[#allocation2 + $0xa8] sm:$0xff]
    %v104 = vld [vmem:[#allocation2 + $0xb0] sm:$0xff]
    %v105 = vld [vmem:[#allocation2 + $0xb8] sm:$0xff]
    %v106 = vld [vmem:[#allocation2 + $0xc0] sm:$0xff]
    %v107 = vld [vmem:[#allocation2 + $0xc8] sm:$0xff]
    %v108 = vld [vmem:[#allocation2 + $0xd0] sm:$0xff]
    %v109 = vld [vmem:[#allocation2 + $0xd8] sm:$0xff]
    %v110 = vld [vmem:[#allocation2 + $0xe0] sm:$0xff]
    %v111 = vld [vmem:[#allocation2 + $0xe8] sm:$0xff]
    %v112 = vld [vmem:[#allocation2 + $0xf0] sm:$0xff]
    %v113 = vld [vmem:[#allocation2 + $0xf8] sm:$0xff]
    %v114 = vld [vmem:[#allocation2 + $0x100] sm:$0xff]
    %v115 = vld [vmem:[#allocation2 + $0x108] sm:$0xff]
    %v116 = vld [vmem:[#allocation2 + $0x110] sm:$0xff]
    %v117 = vld [vmem:[#allocation2 + $0x118] sm:$0xff]
    %v118 = vld [vmem:[#allocation2 + $0x120] sm:$0xff]
    %v119 = vld [vmem:[#allocation2 + $0x128] sm:$0xff]
    %v120 = vld [vmem:[#allocation2 + $0x130] sm:$0xff]
    %v121 = vld [vmem:[#allocation2 + $0x138] sm:$0xff]
    %v122 = vld [vmem:[#allocation2 + $0x140] sm:$0xff]
    %v123 = vld [vmem:[#allocation2 + $0x148] sm:$0xff]
    %v124 = vld [vmem:[#allocation2 + $0x150] sm:$0xff]
    %v125 = vld [vmem:[#allocation2 + $0x158] sm:$0xff]
    %v126 = vld [vmem:[#allocation2 + $0x160] sm:$0xff]
    %v127 = vld [vmem:[#allocation2 + $0x168] sm:$0xff]
    %v128 = vld [vmem:[#allocation2 + $0x170] sm:$0xff]
    %v129 = vld [vmem:[#allocation2 + $0x178] sm:$0xff]
    %v130 = vld [vmem:[#allocation2 + $0x180] sm:$0xff]
    %v131 = vld [vmem:[#allocation2 + $0x188] sm:$0xff]
    %v132 = vld [vmem:[#allocation2 + $0x190] sm:$0xff]
    %v133 = vld [vmem:[#allocation2 + $0x198] sm:$0xff]
    %v134 = vld [vmem:[#allocation2 + $0x1a0] sm:$0xff]
    %v135 = vld [vmem:[#allocation2 + $0x1a8] sm:$0xff]
    %v136 = vld [vmem:[#allocation2 + $0x1b0] sm:$0xff]
    %v137 = vld [vmem:[#allocation2 + $0x1b8] sm:$0xff]
    %v138 = vld [vmem:[#allocation2 + $0x1c0] sm:$0xff]
    %v139 = vld [vmem:[#allocation2 + $0x1c8] sm:$0xff]
    %v140 = vld [vmem:[#allocation2 + $0x1d0] sm:$0xff]
    %v141 = vld [vmem:[#allocation2 + $0x1d8] sm:$0xff]
    %v142 = vld [vmem:[#allocation2 + $0x1e0] sm:$0xff]
    %v143 = vld [vmem:[#allocation2 + $0x1e8] sm:$0xff]
    %v144 = vld [vmem:[#allocation2 + $0x1f0] sm:$0xff]
    %v145 = vld [vmem:[#allocation2 + $0x1f8] sm:$0xff]
    %v146 = vld [vmem:[#allocation2 + $0x200] sm:$0xff]
    %v147 = vld [vmem:[#allocation2 + $0x208] sm:$0xff]
    %v148 = vld [vmem:[#allocation2 + $0x210] sm:$0xff]
    %v149 = vld [vmem:[#allocation2 + $0x218] sm:$0xff]
    %v150 = vld [vmem:[#allocation2 + $0x220] sm:$0xff]
    %v151 = vld [vmem:[#allocation2 + $0x228] sm:$0xff]
    %v152 = vld [vmem:[#allocation2 + $0x230] sm:$0xff]
    %v153 = vld [vmem:[#allocation2 + $0x238] sm:$0xff]
    %v154 = vld [vmem:[#allocation2 + $0x240] sm:$0xff]
    %v155 = vld [vmem:[#allocation2 + $0x248] sm:$0xff]
    %v156 = vld [vmem:[#allocation2 + $0x250] sm:$0xff]
    %v157 = vld [vmem:[#allocation2 + $0x258] sm:$0xff]
    %v158 = vld [vmem:[#allocation2 + $0x260] sm:$0xff]
    %v159 = vld [vmem:[#allocation2 + $0x268] sm:$0xff]
    %v160 = vld [vmem:[#allocation2 + $0x270] sm:$0xff]
    %v161 = vld [vmem:[#allocation2 + $0x278] sm:$0xff]
    %v162 = vld [vmem:[#allocation2 + $0x280] sm:$0xff]
    %v163 = vld [vmem:[#allocation2 + $0x288] sm:$0xff]
    %v164 = vld [vmem:[#allocation2 + $0x290] sm:$0xff]
    %v165 = vld [vmem:[#allocation2 + $0x298] sm:$0xff]
    %v166 = vld [vmem:[#allocation2 + $0x2a0] sm:$0xff]
    %v167 = vld [vmem:[#allocation2 + $0x2a8] sm:$0xff]
    %v168 = vld [vmem:[#allocation2 + $0x2b0] sm:$0xff]
    %v169 = vld [vmem:[#allocation2 + $0x2b8] sm:$0xff]
    %v170 = vld [vmem:[#allocation2 + $0x2c0] sm:$0xff]
    %v171 = vld [vmem:[#allocation2 + $0x2c8] sm:$0xff]
    %v172 = vld [vmem:[#allocation2 + $0x2d0] sm:$0xff]
    %v173 = vld [vmem:[#allocation2 + $0x2d8] sm:$0xff]
    %v174 = vld [vmem:[#allocation2 + $0x2e0] sm:$0xff]
    %v175 = vld [vmem:[#allocation2 + $0x2e8] sm:$0xff]
    %v176 = vld [vmem:[#allocation2 + $0x2f0] sm:$0xff]
    %v177 = vld [vmem:[#allocation2 + $0x2f8] sm:$0xff]
    %v178 = vld [vmem:[#allocation2 + $0x300] sm:$0xff]
    %v179 = vld [vmem:[#allocation2 + $0x308] sm:$0xff]
    %v180 = vld [vmem:[#allocation2 + $0x310] sm:$0xff]
    %v181 = vld [vmem:[#allocation2 + $0x318] sm:$0xff]
    %v182 = vld [vmem:[#allocation2 + $0x320] sm:$0xff]
    %v183 = vld [vmem:[#allocation2 + $0x328] sm:$0xff]
    %v184 = vld [vmem:[#allocation2 + $0x330] sm:$0xff]
    %v185 = vld [vmem:[#allocation2 + $0x338] sm:$0xff]
    %v186 = vld [vmem:[#allocation2 + $0x340] sm:$0xff]
    %v187 = vld [vmem:[#allocation2 + $0x348] sm:$0xff]
    %v188 = vld [vmem:[#allocation2 + $0x350] sm:$0xff]
    %v189 = vld [vmem:[#allocation2 + $0x358] sm:$0xff]
    %v190 = vld [vmem:[#allocation2 + $0x360] sm:$0xff]
    %v191 = vld [vmem:[#allocation2 + $0x368] sm:$0xff]
    %v192 = vld [vmem:[#allocation2 + $0x370] sm:$0xff]
    %v193 = vld [vmem:[#allocation2 + $0x378] sm:$0xff]
    %v194 = vld [vmem:[#allocation2 + $0x380] sm:$0xff]
    %v195 = vld [vmem:[#allocation2 + $0x388] sm:$0xff]
    %v196 = vld [vmem:[#allocation2 + $0x390] sm:$0xff]
    %v197 = vld [vmem:[#allocation2 + $0x398] sm:$0xff]
    %v198 = vld [vmem:[#allocation2 + $0x3a0] sm:$0xff]
    %v199 = vld [vmem:[#allocation2 + $0x3a8] sm:$0xff]
    %v200 = vld [vmem:[#allocation2 + $0x3b0] sm:$0xff]
    %v201 = vld [vmem:[#allocation2 + $0x3b8] sm:$0xff]
    %v202 = vld [vmem:[#allocation2 + $0x3c0] sm:$0xff]
    %v203 = vld [vmem:[#allocation2 + $0x3c8] sm:$0xff]
    %v204 = vld [vmem:[#allocation2 + $0x3d0] sm:$0xff]
    %v205 = vld [vmem:[#allocation2 + $0x3d8] sm:$0xff]
    %v206 = vld [vmem:[#allocation2 + $0x3e0] sm:$0xff]
    %v207 = vld [vmem:[#allocation2 + $0x3e8] sm:$0xff]
    %v208 = vld [vmem:[#allocation2 + $0x3f0] sm:$0xff]
    %v209 = vld [vmem:[#allocation2 + $0x3f8] sm:$0xff]
    %v210 = vld [vmem:[#allocation5] sm:$0xff]
    %v211 = vld [vmem:[#allocation5 + $0x8] sm:$0xff]
    %v212 = vld [vmem:[#allocation5 + $0x10] sm:$0xff]
    %v213 = vld [vmem:[#allocation5 + $0x18] sm:$0xff]
    %v214 = vld [vmem:[#allocation5 + $0x20] sm:$0xff]
    %v215 = vld [vmem:[#allocation5 + $0x28] sm:$0xff]
    %v216 = vld [vmem:[#allocation5 + $0x30] sm:$0xff]
    %v217 = vld [vmem:[#allocation5 + $0x38] sm:$0xff]
    %v218 = vld [vmem:[#allocation5 + $0x40] sm:$0xff]
    %v219 = vld [vmem:[#allocation5 + $0x48] sm:$0xff]
    %v220 = vld [vmem:[#allocation5 + $0x50] sm:$0xff]
    %v221 = vld [vmem:[#allocation5 + $0x58] sm:$0xff]
    %v222 = vld [vmem:[#allocation5 + $0x60] sm:$0xff]
    %v223 = vld [vmem:[#allocation5 + $0x68] sm:$0xff]
    %v224 = vld [vmem:[#allocation5 + $0x70] sm:$0xff]
    %v225 = vld [vmem:[#allocation5 + $0x78] sm:$0xff]
    %v226 = vld [vmem:[#allocation5 + $0x80] sm:$0xff]
    %v227 = vld [vmem:[#allocation5 + $0x88] sm:$0xff]
    %v228 = vld [vmem:[#allocation5 + $0x90] sm:$0xff]
    %v229 = vld [vmem:[#allocation5 + $0x98] sm:$0xff]
    %v230 = vld [vmem:[#allocation5 + $0xa0] sm:$0xff]
    %v231 = vld [vmem:[#allocation5 + $0xa8] sm:$0xff]
    %v232 = vld [vmem:[#allocation5 + $0xb0] sm:$0xff]
    %v233 = vld [vmem:[#allocation5 + $0xb8] sm:$0xff]
    %v234 = vld [vmem:[#allocation5 + $0xc0] sm:$0xff]
    %v235 = vld [vmem:[#allocation5 + $0xc8] sm:$0xff]
    %v236 = vld [vmem:[#allocation5 + $0xd0] sm:$0xff]
    %v237 = vld [vmem:[#allocation5 + $0xd8] sm:$0xff]
    %v238 = vld [vmem:[#allocation5 + $0xe0] sm:$0xff]
    %v239 = vld [vmem:[#allocation5 + $0xe8] sm:$0xff]
    %v240 = vld [vmem:[#allocation5 + $0xf0] sm:$0xff]
    %v241 = vld [vmem:[#allocation5 + $0xf8] sm:$0xff]
    %v242 = vld [vmem:[#allocation5 + $0x100] sm:$0xff]
    %v243 = vld [vmem:[#allocation5 + $0x108] sm:$0xff]
    %v244 = vld [vmem:[#allocation5 + $0x110] sm:$0xff]
    %v245 = vld [vmem:[#allocation5 + $0x118] sm:$0xff]
    %v246 = vld [vmem:[#allocation5 + $0x120] sm:$0xff]
    %v247 = vld [vmem:[#allocation5 + $0x128] sm:$0xff]
    %v248 = vld [vmem:[#allocation5 + $0x130] sm:$0xff]
    %v249 = vld [vmem:[#allocation5 + $0x138] sm:$0xff]
    %v250 = vld [vmem:[#allocation5 + $0x140] sm:$0xff]
    %v251 = vld [vmem:[#allocation5 + $0x148] sm:$0xff]
    %v252 = vld [vmem:[#allocation5 + $0x150] sm:$0xff]
    %v253 = vld [vmem:[#allocation5 + $0x158] sm:$0xff]
    %v254 = vld [vmem:[#allocation5 + $0x160] sm:$0xff]
    %v255 = vld [vmem:[#allocation5 + $0x168] sm:$0xff]
    %v256 = vld [vmem:[#allocation5 + $0x170] sm:$0xff]
    %v257 = vld [vmem:[#allocation5 + $0x178] sm:$0xff]
    %v258 = vld [vmem:[#allocation5 + $0x180] sm:$0xff]
    %v259 = vld [vmem:[#allocation5 + $0x188] sm:$0xff]
    %v260 = vld [vmem:[#allocation5 + $0x190] sm:$0xff]
    %v261 = vld [vmem:[#allocation5 + $0x198] sm:$0xff]
    %v262 = vld [vmem:[#allocation5 + $0x1a0] sm:$0xff]
    %v263 = vld [vmem:[#allocation5 + $0x1a8] sm:$0xff]
    %v264 = vld [vmem:[#allocation5 + $0x1b0] sm:$0xff]
    %v265 = vld [vmem:[#allocation5 + $0x1b8] sm:$0xff]
    %v266 = vld [vmem:[#allocation5 + $0x1c0] sm:$0xff]
    %v267 = vld [vmem:[#allocation5 + $0x1c8] sm:$0xff]
    %v268 = vld [vmem:[#allocation5 + $0x1d0] sm:$0xff]
    %v269 = vld [vmem:[#allocation5 + $0x1d8] sm:$0xff]
    %v270 = vld [vmem:[#allocation5 + $0x1e0] sm:$0xff]
    %v271 = vld [vmem:[#allocation5 + $0x1e8] sm:$0xff]
    %v272 = vld [vmem:[#allocation5 + $0x1f0] sm:$0xff]
    %v273 = vld [vmem:[#allocation5 + $0x1f8] sm:$0xff]
    %v274 = vld [vmem:[%s2] sm:$0x3]
    %v276 = vlaneseq
    %v277 = vshrl.u32 %v276, 7
    %v278 = vsub.s32 0, %v277
    %v279 = vrot.slane %v274, %v278
    %v280 = vlaneseq
    %v281 = vshrl.u32 %v280, 7
    %v282 = vsub.s32 1, %v281
    %v283 = vrot.slane %v274, %v282
    %286 = vmatprep.subr.mxu0 %v241
    %287 = vmatpush1.msra.mxu0 %v240
    %288 = vmatprep.subr.mxu0 %v239
    %289 = vmatpush1.msra.mxu0 %v238
    %290 = vmatprep.subr.mxu0 %v237
    %291 = vmatpush1.msra.mxu0 %v236
    %292 = vmatprep.subr.mxu0 %v235
    %293 = vmatpush1.msra.mxu0 %v234
    %294 = vmatprep.subr.mxu0 %v233
    %295 = vmatpush1.msra.mxu0 %v232
    %296 = vmatprep.subr.mxu0 %v231
    %297 = vmatpush1.msra.mxu0 %v230
    %298 = vmatprep.subr.mxu0 %v229
    %299 = vmatpush1.msra.mxu0 %v228
    %300 = vmatprep.subr.mxu0 %v227
    %301 = vmatpush1.msra.mxu0 %v226
    %302 = vmatprep.subr.mxu0 %v225
    %303 = vmatpush1.msra.mxu0 %v224
    %304 = vmatprep.subr.mxu0 %v223
    %305 = vmatpush1.msra.mxu0 %v222
    %306 = vmatprep.subr.mxu0 %v221
    %307 = vmatpush1.msra.mxu0 %v220
    %308 = vmatprep.subr.mxu0 %v219
    %309 = vmatpush1.msra.mxu0 %v218
    %310 = vmatprep.subr.mxu0 %v217
    %311 = vmatpush1.msra.mxu0 %v216
    %312 = vmatprep.subr.mxu0 %v215
    %313 = vmatpush1.msra.mxu0 %v214
    %314 = vmatprep.subr.mxu0 %v213
    %315 = vmatpush1.msra.mxu0 %v212
    %316 = vmatprep.subr.mxu0 %v211
    %317 = vmatpush1.msra.mxu0 %v210
    %318 = vmatprep.subr.mxu0 %v273
    %319 = vmatpush2.msra.mxu0 %v272
    %320 = vmatprep.subr.mxu0 %v271
    %321 = vmatpush2.msra.mxu0 %v270
    %322 = vmatprep.subr.mxu0 %v269
    %323 = vmatpush2.msra.mxu0 %v268
    %324 = vmatprep.subr.mxu0 %v267
    %325 = vmatpush2.msra.mxu0 %v266
    %326 = vmatprep.subr.mxu0 %v265
    %327 = vmatpush2.msra.mxu0 %v264
    %328 = vmatprep.subr.mxu0 %v263
    %329 = vmatpush2.msra.mxu0 %v262
    %330 = vmatprep.subr.mxu0 %v261
    %331 = vmatpush2.msra.mxu0 %v260
    %332 = vmatprep.subr.mxu0 %v259
    %333 = vmatpush2.msra.mxu0 %v258
    %334 = vmatprep.subr.mxu0 %v257
    %335 = vmatpush2.msra.mxu0 %v256
    %336 = vmatprep.subr.mxu0 %v255
    %337 = vmatpush2.msra.mxu0 %v254
    %338 = vmatprep.subr.mxu0 %v253
    %339 = vmatpush2.msra.mxu0 %v252
    %340 = vmatprep.subr.mxu0 %v251
    %341 = vmatpush2.msra.mxu0 %v250
    %342 = vmatprep.subr.mxu0 %v249
    %343 = vmatpush2.msra.mxu0 %v248
    %344 = vmatprep.subr.mxu0 %v247
    %345 = vmatpush2.msra.mxu0 %v246
    %346 = vmatprep.subr.mxu0 %v245
    %347 = vmatpush2.msra.mxu0 %v244
    %348 = vmatprep.subr.mxu0 %v243
    %349 = vmatpush2.msra.mxu0 %v242
    %350 = vmatprep.mubr.f32.mxu0 %v83
    %351 = vmatmul.mubr.f32.gmra.mxu0 %v82
    %v352 = vpop.f32.mrf.mxu0
    %v353 = vadd.f32 %v279, %v352
    %v354 = vpop.f32.mrf.mxu0
    %v355 = vadd.f32 %v283, %v354
    %356 = vmatprep.mubr.f32.mxu0 %v85
    %357 = vmatmul.mubr.f32.gmra.mxu0 %v84
    %v358 = vpop.f32.mrf.mxu0
    %v359 = vadd.f32 %v279, %v358
    %v360 = vpop.f32.mrf.mxu0
    %v361 = vadd.f32 %v283, %v360
    %362 = vmatprep.mubr.f32.mxu0 %v87
    %363 = vmatmul.mubr.f32.gmra.mxu0 %v86
    %v364 = vpop.f32.mrf.mxu0
    %v365 = vadd.f32 %v279, %v364
    %v366 = vpop.f32.mrf.mxu0
    %v367 = vadd.f32 %v283, %v366
    %368 = vmatprep.mubr.f32.mxu0 %v89
    %369 = vmatmul.mubr.f32.gmra.mxu0 %v88
    %v370 = vpop.f32.mrf.mxu0
    %v371 = vadd.f32 %v279, %v370
    %v372 = vpop.f32.mrf.mxu0
    %v373 = vadd.f32 %v283, %v372
    %374 = vmatprep.mubr.f32.mxu0 %v91
    %375 = vmatmul.mubr.f32.gmra.mxu0 %v90
    %v376 = vpop.f32.mrf.mxu0
    %v377 = vadd.f32 %v279, %v376
    %v378 = vpop.f32.mrf.mxu0
    %v379 = vadd.f32 %v283, %v378
    %380 = vmatprep.mubr.f32.mxu0 %v93
    %381 = vmatmul.mubr.f32.gmra.mxu0 %v92
    %v382 = vpop.f32.mrf.mxu0
    %v383 = vadd.f32 %v279, %v382
    %v384 = vpop.f32.mrf.mxu0
    %v385 = vadd.f32 %v283, %v384
    %386 = vmatprep.mubr.f32.mxu0 %v95
    %387 = vmatmul.mubr.f32.gmra.mxu0 %v94
    %v388 = vpop.f32.mrf.mxu0
    %v389 = vadd.f32 %v279, %v388
    %v390 = vpop.f32.mrf.mxu0
    %v391 = vadd.f32 %v283, %v390
    %392 = vmatprep.mubr.f32.mxu0 %v97
    %393 = vmatmul.mubr.f32.gmra.mxu0 %v96
    %v394 = vpop.f32.mrf.mxu0
    %v395 = vadd.f32 %v279, %v394
    %v396 = vpop.f32.mrf.mxu0
    %v397 = vadd.f32 %v283, %v396
    %398 = vmatprep.mubr.f32.mxu0 %v99
    %399 = vmatmul.mubr.f32.gmra.mxu0 %v98
    %v400 = vpop.f32.mrf.mxu0
    %v401 = vadd.f32 %v279, %v400
    %v402 = vpop.f32.mrf.mxu0
    %v403 = vadd.f32 %v283, %v402
    %404 = vmatprep.mubr.f32.mxu0 %v101
    %405 = vmatmul.mubr.f32.gmra.mxu0 %v100
    %v406 = vpop.f32.mrf.mxu0
    %v407 = vadd.f32 %v279, %v406
    %v408 = vpop.f32.mrf.mxu0
    %v409 = vadd.f32 %v283, %v408
    %410 = vmatprep.mubr.f32.mxu0 %v103
    %411 = vmatmul.mubr.f32.gmra.mxu0 %v102
    %v412 = vpop.f32.mrf.mxu0
    %v413 = vadd.f32 %v279, %v412
    %v414 = vpop.f32.mrf.mxu0
    %v415 = vadd.f32 %v283, %v414
    %416 = vmatprep.mubr.f32.mxu0 %v105
    %417 = vmatmul.mubr.f32.gmra.mxu0 %v104
    %v418 = vpop.f32.mrf.mxu0
    %v419 = vadd.f32 %v279, %v418
    %v420 = vpop.f32.mrf.mxu0
    %v421 = vadd.f32 %v283, %v420
    %422 = vmatprep.mubr.f32.mxu0 %v107
    %423 = vmatmul.mubr.f32.gmra.mxu0 %v106
    %v424 = vpop.f32.mrf.mxu0
    %v425 = vadd.f32 %v279, %v424
    %v426 = vpop.f32.mrf.mxu0
    %v427 = vadd.f32 %v283, %v426
    %428 = vmatprep.mubr.f32.mxu0 %v109
    %429 = vmatmul.mubr.f32.gmra.mxu0 %v108
    %v430 = vpop.f32.mrf.mxu0
    %v431 = vadd.f32 %v279, %v430
    %v432 = vpop.f32.mrf.mxu0
    %v433 = vadd.f32 %v283, %v432
    %434 = vmatprep.mubr.f32.mxu0 %v111
    %435 = vmatmul.mubr.f32.gmra.mxu0 %v110
    %v436 = vpop.f32.mrf.mxu0
    %v437 = vadd.f32 %v279, %v436
    %v438 = vpop.f32.mrf.mxu0
    %v439 = vadd.f32 %v283, %v438
    %440 = vmatprep.mubr.f32.mxu0 %v113
    %441 = vmatmul.mubr.f32.gmra.mxu0 %v112
    %v442 = vpop.f32.mrf.mxu0
    %v443 = vadd.f32 %v279, %v442
    %v444 = vpop.f32.mrf.mxu0
    %v445 = vadd.f32 %v283, %v444
    %446 = vmatprep.mubr.f32.mxu0 %v115
    %447 = vmatmul.mubr.f32.gmra.mxu0 %v114
    %v448 = vpop.f32.mrf.mxu0
    %v449 = vadd.f32 %v279, %v448
    %v450 = vpop.f32.mrf.mxu0
    %v451 = vadd.f32 %v283, %v450
    %452 = vmatprep.mubr.f32.mxu0 %v117
    %453 = vmatmul.mubr.f32.gmra.mxu0 %v116
    %v454 = vpop.f32.mrf.mxu0
    %v455 = vadd.f32 %v279, %v454
    %v456 = vpop.f32.mrf.mxu0
    %v457 = vadd.f32 %v283, %v456
    %458 = vmatprep.mubr.f32.mxu0 %v119
    %459 = vmatmul.mubr.f32.gmra.mxu0 %v118
    %v460 = vpop.f32.mrf.mxu0
    %v461 = vadd.f32 %v279, %v460
    %v462 = vpop.f32.mrf.mxu0
    %v463 = vadd.f32 %v283, %v462
    %464 = vmatprep.mubr.f32.mxu0 %v121
    %465 = vmatmul.mubr.f32.gmra.mxu0 %v120
    %v466 = vpop.f32.mrf.mxu0
    %v467 = vadd.f32 %v279, %v466
    %v468 = vpop.f32.mrf.mxu0
    %v469 = vadd.f32 %v283, %v468
    %470 = vmatprep.mubr.f32.mxu0 %v123
    %471 = vmatmul.mubr.f32.gmra.mxu0 %v122
    %v472 = vpop.f32.mrf.mxu0
    %v473 = vadd.f32 %v279, %v472
    %v474 = vpop.f32.mrf.mxu0
    %v475 = vadd.f32 %v283, %v474
    %476 = vmatprep.mubr.f32.mxu0 %v125
    %477 = vmatmul.mubr.f32.gmra.mxu0 %v124
    %v478 = vpop.f32.mrf.mxu0
    %v479 = vadd.f32 %v279, %v478
    %v480 = vpop.f32.mrf.mxu0
    %v481 = vadd.f32 %v283, %v480
    %482 = vmatprep.mubr.f32.mxu0 %v127
    %483 = vmatmul.mubr.f32.gmra.mxu0 %v126
    %v484 = vpop.f32.mrf.mxu0
    %v485 = vadd.f32 %v279, %v484
    %v486 = vpop.f32.mrf.mxu0
    %v487 = vadd.f32 %v283, %v486
    %488 = vmatprep.mubr.f32.mxu0 %v129
    %489 = vmatmul.mubr.f32.gmra.mxu0 %v128
    %v490 = vpop.f32.mrf.mxu0
    %v491 = vadd.f32 %v279, %v490
    %v492 = vpop.f32.mrf.mxu0
    %v493 = vadd.f32 %v283, %v492
    %494 = vmatprep.mubr.f32.mxu0 %v131
    %495 = vmatmul.mubr.f32.gmra.mxu0 %v130
    %v496 = vpop.f32.mrf.mxu0
    %v497 = vadd.f32 %v279, %v496
    %v498 = vpop.f32.mrf.mxu0
    %v499 = vadd.f32 %v283, %v498
    %500 = vmatprep.mubr.f32.mxu0 %v133
    %501 = vmatmul.mubr.f32.gmra.mxu0 %v132
    %v502 = vpop.f32.mrf.mxu0
    %v503 = vadd.f32 %v279, %v502
    %v504 = vpop.f32.mrf.mxu0
    %v505 = vadd.f32 %v283, %v504
    %506 = vmatprep.mubr.f32.mxu0 %v135
    %507 = vmatmul.mubr.f32.gmra.mxu0 %v134
    %v508 = vpop.f32.mrf.mxu0
    %v509 = vadd.f32 %v279, %v508
    %v510 = vpop.f32.mrf.mxu0
    %v511 = vadd.f32 %v283, %v510
    %512 = vmatprep.mubr.f32.mxu0 %v137
    %513 = vmatmul.mubr.f32.gmra.mxu0 %v136
    %v514 = vpop.f32.mrf.mxu0
    %v515 = vadd.f32 %v279, %v514
    %v516 = vpop.f32.mrf.mxu0
    %v517 = vadd.f32 %v283, %v516
    %518 = vmatprep.mubr.f32.mxu0 %v139
    %519 = vmatmul.mubr.f32.gmra.mxu0 %v138
    %v520 = vpop.f32.mrf.mxu0
    %v521 = vadd.f32 %v279, %v520
    %v522 = vpop.f32.mrf.mxu0
    %v523 = vadd.f32 %v283, %v522
    %524 = vmatprep.mubr.f32.mxu0 %v141
    %525 = vmatmul.mubr.f32.gmra.mxu0 %v140
    %v526 = vpop.f32.mrf.mxu0
    %v527 = vadd.f32 %v279, %v526
    %v528 = vpop.f32.mrf.mxu0
    %v529 = vadd.f32 %v283, %v528
    %530 = vmatprep.mubr.f32.mxu0 %v143
    %531 = vmatmul.mubr.f32.gmra.mxu0 %v142
    %v532 = vpop.f32.mrf.mxu0
    %v533 = vadd.f32 %v279, %v532
    %v534 = vpop.f32.mrf.mxu0
    %v535 = vadd.f32 %v283, %v534
    %536 = vmatprep.mubr.f32.mxu0 %v145
    %537 = vmatmul.mubr.f32.gmra.mxu0 %v144
    %v538 = vpop.f32.mrf.mxu0
    %v539 = vadd.f32 %v279, %v538
    %v540 = vpop.f32.mrf.mxu0
    %v541 = vadd.f32 %v283, %v540
    %542 = vmatprep.mubr.f32.mxu0 %v147
    %543 = vmatmul.mubr.f32.gmra.mxu0 %v146
    %v544 = vpop.f32.mrf.mxu0
    %v545 = vadd.f32 %v279, %v544
    %v546 = vpop.f32.mrf.mxu0
    %v547 = vadd.f32 %v283, %v546
    %548 = vmatprep.mubr.f32.mxu0 %v149
    %549 = vmatmul.mubr.f32.gmra.mxu0 %v148
    %v550 = vpop.f32.mrf.mxu0
    %v551 = vadd.f32 %v279, %v550
    %v552 = vpop.f32.mrf.mxu0
    %v553 = vadd.f32 %v283, %v552
    %554 = vmatprep.mubr.f32.mxu0 %v151
    %555 = vmatmul.mubr.f32.gmra.mxu0 %v150
    %v556 = vpop.f32.mrf.mxu0
    %v557 = vadd.f32 %v279, %v556
    %v558 = vpop.f32.mrf.mxu0
    %v559 = vadd.f32 %v283, %v558
    %560 = vmatprep.mubr.f32.mxu0 %v153
    %561 = vmatmul.mubr.f32.gmra.mxu0 %v152
    %v562 = vpop.f32.mrf.mxu0
    %v563 = vadd.f32 %v279, %v562
    %v564 = vpop.f32.mrf.mxu0
    %v565 = vadd.f32 %v283, %v564
    %566 = vmatprep.mubr.f32.mxu0 %v155
    %567 = vmatmul.mubr.f32.gmra.mxu0 %v154
    %v568 = vpop.f32.mrf.mxu0
    %v569 = vadd.f32 %v279, %v568
    %v570 = vpop.f32.mrf.mxu0
    %v571 = vadd.f32 %v283, %v570
    %572 = vmatprep.mubr.f32.mxu0 %v157
    %573 = vmatmul.mubr.f32.gmra.mxu0 %v156
    %v574 = vpop.f32.mrf.mxu0
    %v575 = vadd.f32 %v279, %v574
    %v576 = vpop.f32.mrf.mxu0
    %v577 = vadd.f32 %v283, %v576
    %578 = vmatprep.mubr.f32.mxu0 %v159
    %579 = vmatmul.mubr.f32.gmra.mxu0 %v158
    %v580 = vpop.f32.mrf.mxu0
    %v581 = vadd.f32 %v279, %v580
    %v582 = vpop.f32.mrf.mxu0
    %v583 = vadd.f32 %v283, %v582
    %584 = vmatprep.mubr.f32.mxu0 %v161
    %585 = vmatmul.mubr.f32.gmra.mxu0 %v160
    %v586 = vpop.f32.mrf.mxu0
    %v587 = vadd.f32 %v279, %v586
    %v588 = vpop.f32.mrf.mxu0
    %v589 = vadd.f32 %v283, %v588
    %590 = vmatprep.mubr.f32.mxu0 %v163
    %591 = vmatmul.mubr.f32.gmra.mxu0 %v162
    %v592 = vpop.f32.mrf.mxu0
    %v593 = vadd.f32 %v279, %v592
    %v594 = vpop.f32.mrf.mxu0
    %v595 = vadd.f32 %v283, %v594
    %596 = vmatprep.mubr.f32.mxu0 %v165
    %597 = vmatmul.mubr.f32.gmra.mxu0 %v164
    %v598 = vpop.f32.mrf.mxu0
    %v599 = vadd.f32 %v279, %v598
    %v600 = vpop.f32.mrf.mxu0
    %v601 = vadd.f32 %v283, %v600
    %602 = vmatprep.mubr.f32.mxu0 %v167
    %603 = vmatmul.mubr.f32.gmra.mxu0 %v166
    %v604 = vpop.f32.mrf.mxu0
    %v605 = vadd.f32 %v279, %v604
    %v606 = vpop.f32.mrf.mxu0
    %v607 = vadd.f32 %v283, %v606
    %608 = vmatprep.mubr.f32.mxu0 %v169
    %609 = vmatmul.mubr.f32.gmra.mxu0 %v168
    %v610 = vpop.f32.mrf.mxu0
    %v611 = vadd.f32 %v279, %v610
    %v612 = vpop.f32.mrf.mxu0
    %v613 = vadd.f32 %v283, %v612
    %614 = vmatprep.mubr.f32.mxu0 %v171
    %615 = vmatmul.mubr.f32.gmra.mxu0 %v170
    %v616 = vpop.f32.mrf.mxu0
    %v617 = vadd.f32 %v279, %v616
    %v618 = vpop.f32.mrf.mxu0
    %v619 = vadd.f32 %v283, %v618
    %620 = vmatprep.mubr.f32.mxu0 %v173
    %621 = vmatmul.mubr.f32.gmra.mxu0 %v172
    %v622 = vpop.f32.mrf.mxu0
    %v623 = vadd.f32 %v279, %v622
    %v624 = vpop.f32.mrf.mxu0
    %v625 = vadd.f32 %v283, %v624
    %626 = vmatprep.mubr.f32.mxu0 %v175
    %627 = vmatmul.mubr.f32.gmra.mxu0 %v174
    %v628 = vpop.f32.mrf.mxu0
    %v629 = vadd.f32 %v279, %v628
    %v630 = vpop.f32.mrf.mxu0
    %v631 = vadd.f32 %v283, %v630
    %632 = vmatprep.mubr.f32.mxu0 %v177
    %633 = vmatmul.mubr.f32.gmra.mxu0 %v176
    %v634 = vpop.f32.mrf.mxu0
    %v635 = vadd.f32 %v279, %v634
    %v636 = vpop.f32.mrf.mxu0
    %v637 = vadd.f32 %v283, %v636
    %638 = vmatprep.mubr.f32.mxu0 %v179
    %639 = vmatmul.mubr.f32.gmra.mxu0 %v178
    %v640 = vpop.f32.mrf.mxu0
    %v641 = vadd.f32 %v279, %v640
    %v642 = vpop.f32.mrf.mxu0
    %v643 = vadd.f32 %v283, %v642
    %644 = vmatprep.mubr.f32.mxu0 %v181
    %645 = vmatmul.mubr.f32.gmra.mxu0 %v180
    %v646 = vpop.f32.mrf.mxu0
    %v647 = vadd.f32 %v279, %v646
    %v648 = vpop.f32.mrf.mxu0
    %v649 = vadd.f32 %v283, %v648
    %650 = vmatprep.mubr.f32.mxu0 %v183
    %651 = vmatmul.mubr.f32.gmra.mxu0 %v182
    %v652 = vpop.f32.mrf.mxu0
    %v653 = vadd.f32 %v279, %v652
    %v654 = vpop.f32.mrf.mxu0
    %v655 = vadd.f32 %v283, %v654
    %656 = vmatprep.mubr.f32.mxu0 %v185
    %657 = vmatmul.mubr.f32.gmra.mxu0 %v184
    %v658 = vpop.f32.mrf.mxu0
    %v659 = vadd.f32 %v279, %v658
    %v660 = vpop.f32.mrf.mxu0
    %v661 = vadd.f32 %v283, %v660
    %662 = vmatprep.mubr.f32.mxu0 %v187
    %663 = vmatmul.mubr.f32.gmra.mxu0 %v186
    %v664 = vpop.f32.mrf.mxu0
    %v665 = vadd.f32 %v279, %v664
    %v666 = vpop.f32.mrf.mxu0
    %v667 = vadd.f32 %v283, %v666
    %668 = vmatprep.mubr.f32.mxu0 %v189
    %669 = vmatmul.mubr.f32.gmra.mxu0 %v188
    %v670 = vpop.f32.mrf.mxu0
    %v671 = vadd.f32 %v279, %v670
    %v672 = vpop.f32.mrf.mxu0
    %v673 = vadd.f32 %v283, %v672
    %674 = vmatprep.mubr.f32.mxu0 %v191
    %675 = vmatmul.mubr.f32.gmra.mxu0 %v190
    %v676 = vpop.f32.mrf.mxu0
    %v677 = vadd.f32 %v279, %v676
    %v678 = vpop.f32.mrf.mxu0
    %v679 = vadd.f32 %v283, %v678
    %680 = vmatprep.mubr.f32.mxu0 %v193
    %681 = vmatmul.mubr.f32.gmra.mxu0 %v192
    %v682 = vpop.f32.mrf.mxu0
    %v683 = vadd.f32 %v279, %v682
    %v684 = vpop.f32.mrf.mxu0
    %v685 = vadd.f32 %v283, %v684
    %686 = vmatprep.mubr.f32.mxu0 %v195
    %687 = vmatmul.mubr.f32.gmra.mxu0 %v194
    %v688 = vpop.f32.mrf.mxu0
    %v689 = vadd.f32 %v279, %v688
    %v690 = vpop.f32.mrf.mxu0
    %v691 = vadd.f32 %v283, %v690
    %692 = vmatprep.mubr.f32.mxu0 %v197
    %693 = vmatmul.mubr.f32.gmra.mxu0 %v196
    %v694 = vpop.f32.mrf.mxu0
    %v695 = vadd.f32 %v279, %v694
    %v696 = vpop.f32.mrf.mxu0
    %v697 = vadd.f32 %v283, %v696
    %698 = vmatprep.mubr.f32.mxu0 %v199
    %699 = vmatmul.mubr.f32.gmra.mxu0 %v198
    %v700 = vpop.f32.mrf.mxu0
    %v701 = vadd.f32 %v279, %v700
    %v702 = vpop.f32.mrf.mxu0
    %v703 = vadd.f32 %v283, %v702
    %704 = vmatprep.mubr.f32.mxu0 %v201
    %705 = vmatmul.mubr.f32.gmra.mxu0 %v200
    %v706 = vpop.f32.mrf.mxu0
    %v707 = vadd.f32 %v279, %v706
    %v708 = vpop.f32.mrf.mxu0
    %v709 = vadd.f32 %v283, %v708
    %710 = vmatprep.mubr.f32.mxu0 %v203
    %711 = vmatmul.mubr.f32.gmra.mxu0 %v202
    %v712 = vpop.f32.mrf.mxu0
    %v713 = vadd.f32 %v279, %v712
    %v714 = vpop.f32.mrf.mxu0
    %v715 = vadd.f32 %v283, %v714
    %716 = vmatprep.mubr.f32.mxu0 %v205
    %717 = vmatmul.mubr.f32.gmra.mxu0 %v204
    %v718 = vpop.f32.mrf.mxu0
    %v719 = vadd.f32 %v279, %v718
    %v720 = vpop.f32.mrf.mxu0
    %v721 = vadd.f32 %v283, %v720
    %722 = vmatprep.mubr.f32.mxu0 %v207
    %723 = vmatmul.mubr.f32.gmra.mxu0 %v206
    %v724 = vpop.f32.mrf.mxu0
    %v725 = vadd.f32 %v279, %v724
    %v726 = vpop.f32.mrf.mxu0
    %v727 = vadd.f32 %v283, %v726
    %728 = vmatprep.mubr.f32.mxu0 %v209
    %729 = vmatmul.mubr.f32.gmra.mxu0 %v208
    %v730 = vpop.f32.mrf.mxu0
    %v731 = vadd.f32 %v279, %v730
    %v732 = vpop.f32.mrf.mxu0
    %v733 = vadd.f32 %v283, %v732
    %734 = vdwg.mxu0
    %v735 = vld [vmem:[#allocation7] sm:$0xff]
    %v736 = vld [vmem:[#allocation7 + $0x8] sm:$0xff]
    %v737 = vld [vmem:[#allocation7 + $0x10] sm:$0xff]
    %v738 = vld [vmem:[#allocation7 + $0x18] sm:$0xff]
    %v739 = vld [vmem:[#allocation7 + $0x20] sm:$0xff]
    %v740 = vld [vmem:[#allocation7 + $0x28] sm:$0xff]
    %v741 = vld [vmem:[#allocation7 + $0x30] sm:$0xff]
    %v742 = vld [vmem:[#allocation7 + $0x38] sm:$0xff]
    %v743 = vld [vmem:[#allocation7 + $0x40] sm:$0xff]
    %v744 = vld [vmem:[#allocation7 + $0x48] sm:$0xff]
    %v745 = vld [vmem:[#allocation7 + $0x50] sm:$0xff]
    %v746 = vld [vmem:[#allocation7 + $0x58] sm:$0xff]
    %v747 = vld [vmem:[#allocation7 + $0x60] sm:$0xff]
    %v748 = vld [vmem:[#allocation7 + $0x68] sm:$0xff]
    %v749 = vld [vmem:[#allocation7 + $0x70] sm:$0xff]
    %v750 = vld [vmem:[#allocation7 + $0x78] sm:$0xff]
    %v751 = vld [vmem:[#allocation7 + $0x80] sm:$0xff]
    %v752 = vld [vmem:[#allocation7 + $0x88] sm:$0xff]
    %v753 = vld [vmem:[#allocation7 + $0x90] sm:$0xff]
    %v754 = vld [vmem:[#allocation7 + $0x98] sm:$0xff]
    %v755 = vld [vmem:[#allocation7 + $0xa0] sm:$0xff]
    %v756 = vld [vmem:[#allocation7 + $0xa8] sm:$0xff]
    %v757 = vld [vmem:[#allocation7 + $0xb0] sm:$0xff]
    %v758 = vld [vmem:[#allocation7 + $0xb8] sm:$0xff]
    %v759 = vld [vmem:[#allocation7 + $0xc0] sm:$0xff]
    %v760 = vld [vmem:[#allocation7 + $0xc8] sm:$0xff]
    %v761 = vld [vmem:[#allocation7 + $0xd0] sm:$0xff]
    %v762 = vld [vmem:[#allocation7 + $0xd8] sm:$0xff]
    %v763 = vld [vmem:[#allocation7 + $0xe0] sm:$0xff]
    %v764 = vld [vmem:[#allocation7 + $0xe8] sm:$0xff]
    %v765 = vld [vmem:[#allocation7 + $0xf0] sm:$0xff]
    %v766 = vld [vmem:[#allocation7 + $0xf8] sm:$0xff]
    %v767 = vld [vmem:[#allocation7 + $0x100] sm:$0xff]
    %v768 = vld [vmem:[#allocation7 + $0x108] sm:$0xff]
    %v769 = vld [vmem:[#allocation7 + $0x110] sm:$0xff]
    %v770 = vld [vmem:[#allocation7 + $0x118] sm:$0xff]
    %v771 = vld [vmem:[#allocation7 + $0x120] sm:$0xff]
    %v772 = vld [vmem:[#allocation7 + $0x128] sm:$0xff]
    %v773 = vld [vmem:[#allocation7 + $0x130] sm:$0xff]
    %v774 = vld [vmem:[#allocation7 + $0x138] sm:$0xff]
    %v775 = vld [vmem:[#allocation7 + $0x140] sm:$0xff]
    %v776 = vld [vmem:[#allocation7 + $0x148] sm:$0xff]
    %v777 = vld [vmem:[#allocation7 + $0x150] sm:$0xff]
    %v778 = vld [vmem:[#allocation7 + $0x158] sm:$0xff]
    %v779 = vld [vmem:[#allocation7 + $0x160] sm:$0xff]
    %v780 = vld [vmem:[#allocation7 + $0x168] sm:$0xff]
    %v781 = vld [vmem:[#allocation7 + $0x170] sm:$0xff]
    %v782 = vld [vmem:[#allocation7 + $0x178] sm:$0xff]
    %v783 = vld [vmem:[#allocation7 + $0x180] sm:$0xff]
    %v784 = vld [vmem:[#allocation7 + $0x188] sm:$0xff]
    %v785 = vld [vmem:[#allocation7 + $0x190] sm:$0xff]
    %v786 = vld [vmem:[#allocation7 + $0x198] sm:$0xff]
    %v787 = vld [vmem:[#allocation7 + $0x1a0] sm:$0xff]
    %v788 = vld [vmem:[#allocation7 + $0x1a8] sm:$0xff]
    %v789 = vld [vmem:[#allocation7 + $0x1b0] sm:$0xff]
    %v790 = vld [vmem:[#allocation7 + $0x1b8] sm:$0xff]
    %v791 = vld [vmem:[#allocation7 + $0x1c0] sm:$0xff]
    %v792 = vld [vmem:[#allocation7 + $0x1c8] sm:$0xff]
    %v793 = vld [vmem:[#allocation7 + $0x1d0] sm:$0xff]
    %v794 = vld [vmem:[#allocation7 + $0x1d8] sm:$0xff]
    %v795 = vld [vmem:[#allocation7 + $0x1e0] sm:$0xff]
    %v796 = vld [vmem:[#allocation7 + $0x1e8] sm:$0xff]
    %v797 = vld [vmem:[#allocation7 + $0x1f0] sm:$0xff]
    %v798 = vld [vmem:[#allocation7 + $0x1f8] sm:$0xff]
    %v799 = vld [vmem:[%s4] sm:$0x3]
    %v801 = vlaneseq
    %v802 = vshrl.u32 %v801, 7
    %v803 = vsub.s32 0, %v802
    %v804 = vrot.slane %v799, %v803
    %v805 = vlaneseq
    %v806 = vshrl.u32 %v805, 7
    %v807 = vsub.s32 1, %v806
    %v808 = vrot.slane %v799, %v807
    %811 = vmatprep.subr.mxu0 %v766
    %812 = vmatpush1.msra.mxu0 %v765
    %813 = vmatprep.subr.mxu0 %v764
    %814 = vmatpush1.msra.mxu0 %v763
    %815 = vmatprep.subr.mxu0 %v762
    %816 = vmatpush1.msra.mxu0 %v761
    %817 = vmatprep.subr.mxu0 %v760
    %818 = vmatpush1.msra.mxu0 %v759
    %819 = vmatprep.subr.mxu0 %v758
    %820 = vmatpush1.msra.mxu0 %v757
    %821 = vmatprep.subr.mxu0 %v756
    %822 = vmatpush1.msra.mxu0 %v755
    %823 = vmatprep.subr.mxu0 %v754
    %824 = vmatpush1.msra.mxu0 %v753
    %825 = vmatprep.subr.mxu0 %v752
    %826 = vmatpush1.msra.mxu0 %v751
    %827 = vmatprep.subr.mxu0 %v750
    %828 = vmatpush1.msra.mxu0 %v749
    %829 = vmatprep.subr.mxu0 %v748
    %830 = vmatpush1.msra.mxu0 %v747
    %831 = vmatprep.subr.mxu0 %v746
    %832 = vmatpush1.msra.mxu0 %v745
    %833 = vmatprep.subr.mxu0 %v744
    %834 = vmatpush1.msra.mxu0 %v743
    %835 = vmatprep.subr.mxu0 %v742
    %836 = vmatpush1.msra.mxu0 %v741
    %837 = vmatprep.subr.mxu0 %v740
    %838 = vmatpush1.msra.mxu0 %v739
    %839 = vmatprep.subr.mxu0 %v738
    %840 = vmatpush1.msra.mxu0 %v737
    %841 = vmatprep.subr.mxu0 %v736
    %842 = vmatpush1.msra.mxu0 %v735
    %843 = vmatprep.subr.mxu0 %v798
    %844 = vmatpush2.msra.mxu0 %v797
    %845 = vmatprep.subr.mxu0 %v796
    %846 = vmatpush2.msra.mxu0 %v795
    %847 = vmatprep.subr.mxu0 %v794
    %848 = vmatpush2.msra.mxu0 %v793
    %849 = vmatprep.subr.mxu0 %v792
    %850 = vmatpush2.msra.mxu0 %v791
    %851 = vmatprep.subr.mxu0 %v790
    %852 = vmatpush2.msra.mxu0 %v789
    %853 = vmatprep.subr.mxu0 %v788
    %854 = vmatpush2.msra.mxu0 %v787
    %855 = vmatprep.subr.mxu0 %v786
    %856 = vmatpush2.msra.mxu0 %v785
    %857 = vmatprep.subr.mxu0 %v784
    %858 = vmatpush2.msra.mxu0 %v783
    %859 = vmatprep.subr.mxu0 %v782
    %860 = vmatpush2.msra.mxu0 %v781
    %861 = vmatprep.subr.mxu0 %v780
    %862 = vmatpush2.msra.mxu0 %v779
    %863 = vmatprep.subr.mxu0 %v778
    %864 = vmatpush2.msra.mxu0 %v777
    %865 = vmatprep.subr.mxu0 %v776
    %866 = vmatpush2.msra.mxu0 %v775
    %867 = vmatprep.subr.mxu0 %v774
    %868 = vmatpush2.msra.mxu0 %v773
    %869 = vmatprep.subr.mxu0 %v772
    %870 = vmatpush2.msra.mxu0 %v771
    %871 = vmatprep.subr.mxu0 %v770
    %872 = vmatpush2.msra.mxu0 %v769
    %873 = vmatprep.subr.mxu0 %v768
    %874 = vmatpush2.msra.mxu0 %v767
    %875 = vmatprep.mubr.f32.mxu0 %v83
    %876 = vmatmul.mubr.f32.gmra.mxu0 %v82
    %v877 = vpop.f32.mrf.mxu0
    %v878 = vadd.f32 %v804, %v877
    %v879 = vpop.f32.mrf.mxu0
    %v880 = vadd.f32 %v808, %v879
    %881 = vmatprep.mubr.f32.mxu0 %v85
    %882 = vmatmul.mubr.f32.gmra.mxu0 %v84
    %v883 = vpop.f32.mrf.mxu0
    %v884 = vadd.f32 %v804, %v883
    %v885 = vpop.f32.mrf.mxu0
    %v886 = vadd.f32 %v808, %v885
    %887 = vmatprep.mubr.f32.mxu0 %v87
    %888 = vmatmul.mubr.f32.gmra.mxu0 %v86
    %v889 = vpop.f32.mrf.mxu0
    %v890 = vadd.f32 %v804, %v889
    %v891 = vpop.f32.mrf.mxu0
    %v892 = vadd.f32 %v808, %v891
    %893 = vmatprep.mubr.f32.mxu0 %v89
    %894 = vmatmul.mubr.f32.gmra.mxu0 %v88
    %v895 = vpop.f32.mrf.mxu0
    %v896 = vadd.f32 %v804, %v895
    %v897 = vpop.f32.mrf.mxu0
    %v898 = vadd.f32 %v808, %v897
    %899 = vmatprep.mubr.f32.mxu0 %v91
    %900 = vmatmul.mubr.f32.gmra.mxu0 %v90
    %v901 = vpop.f32.mrf.mxu0
    %v902 = vadd.f32 %v804, %v901
    %v903 = vpop.f32.mrf.mxu0
    %v904 = vadd.f32 %v808, %v903
    %905 = vmatprep.mubr.f32.mxu0 %v93
    %906 = vmatmul.mubr.f32.gmra.mxu0 %v92
    %v907 = vpop.f32.mrf.mxu0
    %v908 = vadd.f32 %v804, %v907
    %v909 = vpop.f32.mrf.mxu0
    %v910 = vadd.f32 %v808, %v909
    %911 = vmatprep.mubr.f32.mxu0 %v95
    %912 = vmatmul.mubr.f32.gmra.mxu0 %v94
    %v913 = vpop.f32.mrf.mxu0
    %v914 = vadd.f32 %v804, %v913
    %v915 = vpop.f32.mrf.mxu0
    %v916 = vadd.f32 %v808, %v915
    %917 = vmatprep.mubr.f32.mxu0 %v97
    %918 = vmatmul.mubr.f32.gmra.mxu0 %v96
    %v919 = vpop.f32.mrf.mxu0
    %v920 = vadd.f32 %v804, %v919
    %v921 = vpop.f32.mrf.mxu0
    %v922 = vadd.f32 %v808, %v921
    %923 = vmatprep.mubr.f32.mxu0 %v99
    %924 = vmatmul.mubr.f32.gmra.mxu0 %v98
    %v925 = vpop.f32.mrf.mxu0
    %v926 = vadd.f32 %v804, %v925
    %v927 = vpop.f32.mrf.mxu0
    %v928 = vadd.f32 %v808, %v927
    %929 = vmatprep.mubr.f32.mxu0 %v101
    %930 = vmatmul.mubr.f32.gmra.mxu0 %v100
    %v931 = vpop.f32.mrf.mxu0
    %v932 = vadd.f32 %v804, %v931
    %v933 = vpop.f32.mrf.mxu0
    %v934 = vadd.f32 %v808, %v933
    %935 = vmatprep.mubr.f32.mxu0 %v103
    %936 = vmatmul.mubr.f32.gmra.mxu0 %v102
    %v937 = vpop.f32.mrf.mxu0
    %v938 = vadd.f32 %v804, %v937
    %v939 = vpop.f32.mrf.mxu0
    %v940 = vadd.f32 %v808, %v939
    %941 = vmatprep.mubr.f32.mxu0 %v105
    %942 = vmatmul.mubr.f32.gmra.mxu0 %v104
    %v943 = vpop.f32.mrf.mxu0
    %v944 = vadd.f32 %v804, %v943
    %v945 = vpop.f32.mrf.mxu0
    %v946 = vadd.f32 %v808, %v945
    %947 = vmatprep.mubr.f32.mxu0 %v107
    %948 = vmatmul.mubr.f32.gmra.mxu0 %v106
    %v949 = vpop.f32.mrf.mxu0
    %v950 = vadd.f32 %v804, %v949
    %v951 = vpop.f32.mrf.mxu0
    %v952 = vadd.f32 %v808, %v951
    %953 = vmatprep.mubr.f32.mxu0 %v109
    %954 = vmatmul.mubr.f32.gmra.mxu0 %v108
    %v955 = vpop.f32.mrf.mxu0
    %v956 = vadd.f32 %v804, %v955
    %v957 = vpop.f32.mrf.mxu0
    %v958 = vadd.f32 %v808, %v957
    %959 = vmatprep.mubr.f32.mxu0 %v111
    %960 = vmatmul.mubr.f32.gmra.mxu0 %v110
    %v961 = vpop.f32.mrf.mxu0
    %v962 = vadd.f32 %v804, %v961
    %v963 = vpop.f32.mrf.mxu0
    %v964 = vadd.f32 %v808, %v963
    %965 = vmatprep.mubr.f32.mxu0 %v113
    %966 = vmatmul.mubr.f32.gmra.mxu0 %v112
    %v967 = vpop.f32.mrf.mxu0
    %v968 = vadd.f32 %v804, %v967
    %v969 = vpop.f32.mrf.mxu0
    %v970 = vadd.f32 %v808, %v969
    %971 = vmatprep.mubr.f32.mxu0 %v115
    %972 = vmatmul.mubr.f32.gmra.mxu0 %v114
    %v973 = vpop.f32.mrf.mxu0
    %v974 = vadd.f32 %v804, %v973
    %v975 = vpop.f32.mrf.mxu0
    %v976 = vadd.f32 %v808, %v975
    %977 = vmatprep.mubr.f32.mxu0 %v117
    %978 = vmatmul.mubr.f32.gmra.mxu0 %v116
    %v979 = vpop.f32.mrf.mxu0
    %v980 = vadd.f32 %v804, %v979
    %v981 = vpop.f32.mrf.mxu0
    %v982 = vadd.f32 %v808, %v981
    %983 = vmatprep.mubr.f32.mxu0 %v119
    %984 = vmatmul.mubr.f32.gmra.mxu0 %v118
    %v985 = vpop.f32.mrf.mxu0
    %v986 = vadd.f32 %v804, %v985
    %v987 = vpop.f32.mrf.mxu0
    %v988 = vadd.f32 %v808, %v987
    %989 = vmatprep.mubr.f32.mxu0 %v121
    %990 = vmatmul.mubr.f32.gmra.mxu0 %v120
    %v991 = vpop.f32.mrf.mxu0
    %v992 = vadd.f32 %v804, %v991
    %v993 = vpop.f32.mrf.mxu0
    %v994 = vadd.f32 %v808, %v993
    %995 = vmatprep.mubr.f32.mxu0 %v123
    %996 = vmatmul.mubr.f32.gmra.mxu0 %v122
    %v997 = vpop.f32.mrf.mxu0
    %v998 = vadd.f32 %v804, %v997
    %v999 = vpop.f32.mrf.mxu0
    %v1000 = vadd.f32 %v808, %v999
    %1001 = vmatprep.mubr.f32.mxu0 %v125
    %1002 = vmatmul.mubr.f32.gmra.mxu0 %v124
    %v1003 = vpop.f32.mrf.mxu0
    %v1004 = vadd.f32 %v804, %v1003
    %v1005 = vpop.f32.mrf.mxu0
    %v1006 = vadd.f32 %v808, %v1005
    %1007 = vmatprep.mubr.f32.mxu0 %v127
    %1008 = vmatmul.mubr.f32.gmra.mxu0 %v126
    %v1009 = vpop.f32.mrf.mxu0
    %v1010 = vadd.f32 %v804, %v1009
    %v1011 = vpop.f32.mrf.mxu0
    %v1012 = vadd.f32 %v808, %v1011
    %1013 = vmatprep.mubr.f32.mxu0 %v129
    %1014 = vmatmul.mubr.f32.gmra.mxu0 %v128
    %v1015 = vpop.f32.mrf.mxu0
    %v1016 = vadd.f32 %v804, %v1015
    %v1017 = vpop.f32.mrf.mxu0
    %v1018 = vadd.f32 %v808, %v1017
    %1019 = vmatprep.mubr.f32.mxu0 %v131
    %1020 = vmatmul.mubr.f32.gmra.mxu0 %v130
    %v1021 = vpop.f32.mrf.mxu0
    %v1022 = vadd.f32 %v804, %v1021
    %v1023 = vpop.f32.mrf.mxu0
    %v1024 = vadd.f32 %v808, %v1023
    %1025 = vmatprep.mubr.f32.mxu0 %v133
    %1026 = vmatmul.mubr.f32.gmra.mxu0 %v132
    %v1027 = vpop.f32.mrf.mxu0
    %v1028 = vadd.f32 %v804, %v1027
    %v1029 = vpop.f32.mrf.mxu0
    %v1030 = vadd.f32 %v808, %v1029
    %1031 = vmatprep.mubr.f32.mxu0 %v135
    %1032 = vmatmul.mubr.f32.gmra.mxu0 %v134
    %v1033 = vpop.f32.mrf.mxu0
    %v1034 = vadd.f32 %v804, %v1033
    %v1035 = vpop.f32.mrf.mxu0
    %v1036 = vadd.f32 %v808, %v1035
    %1037 = vmatprep.mubr.f32.mxu0 %v137
    %1038 = vmatmul.mubr.f32.gmra.mxu0 %v136
    %v1039 = vpop.f32.mrf.mxu0
    %v1040 = vadd.f32 %v804, %v1039
    %v1041 = vpop.f32.mrf.mxu0
    %v1042 = vadd.f32 %v808, %v1041
    %1043 = vmatprep.mubr.f32.mxu0 %v139
    %1044 = vmatmul.mubr.f32.gmra.mxu0 %v138
    %v1045 = vpop.f32.mrf.mxu0
    %v1046 = vadd.f32 %v804, %v1045
    %v1047 = vpop.f32.mrf.mxu0
    %v1048 = vadd.f32 %v808, %v1047
    %1049 = vmatprep.mubr.f32.mxu0 %v141
    %1050 = vmatmul.mubr.f32.gmra.mxu0 %v140
    %v1051 = vpop.f32.mrf.mxu0
    %v1052 = vadd.f32 %v804, %v1051
    %v1053 = vpop.f32.mrf.mxu0
    %v1054 = vadd.f32 %v808, %v1053
    %1055 = vmatprep.mubr.f32.mxu0 %v143
    %1056 = vmatmul.mubr.f32.gmra.mxu0 %v142
    %v1057 = vpop.f32.mrf.mxu0
    %v1058 = vadd.f32 %v804, %v1057
    %v1059 = vpop.f32.mrf.mxu0
    %v1060 = vadd.f32 %v808, %v1059
    %1061 = vmatprep.mubr.f32.mxu0 %v145
    %1062 = vmatmul.mubr.f32.gmra.mxu0 %v144
    %v1063 = vpop.f32.mrf.mxu0
    %v1064 = vadd.f32 %v804, %v1063
    %v1065 = vpop.f32.mrf.mxu0
    %v1066 = vadd.f32 %v808, %v1065
    %1067 = vmatprep.mubr.f32.mxu0 %v147
    %1068 = vmatmul.mubr.f32.gmra.mxu0 %v146
    %v1069 = vpop.f32.mrf.mxu0
    %v1070 = vadd.f32 %v804, %v1069
    %v1071 = vpop.f32.mrf.mxu0
    %v1072 = vadd.f32 %v808, %v1071
    %1073 = vmatprep.mubr.f32.mxu0 %v149
    %1074 = vmatmul.mubr.f32.gmra.mxu0 %v148
    %v1075 = vpop.f32.mrf.mxu0
    %v1076 = vadd.f32 %v804, %v1075
    %v1077 = vpop.f32.mrf.mxu0
    %v1078 = vadd.f32 %v808, %v1077
    %1079 = vmatprep.mubr.f32.mxu0 %v151
    %1080 = vmatmul.mubr.f32.gmra.mxu0 %v150
    %v1081 = vpop.f32.mrf.mxu0
    %v1082 = vadd.f32 %v804, %v1081
    %v1083 = vpop.f32.mrf.mxu0
    %v1084 = vadd.f32 %v808, %v1083
    %1085 = vmatprep.mubr.f32.mxu0 %v153
    %1086 = vmatmul.mubr.f32.gmra.mxu0 %v152
    %v1087 = vpop.f32.mrf.mxu0
    %v1088 = vadd.f32 %v804, %v1087
    %v1089 = vpop.f32.mrf.mxu0
    %v1090 = vadd.f32 %v808, %v1089
    %1091 = vmatprep.mubr.f32.mxu0 %v155
    %1092 = vmatmul.mubr.f32.gmra.mxu0 %v154
    %v1093 = vpop.f32.mrf.mxu0
    %v1094 = vadd.f32 %v804, %v1093
    %v1095 = vpop.f32.mrf.mxu0
    %v1096 = vadd.f32 %v808, %v1095
    %1097 = vmatprep.mubr.f32.mxu0 %v157
    %1098 = vmatmul.mubr.f32.gmra.mxu0 %v156
    %v1099 = vpop.f32.mrf.mxu0
    %v1100 = vadd.f32 %v804, %v1099
    %v1101 = vpop.f32.mrf.mxu0
    %v1102 = vadd.f32 %v808, %v1101
    %1103 = vmatprep.mubr.f32.mxu0 %v159
    %1104 = vmatmul.mubr.f32.gmra.mxu0 %v158
    %v1105 = vpop.f32.mrf.mxu0
    %v1106 = vadd.f32 %v804, %v1105
    %v1107 = vpop.f32.mrf.mxu0
    %v1108 = vadd.f32 %v808, %v1107
    %1109 = vmatprep.mubr.f32.mxu0 %v161
    %1110 = vmatmul.mubr.f32.gmra.mxu0 %v160
    %v1111 = vpop.f32.mrf.mxu0
    %v1112 = vadd.f32 %v804, %v1111
    %v1113 = vpop.f32.mrf.mxu0
    %v1114 = vadd.f32 %v808, %v1113
    %1115 = vmatprep.mubr.f32.mxu0 %v163
    %1116 = vmatmul.mubr.f32.gmra.mxu0 %v162
    %v1117 = vpop.f32.mrf.mxu0
    %v1118 = vadd.f32 %v804, %v1117
    %v1119 = vpop.f32.mrf.mxu0
    %v1120 = vadd.f32 %v808, %v1119
    %1121 = vmatprep.mubr.f32.mxu0 %v165
    %1122 = vmatmul.mubr.f32.gmra.mxu0 %v164
    %v1123 = vpop.f32.mrf.mxu0
    %v1124 = vadd.f32 %v804, %v1123
    %v1125 = vpop.f32.mrf.mxu0
    %v1126 = vadd.f32 %v808, %v1125
    %1127 = vmatprep.mubr.f32.mxu0 %v167
    %1128 = vmatmul.mubr.f32.gmra.mxu0 %v166
    %v1129 = vpop.f32.mrf.mxu0
    %v1130 = vadd.f32 %v804, %v1129
    %v1131 = vpop.f32.mrf.mxu0
    %v1132 = vadd.f32 %v808, %v1131
    %1133 = vmatprep.mubr.f32.mxu0 %v169
    %1134 = vmatmul.mubr.f32.gmra.mxu0 %v168
    %v1135 = vpop.f32.mrf.mxu0
    %v1136 = vadd.f32 %v804, %v1135
    %v1137 = vpop.f32.mrf.mxu0
    %v1138 = vadd.f32 %v808, %v1137
    %1139 = vmatprep.mubr.f32.mxu0 %v171
    %1140 = vmatmul.mubr.f32.gmra.mxu0 %v170
    %v1141 = vpop.f32.mrf.mxu0
    %v1142 = vadd.f32 %v804, %v1141
    %v1143 = vpop.f32.mrf.mxu0
    %v1144 = vadd.f32 %v808, %v1143
    %1145 = vmatprep.mubr.f32.mxu0 %v173
    %1146 = vmatmul.mubr.f32.gmra.mxu0 %v172
    %v1147 = vpop.f32.mrf.mxu0
    %v1148 = vadd.f32 %v804, %v1147
    %v1149 = vpop.f32.mrf.mxu0
    %v1150 = vadd.f32 %v808, %v1149
    %1151 = vmatprep.mubr.f32.mxu0 %v175
    %1152 = vmatmul.mubr.f32.gmra.mxu0 %v174
    %v1153 = vpop.f32.mrf.mxu0
    %v1154 = vadd.f32 %v804, %v1153
    %v1155 = vpop.f32.mrf.mxu0
    %v1156 = vadd.f32 %v808, %v1155
    %1157 = vmatprep.mubr.f32.mxu0 %v177
    %1158 = vmatmul.mubr.f32.gmra.mxu0 %v176
    %v1159 = vpop.f32.mrf.mxu0
    %v1160 = vadd.f32 %v804, %v1159
    %v1161 = vpop.f32.mrf.mxu0
    %v1162 = vadd.f32 %v808, %v1161
    %1163 = vmatprep.mubr.f32.mxu0 %v179
    %1164 = vmatmul.mubr.f32.gmra.mxu0 %v178
    %v1165 = vpop.f32.mrf.mxu0
    %v1166 = vadd.f32 %v804, %v1165
    %v1167 = vpop.f32.mrf.mxu0
    %v1168 = vadd.f32 %v808, %v1167
    %1169 = vmatprep.mubr.f32.mxu0 %v181
    %1170 = vmatmul.mubr.f32.gmra.mxu0 %v180
    %v1171 = vpop.f32.mrf.mxu0
    %v1172 = vadd.f32 %v804, %v1171
    %v1173 = vpop.f32.mrf.mxu0
    %v1174 = vadd.f32 %v808, %v1173
    %1175 = vmatprep.mubr.f32.mxu0 %v183
    %1176 = vmatmul.mubr.f32.gmra.mxu0 %v182
    %v1177 = vpop.f32.mrf.mxu0
    %v1178 = vadd.f32 %v804, %v1177
    %v1179 = vpop.f32.mrf.mxu0
    %v1180 = vadd.f32 %v808, %v1179
    %1181 = vmatprep.mubr.f32.mxu0 %v185
    %1182 = vmatmul.mubr.f32.gmra.mxu0 %v184
    %v1183 = vpop.f32.mrf.mxu0
    %v1184 = vadd.f32 %v804, %v1183
    %v1185 = vpop.f32.mrf.mxu0
    %v1186 = vadd.f32 %v808, %v1185
    %1187 = vmatprep.mubr.f32.mxu0 %v187
    %1188 = vmatmul.mubr.f32.gmra.mxu0 %v186
    %v1189 = vpop.f32.mrf.mxu0
    %v1190 = vadd.f32 %v804, %v1189
    %v1191 = vpop.f32.mrf.mxu0
    %v1192 = vadd.f32 %v808, %v1191
    %1193 = vmatprep.mubr.f32.mxu0 %v189
    %1194 = vmatmul.mubr.f32.gmra.mxu0 %v188
    %v1195 = vpop.f32.mrf.mxu0
    %v1196 = vadd.f32 %v804, %v1195
    %v1197 = vpop.f32.mrf.mxu0
    %v1198 = vadd.f32 %v808, %v1197
    %1199 = vmatprep.mubr.f32.mxu0 %v191
    %1200 = vmatmul.mubr.f32.gmra.mxu0 %v190
    %v1201 = vpop.f32.mrf.mxu0
    %v1202 = vadd.f32 %v804, %v1201
    %v1203 = vpop.f32.mrf.mxu0
    %v1204 = vadd.f32 %v808, %v1203
    %1205 = vmatprep.mubr.f32.mxu0 %v193
    %1206 = vmatmul.mubr.f32.gmra.mxu0 %v192
    %v1207 = vpop.f32.mrf.mxu0
    %v1208 = vadd.f32 %v804, %v1207
    %v1209 = vpop.f32.mrf.mxu0
    %v1210 = vadd.f32 %v808, %v1209
    %1211 = vmatprep.mubr.f32.mxu0 %v195
    %1212 = vmatmul.mubr.f32.gmra.mxu0 %v194
    %v1213 = vpop.f32.mrf.mxu0
    %v1214 = vadd.f32 %v804, %v1213
    %v1215 = vpop.f32.mrf.mxu0
    %v1216 = vadd.f32 %v808, %v1215
    %1217 = vmatprep.mubr.f32.mxu0 %v197
    %1218 = vmatmul.mubr.f32.gmra.mxu0 %v196
    %v1219 = vpop.f32.mrf.mxu0
    %v1220 = vadd.f32 %v804, %v1219
    %v1221 = vpop.f32.mrf.mxu0
    %v1222 = vadd.f32 %v808, %v1221
    %1223 = vmatprep.mubr.f32.mxu0 %v199
    %1224 = vmatmul.mubr.f32.gmra.mxu0 %v198
    %v1225 = vpop.f32.mrf.mxu0
    %v1226 = vadd.f32 %v804, %v1225
    %v1227 = vpop.f32.mrf.mxu0
    %v1228 = vadd.f32 %v808, %v1227
    %1229 = vmatprep.mubr.f32.mxu0 %v201
    %1230 = vmatmul.mubr.f32.gmra.mxu0 %v200
    %v1231 = vpop.f32.mrf.mxu0
    %v1232 = vadd.f32 %v804, %v1231
    %v1233 = vpop.f32.mrf.mxu0
    %v1234 = vadd.f32 %v808, %v1233
    %1235 = vmatprep.mubr.f32.mxu0 %v203
    %1236 = vmatmul.mubr.f32.gmra.mxu0 %v202
    %v1237 = vpop.f32.mrf.mxu0
    %v1238 = vadd.f32 %v804, %v1237
    %v1239 = vpop.f32.mrf.mxu0
    %v1240 = vadd.f32 %v808, %v1239
    %1241 = vmatprep.mubr.f32.mxu0 %v205
    %1242 = vmatmul.mubr.f32.gmra.mxu0 %v204
    %v1243 = vpop.f32.mrf.mxu0
    %v1244 = vadd.f32 %v804, %v1243
    %v1245 = vpop.f32.mrf.mxu0
    %v1246 = vadd.f32 %v808, %v1245
    %1247 = vmatprep.mubr.f32.mxu0 %v207
    %1248 = vmatmul.mubr.f32.gmra.mxu0 %v206
    %v1249 = vpop.f32.mrf.mxu0
    %v1250 = vadd.f32 %v804, %v1249
    %v1251 = vpop.f32.mrf.mxu0
    %v1252 = vadd.f32 %v808, %v1251
    %1253 = vmatprep.mubr.f32.mxu0 %v209
    %1254 = vmatmul.mubr.f32.gmra.mxu0 %v208
    %v1255 = vpop.f32.mrf.mxu0
    %v1256 = vadd.f32 %v804, %v1255
    %v1257 = vpop.f32.mrf.mxu0
    %v1258 = vadd.f32 %v808, %v1257
    %1259 = vdwg.mxu0
    %v1260 = vsub.f32 0.0, %v878
    %v1261 = vsub.f32 0.0, %v880
    %v1262 = vsub.f32 0.0, %v884
    %v1263 = vsub.f32 0.0, %v886
    %v1264 = vsub.f32 0.0, %v890
    %v1265 = vsub.f32 0.0, %v892
    %v1266 = vsub.f32 0.0, %v896
    %v1267 = vsub.f32 0.0, %v898
    %v1268 = vsub.f32 0.0, %v902
    %v1269 = vsub.f32 0.0, %v904
    %v1270 = vsub.f32 0.0, %v908
    %v1271 = vsub.f32 0.0, %v910
    %v1272 = vsub.f32 0.0, %v914
    %v1273 = vsub.f32 0.0, %v916
    %v1274 = vsub.f32 0.0, %v920
    %v1275 = vsub.f32 0.0, %v922
    %v1276 = vsub.f32 0.0, %v926
    %v1277 = vsub.f32 0.0, %v928
    %v1278 = vsub.f32 0.0, %v932
    %v1279 = vsub.f32 0.0, %v934
    %v1280 = vsub.f32 0.0, %v938
    %v1281 = vsub.f32 0.0, %v940
    %v1282 = vsub.f32 0.0, %v944
    %v1283 = vsub.f32 0.0, %v946
    %v1284 = vsub.f32 0.0, %v950
    %v1285 = vsub.f32 0.0, %v952
    %v1286 = vsub.f32 0.0, %v956
    %v1287 = vsub.f32 0.0, %v958
    %v1288 = vsub.f32 0.0, %v962
    %v1289 = vsub.f32 0.0, %v964
    %v1290 = vsub.f32 0.0, %v968
    %v1291 = vsub.f32 0.0, %v970
    %v1292 = vsub.f32 0.0, %v974
    %v1293 = vsub.f32 0.0, %v976
    %v1294 = vsub.f32 0.0, %v980
    %v1295 = vsub.f32 0.0, %v982
    %v1296 = vsub.f32 0.0, %v986
    %v1297 = vsub.f32 0.0, %v988
    %v1298 = vsub.f32 0.0, %v992
    %v1299 = vsub.f32 0.0, %v994
    %v1300 = vsub.f32 0.0, %v998
    %v1301 = vsub.f32 0.0, %v1000
    %v1302 = vsub.f32 0.0, %v1004
    %v1303 = vsub.f32 0.0, %v1006
    %v1304 = vsub.f32 0.0, %v1010
    %v1305 = vsub.f32 0.0, %v1012
    %v1306 = vsub.f32 0.0, %v1016
    %v1307 = vsub.f32 0.0, %v1018
    %v1308 = vsub.f32 0.0, %v1022
    %v1309 = vsub.f32 0.0, %v1024
    %v1310 = vsub.f32 0.0, %v1028
    %v1311 = vsub.f32 0.0, %v1030
    %v1312 = vsub.f32 0.0, %v1034
    %v1313 = vsub.f32 0.0, %v1036
    %v1314 = vsub.f32 0.0, %v1040
    %v1315 = vsub.f32 0.0, %v1042
    %v1316 = vsub.f32 0.0, %v1046
    %v1317 = vsub.f32 0.0, %v1048
    %v1318 = vsub.f32 0.0, %v1052
    %v1319 = vsub.f32 0.0, %v1054
    %v1320 = vsub.f32 0.0, %v1058
    %v1321 = vsub.f32 0.0, %v1060
    %v1322 = vsub.f32 0.0, %v1064
    %v1323 = vsub.f32 0.0, %v1066
    %v1324 = vsub.f32 0.0, %v1070
    %v1325 = vsub.f32 0.0, %v1072
    %v1326 = vsub.f32 0.0, %v1076
    %v1327 = vsub.f32 0.0, %v1078
    %v1328 = vsub.f32 0.0, %v1082
    %v1329 = vsub.f32 0.0, %v1084
    %v1330 = vsub.f32 0.0, %v1088
    %v1331 = vsub.f32 0.0, %v1090
    %v1332 = vsub.f32 0.0, %v1094
    %v1333 = vsub.f32 0.0, %v1096
    %v1334 = vsub.f32 0.0, %v1100
    %v1335 = vsub.f32 0.0, %v1102
    %v1336 = vsub.f32 0.0, %v1106
    %v1337 = vsub.f32 0.0, %v1108
    %v1338 = vsub.f32 0.0, %v1112
    %v1339 = vsub.f32 0.0, %v1114
    %v1340 = vsub.f32 0.0, %v1118
    %v1341 = vsub.f32 0.0, %v1120
    %v1342 = vsub.f32 0.0, %v1124
    %v1343 = vsub.f32 0.0, %v1126
    %v1344 = vsub.f32 0.0, %v1130
    %v1345 = vsub.f32 0.0, %v1132
    %v1346 = vsub.f32 0.0, %v1136
    %v1347 = vsub.f32 0.0, %v1138
    %v1348 = vsub.f32 0.0, %v1142
    %v1349 = vsub.f32 0.0, %v1144
    %v1350 = vsub.f32 0.0, %v1148
    %v1351 = vsub.f32 0.0, %v1150
    %v1352 = vsub.f32 0.0, %v1154
    %v1353 = vsub.f32 0.0, %v1156
    %v1354 = vsub.f32 0.0, %v1160
    %v1355 = vsub.f32 0.0, %v1162
    %v1356 = vsub.f32 0.0, %v1166
    %v1357 = vsub.f32 0.0, %v1168
    %v1358 = vsub.f32 0.0, %v1172
    %v1359 = vsub.f32 0.0, %v1174
    %v1360 = vsub.f32 0.0, %v1178
    %v1361 = vsub.f32 0.0, %v1180
    %v1362 = vsub.f32 0.0, %v1184
    %v1363 = vsub.f32 0.0, %v1186
    %v1364 = vsub.f32 0.0, %v1190
    %v1365 = vsub.f32 0.0, %v1192
    %v1366 = vsub.f32 0.0, %v1196
    %v1367 = vsub.f32 0.0, %v1198
    %v1368 = vsub.f32 0.0, %v1202
    %v1369 = vsub.f32 0.0, %v1204
    %v1370 = vsub.f32 0.0, %v1208
    %v1371 = vsub.f32 0.0, %v1210
    %v1372 = vsub.f32 0.0, %v1214
    %v1373 = vsub.f32 0.0, %v1216
    %v1374 = vsub.f32 0.0, %v1220
    %v1375 = vsub.f32 0.0, %v1222
    %v1376 = vsub.f32 0.0, %v1226
    %v1377 = vsub.f32 0.0, %v1228
    %v1378 = vsub.f32 0.0, %v1232
    %v1379 = vsub.f32 0.0, %v1234
    %v1380 = vsub.f32 0.0, %v1238
    %v1381 = vsub.f32 0.0, %v1240
    %v1382 = vsub.f32 0.0, %v1244
    %v1383 = vsub.f32 0.0, %v1246
    %v1384 = vsub.f32 0.0, %v1250
    %v1385 = vsub.f32 0.0, %v1252
    %v1386 = vsub.f32 0.0, %v1256
    %v1387 = vsub.f32 0.0, %v1258
    %v1388 = vmul.f32 %v1260, 1.442695
    %v1389 = vpow.pop %v1388
    %v1390 = vmul.f32 %v1261, 1.442695
    %v1391 = vpow.pop %v1390
    %v1392 = vmul.f32 %v1262, 1.442695
    %v1393 = vpow.pop %v1392
    %v1394 = vmul.f32 %v1263, 1.442695
    %v1395 = vpow.pop %v1394
    %v1396 = vmul.f32 %v1264, 1.442695
    %v1397 = vpow.pop %v1396
    %v1398 = vmul.f32 %v1265, 1.442695
    %v1399 = vpow.pop %v1398
    %v1400 = vmul.f32 %v1266, 1.442695
    %v1401 = vpow.pop %v1400
    %v1402 = vmul.f32 %v1267, 1.442695
    %v1403 = vpow.pop %v1402
    %v1404 = vmul.f32 %v1268, 1.442695
    %v1405 = vpow.pop %v1404
    %v1406 = vmul.f32 %v1269, 1.442695
    %v1407 = vpow.pop %v1406
    %v1408 = vmul.f32 %v1270, 1.442695
    %v1409 = vpow.pop %v1408
    %v1410 = vmul.f32 %v1271, 1.442695
    %v1411 = vpow.pop %v1410
    %v1412 = vmul.f32 %v1272, 1.442695
    %v1413 = vpow.pop %v1412
    %v1414 = vmul.f32 %v1273, 1.442695
    %v1415 = vpow.pop %v1414
    %v1416 = vmul.f32 %v1274, 1.442695
    %v1417 = vpow.pop %v1416
    %v1418 = vmul.f32 %v1275, 1.442695
    %v1419 = vpow.pop %v1418
    %v1420 = vmul.f32 %v1276, 1.442695
    %v1421 = vpow.pop %v1420
    %v1422 = vmul.f32 %v1277, 1.442695
    %v1423 = vpow.pop %v1422
    %v1424 = vmul.f32 %v1278, 1.442695
    %v1425 = vpow.pop %v1424
    %v1426 = vmul.f32 %v1279, 1.442695
    %v1427 = vpow.pop %v1426
    %v1428 = vmul.f32 %v1280, 1.442695
    %v1429 = vpow.pop %v1428
    %v1430 = vmul.f32 %v1281, 1.442695
    %v1431 = vpow.pop %v1430
    %v1432 = vmul.f32 %v1282, 1.442695
    %v1433 = vpow.pop %v1432
    %v1434 = vmul.f32 %v1283, 1.442695
    %v1435 = vpow.pop %v1434
    %v1436 = vmul.f32 %v1284, 1.442695
    %v1437 = vpow.pop %v1436
    %v1438 = vmul.f32 %v1285, 1.442695
    %v1439 = vpow.pop %v1438
    %v1440 = vmul.f32 %v1286, 1.442695
    %v1441 = vpow.pop %v1440
    %v1442 = vmul.f32 %v1287, 1.442695
    %v1443 = vpow.pop %v1442
    %v1444 = vmul.f32 %v1288, 1.442695
    %v1445 = vpow.pop %v1444
    %v1446 = vmul.f32 %v1289, 1.442695
    %v1447 = vpow.pop %v1446
    %v1448 = vmul.f32 %v1290, 1.442695
    %v1449 = vpow.pop %v1448
    %v1450 = vmul.f32 %v1291, 1.442695
    %v1451 = vpow.pop %v1450
    %v1452 = vmul.f32 %v1292, 1.442695
    %v1453 = vpow.pop %v1452
    %v1454 = vmul.f32 %v1293, 1.442695
    %v1455 = vpow.pop %v1454
    %v1456 = vmul.f32 %v1294, 1.442695
    %v1457 = vpow.pop %v1456
    %v1458 = vmul.f32 %v1295, 1.442695
    %v1459 = vpow.pop %v1458
    %v1460 = vmul.f32 %v1296, 1.442695
    %v1461 = vpow.pop %v1460
    %v1462 = vmul.f32 %v1297, 1.442695
    %v1463 = vpow.pop %v1462
    %v1464 = vmul.f32 %v1298, 1.442695
    %v1465 = vpow.pop %v1464
    %v1466 = vmul.f32 %v1299, 1.442695
    %v1467 = vpow.pop %v1466
    %v1468 = vmul.f32 %v1300, 1.442695
    %v1469 = vpow.pop %v1468
    %v1470 = vmul.f32 %v1301, 1.442695
    %v1471 = vpow.pop %v1470
    %v1472 = vmul.f32 %v1302, 1.442695
    %v1473 = vpow.pop %v1472
    %v1474 = vmul.f32 %v1303, 1.442695
    %v1475 = vpow.pop %v1474
    %v1476 = vmul.f32 %v1304, 1.442695
    %v1477 = vpow.pop %v1476
    %v1478 = vmul.f32 %v1305, 1.442695
    %v1479 = vpow.pop %v1478
    %v1480 = vmul.f32 %v1306, 1.442695
    %v1481 = vpow.pop %v1480
    %v1482 = vmul.f32 %v1307, 1.442695
    %v1483 = vpow.pop %v1482
    %v1484 = vmul.f32 %v1308, 1.442695
    %v1485 = vpow.pop %v1484
    %v1486 = vmul.f32 %v1309, 1.442695
    %v1487 = vpow.pop %v1486
    %v1488 = vmul.f32 %v1310, 1.442695
    %v1489 = vpow.pop %v1488
    %v1490 = vmul.f32 %v1311, 1.442695
    %v1491 = vpow.pop %v1490
    %v1492 = vmul.f32 %v1312, 1.442695
    %v1493 = vpow.pop %v1492
    %v1494 = vmul.f32 %v1313, 1.442695
    %v1495 = vpow.pop %v1494
    %v1496 = vmul.f32 %v1314, 1.442695
    %v1497 = vpow.pop %v1496
    %v1498 = vmul.f32 %v1315, 1.442695
    %v1499 = vpow.pop %v1498
    %v1500 = vmul.f32 %v1316, 1.442695
    %v1501 = vpow.pop %v1500
    %v1502 = vmul.f32 %v1317, 1.442695
    %v1503 = vpow.pop %v1502
    %v1504 = vmul.f32 %v1318, 1.442695
    %v1505 = vpow.pop %v1504
    %v1506 = vmul.f32 %v1319, 1.442695
    %v1507 = vpow.pop %v1506
    %v1508 = vmul.f32 %v1320, 1.442695
    %v1509 = vpow.pop %v1508
    %v1510 = vmul.f32 %v1321, 1.442695
    %v1511 = vpow.pop %v1510
    %v1512 = vmul.f32 %v1322, 1.442695
    %v1513 = vpow.pop %v1512
    %v1514 = vmul.f32 %v1323, 1.442695
    %v1515 = vpow.pop %v1514
    %v1516 = vmul.f32 %v1324, 1.442695
    %v1517 = vpow.pop %v1516
    %v1518 = vmul.f32 %v1325, 1.442695
    %v1519 = vpow.pop %v1518
    %v1520 = vmul.f32 %v1326, 1.442695
    %v1521 = vpow.pop %v1520
    %v1522 = vmul.f32 %v1327, 1.442695
    %v1523 = vpow.pop %v1522
    %v1524 = vmul.f32 %v1328, 1.442695
    %v1525 = vpow.pop %v1524
    %v1526 = vmul.f32 %v1329, 1.442695
    %v1527 = vpow.pop %v1526
    %v1528 = vmul.f32 %v1330, 1.442695
    %v1529 = vpow.pop %v1528
    %v1530 = vmul.f32 %v1331, 1.442695
    %v1531 = vpow.pop %v1530
    %v1532 = vmul.f32 %v1332, 1.442695
    %v1533 = vpow.pop %v1532
    %v1534 = vmul.f32 %v1333, 1.442695
    %v1535 = vpow.pop %v1534
    %v1536 = vmul.f32 %v1334, 1.442695
    %v1537 = vpow.pop %v1536
    %v1538 = vmul.f32 %v1335, 1.442695
    %v1539 = vpow.pop %v1538
    %v1540 = vmul.f32 %v1336, 1.442695
    %v1541 = vpow.pop %v1540
    %v1542 = vmul.f32 %v1337, 1.442695
    %v1543 = vpow.pop %v1542
    %v1544 = vmul.f32 %v1338, 1.442695
    %v1545 = vpow.pop %v1544
    %v1546 = vmul.f32 %v1339, 1.442695
    %v1547 = vpow.pop %v1546
    %v1548 = vmul.f32 %v1340, 1.442695
    %v1549 = vpow.pop %v1548
    %v1550 = vmul.f32 %v1341, 1.442695
    %v1551 = vpow.pop %v1550
    %v1552 = vmul.f32 %v1342, 1.442695
    %v1553 = vpow.pop %v1552
    %v1554 = vmul.f32 %v1343, 1.442695
    %v1555 = vpow.pop %v1554
    %v1556 = vmul.f32 %v1344, 1.442695
    %v1557 = vpow.pop %v1556
    %v1558 = vmul.f32 %v1345, 1.442695
    %v1559 = vpow.pop %v1558
    %v1560 = vmul.f32 %v1346, 1.442695
    %v1561 = vpow.pop %v1560
    %v1562 = vmul.f32 %v1347, 1.442695
    %v1563 = vpow.pop %v1562
    %v1564 = vmul.f32 %v1348, 1.442695
    %v1565 = vpow.pop %v1564
    %v1566 = vmul.f32 %v1349, 1.442695
    %v1567 = vpow.pop %v1566
    %v1568 = vmul.f32 %v1350, 1.442695
    %v1569 = vpow.pop %v1568
    %v1570 = vmul.f32 %v1351, 1.442695
    %v1571 = vpow.pop %v1570
    %v1572 = vmul.f32 %v1352, 1.442695
    %v1573 = vpow.pop %v1572
    %v1574 = vmul.f32 %v1353, 1.442695
    %v1575 = vpow.pop %v1574
    %v1576 = vmul.f32 %v1354, 1.442695
    %v1577 = vpow.pop %v1576
    %v1578 = vmul.f32 %v1355, 1.442695
    %v1579 = vpow.pop %v1578
    %v1580 = vmul.f32 %v1356, 1.442695
    %v1581 = vpow.pop %v1580
    %v1582 = vmul.f32 %v1357, 1.442695
    %v1583 = vpow.pop %v1582
    %v1584 = vmul.f32 %v1358, 1.442695
    %v1585 = vpow.pop %v1584
    %v1586 = vmul.f32 %v1359, 1.442695
    %v1587 = vpow.pop %v1586
    %v1588 = vmul.f32 %v1360, 1.442695
    %v1589 = vpow.pop %v1588
    %v1590 = vmul.f32 %v1361, 1.442695
    %v1591 = vpow.pop %v1590
    %v1592 = vmul.f32 %v1362, 1.442695
    %v1593 = vpow.pop %v1592
    %v1594 = vmul.f32 %v1363, 1.442695
    %v1595 = vpow.pop %v1594
    %v1596 = vmul.f32 %v1364, 1.442695
    %v1597 = vpow.pop %v1596
    %v1598 = vmul.f32 %v1365, 1.442695
    %v1599 = vpow.pop %v1598
    %v1600 = vmul.f32 %v1366, 1.442695
    %v1601 = vpow.pop %v1600
    %v1602 = vmul.f32 %v1367, 1.442695
    %v1603 = vpow.pop %v1602
    %v1604 = vmul.f32 %v1368, 1.442695
    %v1605 = vpow.pop %v1604
    %v1606 = vmul.f32 %v1369, 1.442695
    %v1607 = vpow.pop %v1606
    %v1608 = vmul.f32 %v1370, 1.442695
    %v1609 = vpow.pop %v1608
    %v1610 = vmul.f32 %v1371, 1.442695
    %v1611 = vpow.pop %v1610
    %v1612 = vmul.f32 %v1372, 1.442695
    %v1613 = vpow.pop %v1612
    %v1614 = vmul.f32 %v1373, 1.442695
    %v1615 = vpow.pop %v1614
    %v1616 = vmul.f32 %v1374, 1.442695
    %v1617 = vpow.pop %v1616
    %v1618 = vmul.f32 %v1375, 1.442695
    %v1619 = vpow.pop %v1618
    %v1620 = vmul.f32 %v1376, 1.442695
    %v1621 = vpow.pop %v1620
    %v1622 = vmul.f32 %v1377, 1.442695
    %v1623 = vpow.pop %v1622
    %v1624 = vmul.f32 %v1378, 1.442695
    %v1625 = vpow.pop %v1624
    %v1626 = vmul.f32 %v1379, 1.442695
    %v1627 = vpow.pop %v1626
    %v1628 = vmul.f32 %v1380, 1.442695
    %v1629 = vpow.pop %v1628
    %v1630 = vmul.f32 %v1381, 1.442695
    %v1631 = vpow.pop %v1630
    %v1632 = vmul.f32 %v1382, 1.442695
    %v1633 = vpow.pop %v1632
    %v1634 = vmul.f32 %v1383, 1.442695
    %v1635 = vpow.pop %v1634
    %v1636 = vmul.f32 %v1384, 1.442695
    %v1637 = vpow.pop %v1636
    %v1638 = vmul.f32 %v1385, 1.442695
    %v1639 = vpow.pop %v1638
    %v1640 = vmul.f32 %v1386, 1.442695
    %v1641 = vpow.pop %v1640
    %v1642 = vmul.f32 %v1387, 1.442695
    %v1643 = vpow.pop %v1642
    %v1644 = vadd.f32 %v1389, 1.0
    %v1645 = vadd.f32 %v1391, 1.0
    %v1646 = vadd.f32 %v1393, 1.0
    %v1647 = vadd.f32 %v1395, 1.0
    %v1648 = vadd.f32 %v1397, 1.0
    %v1649 = vadd.f32 %v1399, 1.0
    %v1650 = vadd.f32 %v1401, 1.0
    %v1651 = vadd.f32 %v1403, 1.0
    %v1652 = vadd.f32 %v1405, 1.0
    %v1653 = vadd.f32 %v1407, 1.0
    %v1654 = vadd.f32 %v1409, 1.0
    %v1655 = vadd.f32 %v1411, 1.0
    %v1656 = vadd.f32 %v1413, 1.0
    %v1657 = vadd.f32 %v1415, 1.0
    %v1658 = vadd.f32 %v1417, 1.0
    %v1659 = vadd.f32 %v1419, 1.0
    %v1660 = vadd.f32 %v1421, 1.0
    %v1661 = vadd.f32 %v1423, 1.0
    %v1662 = vadd.f32 %v1425, 1.0
    %v1663 = vadd.f32 %v1427, 1.0
    %v1664 = vadd.f32 %v1429, 1.0
    %v1665 = vadd.f32 %v1431, 1.0
    %v1666 = vadd.f32 %v1433, 1.0
    %v1667 = vadd.f32 %v1435, 1.0
    %v1668 = vadd.f32 %v1437, 1.0
    %v1669 = vadd.f32 %v1439, 1.0
    %v1670 = vadd.f32 %v1441, 1.0
    %v1671 = vadd.f32 %v1443, 1.0
    %v1672 = vadd.f32 %v1445, 1.0
    %v1673 = vadd.f32 %v1447, 1.0
    %v1674 = vadd.f32 %v1449, 1.0
    %v1675 = vadd.f32 %v1451, 1.0
    %v1676 = vadd.f32 %v1453, 1.0
    %v1677 = vadd.f32 %v1455, 1.0
    %v1678 = vadd.f32 %v1457, 1.0
    %v1679 = vadd.f32 %v1459, 1.0
    %v1680 = vadd.f32 %v1461, 1.0
    %v1681 = vadd.f32 %v1463, 1.0
    %v1682 = vadd.f32 %v1465, 1.0
    %v1683 = vadd.f32 %v1467, 1.0
    %v1684 = vadd.f32 %v1469, 1.0
    %v1685 = vadd.f32 %v1471, 1.0
    %v1686 = vadd.f32 %v1473, 1.0
    %v1687 = vadd.f32 %v1475, 1.0
    %v1688 = vadd.f32 %v1477, 1.0
    %v1689 = vadd.f32 %v1479, 1.0
    %v1690 = vadd.f32 %v1481, 1.0
    %v1691 = vadd.f32 %v1483, 1.0
    %v1692 = vadd.f32 %v1485, 1.0
    %v1693 = vadd.f32 %v1487, 1.0
    %v1694 = vadd.f32 %v1489, 1.0
    %v1695 = vadd.f32 %v1491, 1.0
    %v1696 = vadd.f32 %v1493, 1.0
    %v1697 = vadd.f32 %v1495, 1.0
    %v1698 = vadd.f32 %v1497, 1.0
    %v1699 = vadd.f32 %v1499, 1.0
    %v1700 = vadd.f32 %v1501, 1.0
    %v1701 = vadd.f32 %v1503, 1.0
    %v1702 = vadd.f32 %v1505, 1.0
    %v1703 = vadd.f32 %v1507, 1.0
    %v1704 = vadd.f32 %v1509, 1.0
    %v1705 = vadd.f32 %v1511, 1.0
    %v1706 = vadd.f32 %v1513, 1.0
    %v1707 = vadd.f32 %v1515, 1.0
    %v1708 = vadd.f32 %v1517, 1.0
    %v1709 = vadd.f32 %v1519, 1.0
    %v1710 = vadd.f32 %v1521, 1.0
    %v1711 = vadd.f32 %v1523, 1.0
    %v1712 = vadd.f32 %v1525, 1.0
    %v1713 = vadd.f32 %v1527, 1.0
    %v1714 = vadd.f32 %v1529, 1.0
    %v1715 = vadd.f32 %v1531, 1.0
    %v1716 = vadd.f32 %v1533, 1.0
    %v1717 = vadd.f32 %v1535, 1.0
    %v1718 = vadd.f32 %v1537, 1.0
    %v1719 = vadd.f32 %v1539, 1.0
    %v1720 = vadd.f32 %v1541, 1.0
    %v1721 = vadd.f32 %v1543, 1.0
    %v1722 = vadd.f32 %v1545, 1.0
    %v1723 = vadd.f32 %v1547, 1.0
    %v1724 = vadd.f32 %v1549, 1.0
    %v1725 = vadd.f32 %v1551, 1.0
    %v1726 = vadd.f32 %v1553, 1.0
    %v1727 = vadd.f32 %v1555, 1.0
    %v1728 = vadd.f32 %v1557, 1.0
    %v1729 = vadd.f32 %v1559, 1.0
    %v1730 = vadd.f32 %v1561, 1.0
    %v1731 = vadd.f32 %v1563, 1.0
    %v1732 = vadd.f32 %v1565, 1.0
    %v1733 = vadd.f32 %v1567, 1.0
    %v1734 = vadd.f32 %v1569, 1.0
    %v1735 = vadd.f32 %v1571, 1.0
    %v1736 = vadd.f32 %v1573, 1.0
    %v1737 = vadd.f32 %v1575, 1.0
    %v1738 = vadd.f32 %v1577, 1.0
    %v1739 = vadd.f32 %v1579, 1.0
    %v1740 = vadd.f32 %v1581, 1.0
    %v1741 = vadd.f32 %v1583, 1.0
    %v1742 = vadd.f32 %v1585, 1.0
    %v1743 = vadd.f32 %v1587, 1.0
    %v1744 = vadd.f32 %v1589, 1.0
    %v1745 = vadd.f32 %v1591, 1.0
    %v1746 = vadd.f32 %v1593, 1.0
    %v1747 = vadd.f32 %v1595, 1.0
    %v1748 = vadd.f32 %v1597, 1.0
    %v1749 = vadd.f32 %v1599, 1.0
    %v1750 = vadd.f32 %v1601, 1.0
    %v1751 = vadd.f32 %v1603, 1.0
    %v1752 = vadd.f32 %v1605, 1.0
    %v1753 = vadd.f32 %v1607, 1.0
    %v1754 = vadd.f32 %v1609, 1.0
    %v1755 = vadd.f32 %v1611, 1.0
    %v1756 = vadd.f32 %v1613, 1.0
    %v1757 = vadd.f32 %v1615, 1.0
    %v1758 = vadd.f32 %v1617, 1.0
    %v1759 = vadd.f32 %v1619, 1.0
    %v1760 = vadd.f32 %v1621, 1.0
    %v1761 = vadd.f32 %v1623, 1.0
    %v1762 = vadd.f32 %v1625, 1.0
    %v1763 = vadd.f32 %v1627, 1.0
    %v1764 = vadd.f32 %v1629, 1.0
    %v1765 = vadd.f32 %v1631, 1.0
    %v1766 = vadd.f32 %v1633, 1.0
    %v1767 = vadd.f32 %v1635, 1.0
    %v1768 = vadd.f32 %v1637, 1.0
    %v1769 = vadd.f32 %v1639, 1.0
    %v1770 = vadd.f32 %v1641, 1.0
    %v1771 = vadd.f32 %v1643, 1.0
    %v1772 = vrcp.pop %v1644
    %v1773 = vrcp.pop %v1645
    %v1774 = vrcp.pop %v1646
    %v1775 = vrcp.pop %v1647
    %v1776 = vrcp.pop %v1648
    %v1777 = vrcp.pop %v1649
    %v1778 = vrcp.pop %v1650
    %v1779 = vrcp.pop %v1651
    %v1780 = vrcp.pop %v1652
    %v1781 = vrcp.pop %v1653
    %v1782 = vrcp.pop %v1654
    %v1783 = vrcp.pop %v1655
    %v1784 = vrcp.pop %v1656
    %v1785 = vrcp.pop %v1657
    %v1786 = vrcp.pop %v1658
    %v1787 = vrcp.pop %v1659
    %v1788 = vrcp.pop %v1660
    %v1789 = vrcp.pop %v1661
    %v1790 = vrcp.pop %v1662
    %v1791 = vrcp.pop %v1663
    %v1792 = vrcp.pop %v1664
    %v1793 = vrcp.pop %v1665
    %v1794 = vrcp.pop %v1666
    %v1795 = vrcp.pop %v1667
    %v1796 = vrcp.pop %v1668
    %v1797 = vrcp.pop %v1669
    %v1798 = vrcp.pop %v1670
    %v1799 = vrcp.pop %v1671
    %v1800 = vrcp.pop %v1672
    %v1801 = vrcp.pop %v1673
    %v1802 = vrcp.pop %v1674
    %v1803 = vrcp.pop %v1675
    %v1804 = vrcp.pop %v1676
    %v1805 = vrcp.pop %v1677
    %v1806 = vrcp.pop %v1678
    %v1807 = vrcp.pop %v1679
    %v1808 = vrcp.pop %v1680
    %v1809 = vrcp.pop %v1681
    %v1810 = vrcp.pop %v1682
    %v1811 = vrcp.pop %v1683
    %v1812 = vrcp.pop %v1684
    %v1813 = vrcp.pop %v1685
    %v1814 = vrcp.pop %v1686
    %v1815 = vrcp.pop %v1687
    %v1816 = vrcp.pop %v1688
    %v1817 = vrcp.pop %v1689
    %v1818 = vrcp.pop %v1690
    %v1819 = vrcp.pop %v1691
    %v1820 = vrcp.pop %v1692
    %v1821 = vrcp.pop %v1693
    %v1822 = vrcp.pop %v1694
    %v1823 = vrcp.pop %v1695
    %v1824 = vrcp.pop %v1696
    %v1825 = vrcp.pop %v1697
    %v1826 = vrcp.pop %v1698
    %v1827 = vrcp.pop %v1699
    %v1828 = vrcp.pop %v1700
    %v1829 = vrcp.pop %v1701
    %v1830 = vrcp.pop %v1702
    %v1831 = vrcp.pop %v1703
    %v1832 = vrcp.pop %v1704
    %v1833 = vrcp.pop %v1705
    %v1834 = vrcp.pop %v1706
    %v1835 = vrcp.pop %v1707
    %v1836 = vrcp.pop %v1708
    %v1837 = vrcp.pop %v1709
    %v1838 = vrcp.pop %v1710
    %v1839 = vrcp.pop %v1711
    %v1840 = vrcp.pop %v1712
    %v1841 = vrcp.pop %v1713
    %v1842 = vrcp.pop %v1714
    %v1843 = vrcp.pop %v1715
    %v1844 = vrcp.pop %v1716
    %v1845 = vrcp.pop %v1717
    %v1846 = vrcp.pop %v1718
    %v1847 = vrcp.pop %v1719
    %v1848 = vrcp.pop %v1720
    %v1849 = vrcp.pop %v1721
    %v1850 = vrcp.pop %v1722
    %v1851 = vrcp.pop %v1723
    %v1852 = vrcp.pop %v1724
    %v1853 = vrcp.pop %v1725
    %v1854 = vrcp.pop %v1726
    %v1855 = vrcp.pop %v1727
    %v1856 = vrcp.pop %v1728
    %v1857 = vrcp.pop %v1729
    %v1858 = vrcp.pop %v1730
    %v1859 = vrcp.pop %v1731
    %v1860 = vrcp.pop %v1732
    %v1861 = vrcp.pop %v1733
    %v1862 = vrcp.pop %v1734
    %v1863 = vrcp.pop %v1735
    %v1864 = vrcp.pop %v1736
    %v1865 = vrcp.pop %v1737
    %v1866 = vrcp.pop %v1738
    %v1867 = vrcp.pop %v1739
    %v1868 = vrcp.pop %v1740
    %v1869 = vrcp.pop %v1741
    %v1870 = vrcp.pop %v1742
    %v1871 = vrcp.pop %v1743
    %v1872 = vrcp.pop %v1744
    %v1873 = vrcp.pop %v1745
    %v1874 = vrcp.pop %v1746
    %v1875 = vrcp.pop %v1747
    %v1876 = vrcp.pop %v1748
    %v1877 = vrcp.pop %v1749
    %v1878 = vrcp.pop %v1750
    %v1879 = vrcp.pop %v1751
    %v1880 = vrcp.pop %v1752
    %v1881 = vrcp.pop %v1753
    %v1882 = vrcp.pop %v1754
    %v1883 = vrcp.pop %v1755
    %v1884 = vrcp.pop %v1756
    %v1885 = vrcp.pop %v1757
    %v1886 = vrcp.pop %v1758
    %v1887 = vrcp.pop %v1759
    %v1888 = vrcp.pop %v1760
    %v1889 = vrcp.pop %v1761
    %v1890 = vrcp.pop %v1762
    %v1891 = vrcp.pop %v1763
    %v1892 = vrcp.pop %v1764
    %v1893 = vrcp.pop %v1765
    %v1894 = vrcp.pop %v1766
    %v1895 = vrcp.pop %v1767
    %v1896 = vrcp.pop %v1768
    %v1897 = vrcp.pop %v1769
    %v1898 = vrcp.pop %v1770
    %v1899 = vrcp.pop %v1771
    %v1900 = vmul.f32 %v878, %v1772
    %v1901 = vmul.f32 %v880, %v1773
    %v1902 = vmul.f32 %v884, %v1774
    %v1903 = vmul.f32 %v886, %v1775
    %v1904 = vmul.f32 %v890, %v1776
    %v1905 = vmul.f32 %v892, %v1777
    %v1906 = vmul.f32 %v896, %v1778
    %v1907 = vmul.f32 %v898, %v1779
    %v1908 = vmul.f32 %v902, %v1780
    %v1909 = vmul.f32 %v904, %v1781
    %v1910 = vmul.f32 %v908, %v1782
    %v1911 = vmul.f32 %v910, %v1783
    %v1912 = vmul.f32 %v914, %v1784
    %v1913 = vmul.f32 %v916, %v1785
    %v1914 = vmul.f32 %v920, %v1786
    %v1915 = vmul.f32 %v922, %v1787
    %v1916 = vmul.f32 %v926, %v1788
    %v1917 = vmul.f32 %v928, %v1789
    %v1918 = vmul.f32 %v932, %v1790
    %v1919 = vmul.f32 %v934, %v1791
    %v1920 = vmul.f32 %v938, %v1792
    %v1921 = vmul.f32 %v940, %v1793
    %v1922 = vmul.f32 %v944, %v1794
    %v1923 = vmul.f32 %v946, %v1795
    %v1924 = vmul.f32 %v950, %v1796
    %v1925 = vmul.f32 %v952, %v1797
    %v1926 = vmul.f32 %v956, %v1798
    %v1927 = vmul.f32 %v958, %v1799
    %v1928 = vmul.f32 %v962, %v1800
    %v1929 = vmul.f32 %v964, %v1801
    %v1930 = vmul.f32 %v968, %v1802
    %v1931 = vmul.f32 %v970, %v1803
    %v1932 = vmul.f32 %v974, %v1804
    %v1933 = vmul.f32 %v976, %v1805
    %v1934 = vmul.f32 %v980, %v1806
    %v1935 = vmul.f32 %v982, %v1807
    %v1936 = vmul.f32 %v986, %v1808
    %v1937 = vmul.f32 %v988, %v1809
    %v1938 = vmul.f32 %v992, %v1810
    %v1939 = vmul.f32 %v994, %v1811
    %v1940 = vmul.f32 %v998, %v1812
    %v1941 = vmul.f32 %v1000, %v1813
    %v1942 = vmul.f32 %v1004, %v1814
    %v1943 = vmul.f32 %v1006, %v1815
    %v1944 = vmul.f32 %v1010, %v1816
    %v1945 = vmul.f32 %v1012, %v1817
    %v1946 = vmul.f32 %v1016, %v1818
    %v1947 = vmul.f32 %v1018, %v1819
    %v1948 = vmul.f32 %v1022, %v1820
    %v1949 = vmul.f32 %v1024, %v1821
    %v1950 = vmul.f32 %v1028, %v1822
    %v1951 = vmul.f32 %v1030, %v1823
    %v1952 = vmul.f32 %v1034, %v1824
    %v1953 = vmul.f32 %v1036, %v1825
    %v1954 = vmul.f32 %v1040, %v1826
    %v1955 = vmul.f32 %v1042, %v1827
    %v1956 = vmul.f32 %v1046, %v1828
    %v1957 = vmul.f32 %v1048, %v1829
    %v1958 = vmul.f32 %v1052, %v1830
    %v1959 = vmul.f32 %v1054, %v1831
    %v1960 = vmul.f32 %v1058, %v1832
    %v1961 = vmul.f32 %v1060, %v1833
    %v1962 = vmul.f32 %v1064, %v1834
    %v1963 = vmul.f32 %v1066, %v1835
    %v1964 = vmul.f32 %v1070, %v1836
    %v1965 = vmul.f32 %v1072, %v1837
    %v1966 = vmul.f32 %v1076, %v1838
    %v1967 = vmul.f32 %v1078, %v1839
    %v1968 = vmul.f32 %v1082, %v1840
    %v1969 = vmul.f32 %v1084, %v1841
    %v1970 = vmul.f32 %v1088, %v1842
    %v1971 = vmul.f32 %v1090, %v1843
    %v1972 = vmul.f32 %v1094, %v1844
    %v1973 = vmul.f32 %v1096, %v1845
    %v1974 = vmul.f32 %v1100, %v1846
    %v1975 = vmul.f32 %v1102, %v1847
    %v1976 = vmul.f32 %v1106, %v1848
    %v1977 = vmul.f32 %v1108, %v1849
    %v1978 = vmul.f32 %v1112, %v1850
    %v1979 = vmul.f32 %v1114, %v1851
    %v1980 = vmul.f32 %v1118, %v1852
    %v1981 = vmul.f32 %v1120, %v1853
    %v1982 = vmul.f32 %v1124, %v1854
    %v1983 = vmul.f32 %v1126, %v1855
    %v1984 = vmul.f32 %v1130, %v1856
    %v1985 = vmul.f32 %v1132, %v1857
    %v1986 = vmul.f32 %v1136, %v1858
    %v1987 = vmul.f32 %v1138, %v1859
    %v1988 = vmul.f32 %v1142, %v1860
    %v1989 = vmul.f32 %v1144, %v1861
    %v1990 = vmul.f32 %v1148, %v1862
    %v1991 = vmul.f32 %v1150, %v1863
    %v1992 = vmul.f32 %v1154, %v1864
    %v1993 = vmul.f32 %v1156, %v1865
    %v1994 = vmul.f32 %v1160, %v1866
    %v1995 = vmul.f32 %v1162, %v1867
    %v1996 = vmul.f32 %v1166, %v1868
    %v1997 = vmul.f32 %v1168, %v1869
    %v1998 = vmul.f32 %v1172, %v1870
    %v1999 = vmul.f32 %v1174, %v1871
    %v2000 = vmul.f32 %v1178, %v1872
    %v2001 = vmul.f32 %v1180, %v1873
    %v2002 = vmul.f32 %v1184, %v1874
    %v2003 = vmul.f32 %v1186, %v1875
    %v2004 = vmul.f32 %v1190, %v1876
    %v2005 = vmul.f32 %v1192, %v1877
    %v2006 = vmul.f32 %v1196, %v1878
    %v2007 = vmul.f32 %v1198, %v1879
    %v2008 = vmul.f32 %v1202, %v1880
    %v2009 = vmul.f32 %v1204, %v1881
    %v2010 = vmul.f32 %v1208, %v1882
    %v2011 = vmul.f32 %v1210, %v1883
    %v2012 = vmul.f32 %v1214, %v1884
    %v2013 = vmul.f32 %v1216, %v1885
    %v2014 = vmul.f32 %v1220, %v1886
    %v2015 = vmul.f32 %v1222, %v1887
    %v2016 = vmul.f32 %v1226, %v1888
    %v2017 = vmul.f32 %v1228, %v1889
    %v2018 = vmul.f32 %v1232, %v1890
    %v2019 = vmul.f32 %v1234, %v1891
    %v2020 = vmul.f32 %v1238, %v1892
    %v2021 = vmul.f32 %v1240, %v1893
    %v2022 = vmul.f32 %v1244, %v1894
    %v2023 = vmul.f32 %v1246, %v1895
    %v2024 = vmul.f32 %v1250, %v1896
    %v2025 = vmul.f32 %v1252, %v1897
    %v2026 = vmul.f32 %v1256, %v1898
    %v2027 = vmul.f32 %v1258, %v1899
    %v2028 = vmul.f32 %v353, %v1900
    %v2029 = vmul.f32 %v355, %v1901
    %v2030 = vmul.f32 %v359, %v1902
    %v2031 = vmul.f32 %v361, %v1903
    %v2032 = vmul.f32 %v365, %v1904
    %v2033 = vmul.f32 %v367, %v1905
    %v2034 = vmul.f32 %v371, %v1906
    %v2035 = vmul.f32 %v373, %v1907
    %v2036 = vmul.f32 %v377, %v1908
    %v2037 = vmul.f32 %v379, %v1909
    %v2038 = vmul.f32 %v383, %v1910
    %v2039 = vmul.f32 %v385, %v1911
    %v2040 = vmul.f32 %v389, %v1912
    %v2041 = vmul.f32 %v391, %v1913
    %v2042 = vmul.f32 %v395, %v1914
    %v2043 = vmul.f32 %v397, %v1915
    %v2044 = vmul.f32 %v401, %v1916
    %v2045 = vmul.f32 %v403, %v1917
    %v2046 = vmul.f32 %v407, %v1918
    %v2047 = vmul.f32 %v409, %v1919
    %v2048 = vmul.f32 %v413, %v1920
    %v2049 = vmul.f32 %v415, %v1921
    %v2050 = vmul.f32 %v419, %v1922
    %v2051 = vmul.f32 %v421, %v1923
    %v2052 = vmul.f32 %v425, %v1924
    %v2053 = vmul.f32 %v427, %v1925
    %v2054 = vmul.f32 %v431, %v1926
    %v2055 = vmul.f32 %v433, %v1927
    %v2056 = vmul.f32 %v437, %v1928
    %v2057 = vmul.f32 %v439, %v1929
    %v2058 = vmul.f32 %v443, %v1930
    %v2059 = vmul.f32 %v445, %v1931
    %v2060 = vmul.f32 %v449, %v1932
    %v2061 = vmul.f32 %v451, %v1933
    %v2062 = vmul.f32 %v455, %v1934
    %v2063 = vmul.f32 %v457, %v1935
    %v2064 = vmul.f32 %v461, %v1936
    %v2065 = vmul.f32 %v463, %v1937
    %v2066 = vmul.f32 %v467, %v1938
    %v2067 = vmul.f32 %v469, %v1939
    %v2068 = vmul.f32 %v473, %v1940
    %v2069 = vmul.f32 %v475, %v1941
    %v2070 = vmul.f32 %v479, %v1942
    %v2071 = vmul.f32 %v481, %v1943
    %v2072 = vmul.f32 %v485, %v1944
    %v2073 = vmul.f32 %v487, %v1945
    %v2074 = vmul.f32 %v491, %v1946
    %v2075 = vmul.f32 %v493, %v1947
    %v2076 = vmul.f32 %v497, %v1948
    %v2077 = vmul.f32 %v499, %v1949
    %v2078 = vmul.f32 %v503, %v1950
    %v2079 = vmul.f32 %v505, %v1951
    %v2080 = vmul.f32 %v509, %v1952
    %v2081 = vmul.f32 %v511, %v1953
    %v2082 = vmul.f32 %v515, %v1954
    %v2083 = vmul.f32 %v517, %v1955
    %v2084 = vmul.f32 %v521, %v1956
    %v2085 = vmul.f32 %v523, %v1957
    %v2086 = vmul.f32 %v527, %v1958
    %v2087 = vmul.f32 %v529, %v1959
    %v2088 = vmul.f32 %v533, %v1960
    %v2089 = vmul.f32 %v535, %v1961
    %v2090 = vmul.f32 %v539, %v1962
    %v2091 = vmul.f32 %v541, %v1963
    %v2092 = vmul.f32 %v545, %v1964
    %v2093 = vmul.f32 %v547, %v1965
    %v2094 = vmul.f32 %v551, %v1966
    %v2095 = vmul.f32 %v553, %v1967
    %v2096 = vmul.f32 %v557, %v1968
    %v2097 = vmul.f32 %v559, %v1969
    %v2098 = vmul.f32 %v563, %v1970
    %v2099 = vmul.f32 %v565, %v1971
    %v2100 = vmul.f32 %v569, %v1972
    %v2101 = vmul.f32 %v571, %v1973
    %v2102 = vmul.f32 %v575, %v1974
    %v2103 = vmul.f32 %v577, %v1975
    %v2104 = vmul.f32 %v581, %v1976
    %v2105 = vmul.f32 %v583, %v1977
    %v2106 = vmul.f32 %v587, %v1978
    %v2107 = vmul.f32 %v589, %v1979
    %v2108 = vmul.f32 %v593, %v1980
    %v2109 = vmul.f32 %v595, %v1981
    %v2110 = vmul.f32 %v599, %v1982
    %v2111 = vmul.f32 %v601, %v1983
    %v2112 = vmul.f32 %v605, %v1984
    %v2113 = vmul.f32 %v607, %v1985
    %v2114 = vmul.f32 %v611, %v1986
    %v2115 = vmul.f32 %v613, %v1987
    %v2116 = vmul.f32 %v617, %v1988
    %v2117 = vmul.f32 %v619, %v1989
    %v2118 = vmul.f32 %v623, %v1990
    %v2119 = vmul.f32 %v625, %v1991
    %v2120 = vmul.f32 %v629, %v1992
    %v2121 = vmul.f32 %v631, %v1993
    %v2122 = vmul.f32 %v635, %v1994
    %v2123 = vmul.f32 %v637, %v1995
    %v2124 = vmul.f32 %v641, %v1996
    %v2125 = vmul.f32 %v643, %v1997
    %v2126 = vmul.f32 %v647, %v1998
    %v2127 = vmul.f32 %v649, %v1999
    %v2128 = vmul.f32 %v653, %v2000
    %v2129 = vmul.f32 %v655, %v2001
    %v2130 = vmul.f32 %v659, %v2002
    %v2131 = vmul.f32 %v661, %v2003
    %v2132 = vmul.f32 %v665, %v2004
    %v2133 = vmul.f32 %v667, %v2005
    %v2134 = vmul.f32 %v671, %v2006
    %v2135 = vmul.f32 %v673, %v2007
    %v2136 = vmul.f32 %v677, %v2008
    %v2137 = vmul.f32 %v679, %v2009
    %v2138 = vmul.f32 %v683, %v2010
    %v2139 = vmul.f32 %v685, %v2011
    %v2140 = vmul.f32 %v689, %v2012
    %v2141 = vmul.f32 %v691, %v2013
    %v2142 = vmul.f32 %v695, %v2014
    %v2143 = vmul.f32 %v697, %v2015
    %v2144 = vmul.f32 %v701, %v2016
    %v2145 = vmul.f32 %v703, %v2017
    %v2146 = vmul.f32 %v707, %v2018
    %v2147 = vmul.f32 %v709, %v2019
    %v2148 = vmul.f32 %v713, %v2020
    %v2149 = vmul.f32 %v715, %v2021
    %v2150 = vmul.f32 %v719, %v2022
    %v2151 = vmul.f32 %v721, %v2023
    %v2152 = vmul.f32 %v725, %v2024
    %v2153 = vmul.f32 %v727, %v2025
    %v2154 = vmul.f32 %v731, %v2026
    %v2155 = vmul.f32 %v733, %v2027
    %v2156 = vld [vmem:[#allocation8] sm:$0xff]
    %v2157 = vld [vmem:[#allocation8 + $0x8] sm:$0xff]
    %v2158 = vld [vmem:[#allocation8 + $0x10] sm:$0xff]
    %v2159 = vld [vmem:[#allocation8 + $0x18] sm:$0xff]
    %v2160 = vld [vmem:[#allocation8 + $0x20] sm:$0xff]
    %v2161 = vld [vmem:[#allocation8 + $0x28] sm:$0xff]
    %v2162 = vld [vmem:[#allocation8 + $0x30] sm:$0xff]
    %v2163 = vld [vmem:[#allocation8 + $0x38] sm:$0xff]
    %v2164 = vld [vmem:[#allocation8 + $0x40] sm:$0xff]
    %v2165 = vld [vmem:[#allocation8 + $0x48] sm:$0xff]
    %v2166 = vld [vmem:[#allocation8 + $0x50] sm:$0xff]
    %v2167 = vld [vmem:[#allocation8 + $0x58] sm:$0xff]
    %v2168 = vld [vmem:[#allocation8 + $0x60] sm:$0xff]
    %v2169 = vld [vmem:[#allocation8 + $0x68] sm:$0xff]
    %v2170 = vld [vmem:[#allocation8 + $0x70] sm:$0xff]
    %v2171 = vld [vmem:[#allocation8 + $0x78] sm:$0xff]
    %v2172 = vld [vmem:[#allocation8 + $0x80] sm:$0xff]
    %v2173 = vld [vmem:[#allocation8 + $0x88] sm:$0xff]
    %v2174 = vld [vmem:[#allocation8 + $0x90] sm:$0xff]
    %v2175 = vld [vmem:[#allocation8 + $0x98] sm:$0xff]
    %v2176 = vld [vmem:[#allocation8 + $0xa0] sm:$0xff]
    %v2177 = vld [vmem:[#allocation8 + $0xa8] sm:$0xff]
    %v2178 = vld [vmem:[#allocation8 + $0xb0] sm:$0xff]
    %v2179 = vld [vmem:[#allocation8 + $0xb8] sm:$0xff]
    %v2180 = vld [vmem:[#allocation8 + $0xc0] sm:$0xff]
    %v2181 = vld [vmem:[#allocation8 + $0xc8] sm:$0xff]
    %v2182 = vld [vmem:[#allocation8 + $0xd0] sm:$0xff]
    %v2183 = vld [vmem:[#allocation8 + $0xd8] sm:$0xff]
    %v2184 = vld [vmem:[#allocation8 + $0xe0] sm:$0xff]
    %v2185 = vld [vmem:[#allocation8 + $0xe8] sm:$0xff]
    %v2186 = vld [vmem:[#allocation8 + $0xf0] sm:$0xff]
    %v2187 = vld [vmem:[#allocation8 + $0xf8] sm:$0xff]
    %v2188 = vld [vmem:[#allocation8 + $0x100] sm:$0xff]
    %v2189 = vld [vmem:[#allocation8 + $0x108] sm:$0xff]
    %v2190 = vld [vmem:[#allocation8 + $0x110] sm:$0xff]
    %v2191 = vld [vmem:[#allocation8 + $0x118] sm:$0xff]
    %v2192 = vld [vmem:[#allocation8 + $0x120] sm:$0xff]
    %v2193 = vld [vmem:[#allocation8 + $0x128] sm:$0xff]
    %v2194 = vld [vmem:[#allocation8 + $0x130] sm:$0xff]
    %v2195 = vld [vmem:[#allocation8 + $0x138] sm:$0xff]
    %v2196 = vld [vmem:[#allocation8 + $0x140] sm:$0xff]
    %v2197 = vld [vmem:[#allocation8 + $0x148] sm:$0xff]
    %v2198 = vld [vmem:[#allocation8 + $0x150] sm:$0xff]
    %v2199 = vld [vmem:[#allocation8 + $0x158] sm:$0xff]
    %v2200 = vld [vmem:[#allocation8 + $0x160] sm:$0xff]
    %v2201 = vld [vmem:[#allocation8 + $0x168] sm:$0xff]
    %v2202 = vld [vmem:[#allocation8 + $0x170] sm:$0xff]
    %v2203 = vld [vmem:[#allocation8 + $0x178] sm:$0xff]
    %v2204 = vld [vmem:[#allocation8 + $0x180] sm:$0xff]
    %v2205 = vld [vmem:[#allocation8 + $0x188] sm:$0xff]
    %v2206 = vld [vmem:[#allocation8 + $0x190] sm:$0xff]
    %v2207 = vld [vmem:[#allocation8 + $0x198] sm:$0xff]
    %v2208 = vld [vmem:[#allocation8 + $0x1a0] sm:$0xff]
    %v2209 = vld [vmem:[#allocation8 + $0x1a8] sm:$0xff]
    %v2210 = vld [vmem:[#allocation8 + $0x1b0] sm:$0xff]
    %v2211 = vld [vmem:[#allocation8 + $0x1b8] sm:$0xff]
    %v2212 = vld [vmem:[#allocation8 + $0x1c0] sm:$0xff]
    %v2213 = vld [vmem:[#allocation8 + $0x1c8] sm:$0xff]
    %v2214 = vld [vmem:[#allocation8 + $0x1d0] sm:$0xff]
    %v2215 = vld [vmem:[#allocation8 + $0x1d8] sm:$0xff]
    %v2216 = vld [vmem:[#allocation8 + $0x1e0] sm:$0xff]
    %v2217 = vld [vmem:[#allocation8 + $0x1e8] sm:$0xff]
    %v2218 = vld [vmem:[#allocation8 + $0x1f0] sm:$0xff]
    %v2219 = vld [vmem:[#allocation8 + $0x1f8] sm:$0xff]
    %v2220 = vld [vmem:[%s6] sm:$0x3]
    %v2222 = vlaneseq
    %v2223 = vshrl.u32 %v2222, 7
    %v2224 = vsub.s32 0, %v2223
    %v2225 = vrot.slane %v2220, %v2224
    %v2226 = vlaneseq
    %v2227 = vshrl.u32 %v2226, 7
    %v2228 = vsub.s32 1, %v2227
    %v2229 = vrot.slane %v2220, %v2228
    %2232 = vmatprep.subr.mxu0 %v2187
    %2233 = vmatpush1.msra.mxu0 %v2186
    %2234 = vmatprep.subr.mxu0 %v2185
    %2235 = vmatpush1.msra.mxu0 %v2184
    %2236 = vmatprep.subr.mxu0 %v2183
    %2237 = vmatpush1.msra.mxu0 %v2182
    %2238 = vmatprep.subr.mxu0 %v2181
    %2239 = vmatpush1.msra.mxu0 %v2180
    %2240 = vmatprep.subr.mxu0 %v2179
    %2241 = vmatpush1.msra.mxu0 %v2178
    %2242 = vmatprep.subr.mxu0 %v2177
    %2243 = vmatpush1.msra.mxu0 %v2176
    %2244 = vmatprep.subr.mxu0 %v2175
    %2245 = vmatpush1.msra.mxu0 %v2174
    %2246 = vmatprep.subr.mxu0 %v2173
    %2247 = vmatpush1.msra.mxu0 %v2172
    %2248 = vmatprep.subr.mxu0 %v2171
    %2249 = vmatpush1.msra.mxu0 %v2170
    %2250 = vmatprep.subr.mxu0 %v2169
    %2251 = vmatpush1.msra.mxu0 %v2168
    %2252 = vmatprep.subr.mxu0 %v2167
    %2253 = vmatpush1.msra.mxu0 %v2166
    %2254 = vmatprep.subr.mxu0 %v2165
    %2255 = vmatpush1.msra.mxu0 %v2164
    %2256 = vmatprep.subr.mxu0 %v2163
    %2257 = vmatpush1.msra.mxu0 %v2162
    %2258 = vmatprep.subr.mxu0 %v2161
    %2259 = vmatpush1.msra.mxu0 %v2160
    %2260 = vmatprep.subr.mxu0 %v2159
    %2261 = vmatpush1.msra.mxu0 %v2158
    %2262 = vmatprep.subr.mxu0 %v2157
    %2263 = vmatpush1.msra.mxu0 %v2156
    %2264 = vmatprep.subr.mxu0 %v2219
    %2265 = vmatpush2.msra.mxu0 %v2218
    %2266 = vmatprep.subr.mxu0 %v2217
    %2267 = vmatpush2.msra.mxu0 %v2216
    %2268 = vmatprep.subr.mxu0 %v2215
    %2269 = vmatpush2.msra.mxu0 %v2214
    %2270 = vmatprep.subr.mxu0 %v2213
    %2271 = vmatpush2.msra.mxu0 %v2212
    %2272 = vmatprep.subr.mxu0 %v2211
    %2273 = vmatpush2.msra.mxu0 %v2210
    %2274 = vmatprep.subr.mxu0 %v2209
    %2275 = vmatpush2.msra.mxu0 %v2208
    %2276 = vmatprep.subr.mxu0 %v2207
    %2277 = vmatpush2.msra.mxu0 %v2206
    %2278 = vmatprep.subr.mxu0 %v2205
    %2279 = vmatpush2.msra.mxu0 %v2204
    %2280 = vmatprep.subr.mxu0 %v2203
    %2281 = vmatpush2.msra.mxu0 %v2202
    %2282 = vmatprep.subr.mxu0 %v2201
    %2283 = vmatpush2.msra.mxu0 %v2200
    %2284 = vmatprep.subr.mxu0 %v2199
    %2285 = vmatpush2.msra.mxu0 %v2198
    %2286 = vmatprep.subr.mxu0 %v2197
    %2287 = vmatpush2.msra.mxu0 %v2196
    %2288 = vmatprep.subr.mxu0 %v2195
    %2289 = vmatpush2.msra.mxu0 %v2194
    %2290 = vmatprep.subr.mxu0 %v2193
    %2291 = vmatpush2.msra.mxu0 %v2192
    %2292 = vmatprep.subr.mxu0 %v2191
    %2293 = vmatpush2.msra.mxu0 %v2190
    %2294 = vmatprep.subr.mxu0 %v2189
    %2295 = vmatpush2.msra.mxu0 %v2188
    %2296 = vmatprep.mubr.f32.mxu0 %v2029
    %2297 = vmatmul.mubr.f32.gmra.mxu0 %v2028
    %v2298 = vpop.f32.mrf.mxu0
    %v2299 = vadd.f32 %v2225, %v2298
    %v2300 = vpop.f32.mrf.mxu0
    %v2301 = vadd.f32 %v2229, %v2300
    %2302 = vmatprep.mubr.f32.mxu0 %v2031
    %2303 = vmatmul.mubr.f32.gmra.mxu0 %v2030
    %v2304 = vpop.f32.mrf.mxu0
    %v2305 = vadd.f32 %v2225, %v2304
    %v2306 = vpop.f32.mrf.mxu0
    %v2307 = vadd.f32 %v2229, %v2306
    %2308 = vmatprep.mubr.f32.mxu0 %v2033
    %2309 = vmatmul.mubr.f32.gmra.mxu0 %v2032
    %v2310 = vpop.f32.mrf.mxu0
    %v2311 = vadd.f32 %v2225, %v2310
    %v2312 = vpop.f32.mrf.mxu0
    %v2313 = vadd.f32 %v2229, %v2312
    %2314 = vmatprep.mubr.f32.mxu0 %v2035
    %2315 = vmatmul.mubr.f32.gmra.mxu0 %v2034
    %v2316 = vpop.f32.mrf.mxu0
    %v2317 = vadd.f32 %v2225, %v2316
    %v2318 = vpop.f32.mrf.mxu0
    %v2319 = vadd.f32 %v2229, %v2318
    %2320 = vmatprep.mubr.f32.mxu0 %v2037
    %2321 = vmatmul.mubr.f32.gmra.mxu0 %v2036
    %v2322 = vpop.f32.mrf.mxu0
    %v2323 = vadd.f32 %v2225, %v2322
    %v2324 = vpop.f32.mrf.mxu0
    %v2325 = vadd.f32 %v2229, %v2324
    %2326 = vmatprep.mubr.f32.mxu0 %v2039
    %2327 = vmatmul.mubr.f32.gmra.mxu0 %v2038
    %v2328 = vpop.f32.mrf.mxu0
    %v2329 = vadd.f32 %v2225, %v2328
    %v2330 = vpop.f32.mrf.mxu0
    %v2331 = vadd.f32 %v2229, %v2330
    %2332 = vmatprep.mubr.f32.mxu0 %v2041
    %2333 = vmatmul.mubr.f32.gmra.mxu0 %v2040
    %v2334 = vpop.f32.mrf.mxu0
    %v2335 = vadd.f32 %v2225, %v2334
    %v2336 = vpop.f32.mrf.mxu0
    %v2337 = vadd.f32 %v2229, %v2336
    %2338 = vmatprep.mubr.f32.mxu0 %v2043
    %2339 = vmatmul.mubr.f32.gmra.mxu0 %v2042
    %v2340 = vpop.f32.mrf.mxu0
    %v2341 = vadd.f32 %v2225, %v2340
    %v2342 = vpop.f32.mrf.mxu0
    %v2343 = vadd.f32 %v2229, %v2342
    %2344 = vmatprep.mubr.f32.mxu0 %v2045
    %2345 = vmatmul.mubr.f32.gmra.mxu0 %v2044
    %v2346 = vpop.f32.mrf.mxu0
    %v2347 = vadd.f32 %v2225, %v2346
    %v2348 = vpop.f32.mrf.mxu0
    %v2349 = vadd.f32 %v2229, %v2348
    %2350 = vmatprep.mubr.f32.mxu0 %v2047
    %2351 = vmatmul.mubr.f32.gmra.mxu0 %v2046
    %v2352 = vpop.f32.mrf.mxu0
    %v2353 = vadd.f32 %v2225, %v2352
    %v2354 = vpop.f32.mrf.mxu0
    %v2355 = vadd.f32 %v2229, %v2354
    %2356 = vmatprep.mubr.f32.mxu0 %v2049
    %2357 = vmatmul.mubr.f32.gmra.mxu0 %v2048
    %v2358 = vpop.f32.mrf.mxu0
    %v2359 = vadd.f32 %v2225, %v2358
    %v2360 = vpop.f32.mrf.mxu0
    %v2361 = vadd.f32 %v2229, %v2360
    %2362 = vmatprep.mubr.f32.mxu0 %v2051
    %2363 = vmatmul.mubr.f32.gmra.mxu0 %v2050
    %v2364 = vpop.f32.mrf.mxu0
    %v2365 = vadd.f32 %v2225, %v2364
    %v2366 = vpop.f32.mrf.mxu0
    %v2367 = vadd.f32 %v2229, %v2366
    %2368 = vmatprep.mubr.f32.mxu0 %v2053
    %2369 = vmatmul.mubr.f32.gmra.mxu0 %v2052
    %v2370 = vpop.f32.mrf.mxu0
    %v2371 = vadd.f32 %v2225, %v2370
    %v2372 = vpop.f32.mrf.mxu0
    %v2373 = vadd.f32 %v2229, %v2372
    %2374 = vmatprep.mubr.f32.mxu0 %v2055
    %2375 = vmatmul.mubr.f32.gmra.mxu0 %v2054
    %v2376 = vpop.f32.mrf.mxu0
    %v2377 = vadd.f32 %v2225, %v2376
    %v2378 = vpop.f32.mrf.mxu0
    %v2379 = vadd.f32 %v2229, %v2378
    %2380 = vmatprep.mubr.f32.mxu0 %v2057
    %2381 = vmatmul.mubr.f32.gmra.mxu0 %v2056
    %v2382 = vpop.f32.mrf.mxu0
    %v2383 = vadd.f32 %v2225, %v2382
    %v2384 = vpop.f32.mrf.mxu0
    %v2385 = vadd.f32 %v2229, %v2384
    %2386 = vmatprep.mubr.f32.mxu0 %v2059
    %2387 = vmatmul.mubr.f32.gmra.mxu0 %v2058
    %v2388 = vpop.f32.mrf.mxu0
    %v2389 = vadd.f32 %v2225, %v2388
    %v2390 = vpop.f32.mrf.mxu0
    %v2391 = vadd.f32 %v2229, %v2390
    %2392 = vmatprep.mubr.f32.mxu0 %v2061
    %2393 = vmatmul.mubr.f32.gmra.mxu0 %v2060
    %v2394 = vpop.f32.mrf.mxu0
    %v2395 = vadd.f32 %v2225, %v2394
    %v2396 = vpop.f32.mrf.mxu0
    %v2397 = vadd.f32 %v2229, %v2396
    %2398 = vmatprep.mubr.f32.mxu0 %v2063
    %2399 = vmatmul.mubr.f32.gmra.mxu0 %v2062
    %v2400 = vpop.f32.mrf.mxu0
    %v2401 = vadd.f32 %v2225, %v2400
    %v2402 = vpop.f32.mrf.mxu0
    %v2403 = vadd.f32 %v2229, %v2402
    %2404 = vmatprep.mubr.f32.mxu0 %v2065
    %2405 = vmatmul.mubr.f32.gmra.mxu0 %v2064
    %v2406 = vpop.f32.mrf.mxu0
    %v2407 = vadd.f32 %v2225, %v2406
    %v2408 = vpop.f32.mrf.mxu0
    %v2409 = vadd.f32 %v2229, %v2408
    %2410 = vmatprep.mubr.f32.mxu0 %v2067
    %2411 = vmatmul.mubr.f32.gmra.mxu0 %v2066
    %v2412 = vpop.f32.mrf.mxu0
    %v2413 = vadd.f32 %v2225, %v2412
    %v2414 = vpop.f32.mrf.mxu0
    %v2415 = vadd.f32 %v2229, %v2414
    %2416 = vmatprep.mubr.f32.mxu0 %v2069
    %2417 = vmatmul.mubr.f32.gmra.mxu0 %v2068
    %v2418 = vpop.f32.mrf.mxu0
    %v2419 = vadd.f32 %v2225, %v2418
    %v2420 = vpop.f32.mrf.mxu0
    %v2421 = vadd.f32 %v2229, %v2420
    %2422 = vmatprep.mubr.f32.mxu0 %v2071
    %2423 = vmatmul.mubr.f32.gmra.mxu0 %v2070
    %v2424 = vpop.f32.mrf.mxu0
    %v2425 = vadd.f32 %v2225, %v2424
    %v2426 = vpop.f32.mrf.mxu0
    %v2427 = vadd.f32 %v2229, %v2426
    %2428 = vmatprep.mubr.f32.mxu0 %v2073
    %2429 = vmatmul.mubr.f32.gmra.mxu0 %v2072
    %v2430 = vpop.f32.mrf.mxu0
    %v2431 = vadd.f32 %v2225, %v2430
    %v2432 = vpop.f32.mrf.mxu0
    %v2433 = vadd.f32 %v2229, %v2432
    %2434 = vmatprep.mubr.f32.mxu0 %v2075
    %2435 = vmatmul.mubr.f32.gmra.mxu0 %v2074
    %v2436 = vpop.f32.mrf.mxu0
    %v2437 = vadd.f32 %v2225, %v2436
    %v2438 = vpop.f32.mrf.mxu0
    %v2439 = vadd.f32 %v2229, %v2438
    %2440 = vmatprep.mubr.f32.mxu0 %v2077
    %2441 = vmatmul.mubr.f32.gmra.mxu0 %v2076
    %v2442 = vpop.f32.mrf.mxu0
    %v2443 = vadd.f32 %v2225, %v2442
    %v2444 = vpop.f32.mrf.mxu0
    %v2445 = vadd.f32 %v2229, %v2444
    %2446 = vmatprep.mubr.f32.mxu0 %v2079
    %2447 = vmatmul.mubr.f32.gmra.mxu0 %v2078
    %v2448 = vpop.f32.mrf.mxu0
    %v2449 = vadd.f32 %v2225, %v2448
    %v2450 = vpop.f32.mrf.mxu0
    %v2451 = vadd.f32 %v2229, %v2450
    %2452 = vmatprep.mubr.f32.mxu0 %v2081
    %2453 = vmatmul.mubr.f32.gmra.mxu0 %v2080
    %v2454 = vpop.f32.mrf.mxu0
    %v2455 = vadd.f32 %v2225, %v2454
    %v2456 = vpop.f32.mrf.mxu0
    %v2457 = vadd.f32 %v2229, %v2456
    %2458 = vmatprep.mubr.f32.mxu0 %v2083
    %2459 = vmatmul.mubr.f32.gmra.mxu0 %v2082
    %v2460 = vpop.f32.mrf.mxu0
    %v2461 = vadd.f32 %v2225, %v2460
    %v2462 = vpop.f32.mrf.mxu0
    %v2463 = vadd.f32 %v2229, %v2462
    %2464 = vmatprep.mubr.f32.mxu0 %v2085
    %2465 = vmatmul.mubr.f32.gmra.mxu0 %v2084
    %v2466 = vpop.f32.mrf.mxu0
    %v2467 = vadd.f32 %v2225, %v2466
    %v2468 = vpop.f32.mrf.mxu0
    %v2469 = vadd.f32 %v2229, %v2468
    %2470 = vmatprep.mubr.f32.mxu0 %v2087
    %2471 = vmatmul.mubr.f32.gmra.mxu0 %v2086
    %v2472 = vpop.f32.mrf.mxu0
    %v2473 = vadd.f32 %v2225, %v2472
    %v2474 = vpop.f32.mrf.mxu0
    %v2475 = vadd.f32 %v2229, %v2474
    %2476 = vmatprep.mubr.f32.mxu0 %v2089
    %2477 = vmatmul.mubr.f32.gmra.mxu0 %v2088
    %v2478 = vpop.f32.mrf.mxu0
    %v2479 = vadd.f32 %v2225, %v2478
    %v2480 = vpop.f32.mrf.mxu0
    %v2481 = vadd.f32 %v2229, %v2480
    %2482 = vmatprep.mubr.f32.mxu0 %v2091
    %2483 = vmatmul.mubr.f32.gmra.mxu0 %v2090
    %v2484 = vpop.f32.mrf.mxu0
    %v2485 = vadd.f32 %v2225, %v2484
    %v2486 = vpop.f32.mrf.mxu0
    %v2487 = vadd.f32 %v2229, %v2486
    %2488 = vmatprep.mubr.f32.mxu0 %v2093
    %2489 = vmatmul.mubr.f32.gmra.mxu0 %v2092
    %v2490 = vpop.f32.mrf.mxu0
    %v2491 = vadd.f32 %v2225, %v2490
    %v2492 = vpop.f32.mrf.mxu0
    %v2493 = vadd.f32 %v2229, %v2492
    %2494 = vmatprep.mubr.f32.mxu0 %v2095
    %2495 = vmatmul.mubr.f32.gmra.mxu0 %v2094
    %v2496 = vpop.f32.mrf.mxu0
    %v2497 = vadd.f32 %v2225, %v2496
    %v2498 = vpop.f32.mrf.mxu0
    %v2499 = vadd.f32 %v2229, %v2498
    %2500 = vmatprep.mubr.f32.mxu0 %v2097
    %2501 = vmatmul.mubr.f32.gmra.mxu0 %v2096
    %v2502 = vpop.f32.mrf.mxu0
    %v2503 = vadd.f32 %v2225, %v2502
    %v2504 = vpop.f32.mrf.mxu0
    %v2505 = vadd.f32 %v2229, %v2504
    %2506 = vmatprep.mubr.f32.mxu0 %v2099
    %2507 = vmatmul.mubr.f32.gmra.mxu0 %v2098
    %v2508 = vpop.f32.mrf.mxu0
    %v2509 = vadd.f32 %v2225, %v2508
    %v2510 = vpop.f32.mrf.mxu0
    %v2511 = vadd.f32 %v2229, %v2510
    %2512 = vmatprep.mubr.f32.mxu0 %v2101
    %2513 = vmatmul.mubr.f32.gmra.mxu0 %v2100
    %v2514 = vpop.f32.mrf.mxu0
    %v2515 = vadd.f32 %v2225, %v2514
    %v2516 = vpop.f32.mrf.mxu0
    %v2517 = vadd.f32 %v2229, %v2516
    %2518 = vmatprep.mubr.f32.mxu0 %v2103
    %2519 = vmatmul.mubr.f32.gmra.mxu0 %v2102
    %v2520 = vpop.f32.mrf.mxu0
    %v2521 = vadd.f32 %v2225, %v2520
    %v2522 = vpop.f32.mrf.mxu0
    %v2523 = vadd.f32 %v2229, %v2522
    %2524 = vmatprep.mubr.f32.mxu0 %v2105
    %2525 = vmatmul.mubr.f32.gmra.mxu0 %v2104
    %v2526 = vpop.f32.mrf.mxu0
    %v2527 = vadd.f32 %v2225, %v2526
    %v2528 = vpop.f32.mrf.mxu0
    %v2529 = vadd.f32 %v2229, %v2528
    %2530 = vmatprep.mubr.f32.mxu0 %v2107
    %2531 = vmatmul.mubr.f32.gmra.mxu0 %v2106
    %v2532 = vpop.f32.mrf.mxu0
    %v2533 = vadd.f32 %v2225, %v2532
    %v2534 = vpop.f32.mrf.mxu0
    %v2535 = vadd.f32 %v2229, %v2534
    %2536 = vmatprep.mubr.f32.mxu0 %v2109
    %2537 = vmatmul.mubr.f32.gmra.mxu0 %v2108
    %v2538 = vpop.f32.mrf.mxu0
    %v2539 = vadd.f32 %v2225, %v2538
    %v2540 = vpop.f32.mrf.mxu0
    %v2541 = vadd.f32 %v2229, %v2540
    %2542 = vmatprep.mubr.f32.mxu0 %v2111
    %2543 = vmatmul.mubr.f32.gmra.mxu0 %v2110
    %v2544 = vpop.f32.mrf.mxu0
    %v2545 = vadd.f32 %v2225, %v2544
    %v2546 = vpop.f32.mrf.mxu0
    %v2547 = vadd.f32 %v2229, %v2546
    %2548 = vmatprep.mubr.f32.mxu0 %v2113
    %2549 = vmatmul.mubr.f32.gmra.mxu0 %v2112
    %v2550 = vpop.f32.mrf.mxu0
    %v2551 = vadd.f32 %v2225, %v2550
    %v2552 = vpop.f32.mrf.mxu0
    %v2553 = vadd.f32 %v2229, %v2552
    %2554 = vmatprep.mubr.f32.mxu0 %v2115
    %2555 = vmatmul.mubr.f32.gmra.mxu0 %v2114
    %v2556 = vpop.f32.mrf.mxu0
    %v2557 = vadd.f32 %v2225, %v2556
    %v2558 = vpop.f32.mrf.mxu0
    %v2559 = vadd.f32 %v2229, %v2558
    %2560 = vmatprep.mubr.f32.mxu0 %v2117
    %2561 = vmatmul.mubr.f32.gmra.mxu0 %v2116
    %v2562 = vpop.f32.mrf.mxu0
    %v2563 = vadd.f32 %v2225, %v2562
    %v2564 = vpop.f32.mrf.mxu0
    %v2565 = vadd.f32 %v2229, %v2564
    %2566 = vmatprep.mubr.f32.mxu0 %v2119
    %2567 = vmatmul.mubr.f32.gmra.mxu0 %v2118
    %v2568 = vpop.f32.mrf.mxu0
    %v2569 = vadd.f32 %v2225, %v2568
    %v2570 = vpop.f32.mrf.mxu0
    %v2571 = vadd.f32 %v2229, %v2570
    %2572 = vmatprep.mubr.f32.mxu0 %v2121
    %2573 = vmatmul.mubr.f32.gmra.mxu0 %v2120
    %v2574 = vpop.f32.mrf.mxu0
    %v2575 = vadd.f32 %v2225, %v2574
    %v2576 = vpop.f32.mrf.mxu0
    %v2577 = vadd.f32 %v2229, %v2576
    %2578 = vmatprep.mubr.f32.mxu0 %v2123
    %2579 = vmatmul.mubr.f32.gmra.mxu0 %v2122
    %v2580 = vpop.f32.mrf.mxu0
    %v2581 = vadd.f32 %v2225, %v2580
    %v2582 = vpop.f32.mrf.mxu0
    %v2583 = vadd.f32 %v2229, %v2582
    %2584 = vmatprep.mubr.f32.mxu0 %v2125
    %2585 = vmatmul.mubr.f32.gmra.mxu0 %v2124
    %v2586 = vpop.f32.mrf.mxu0
    %v2587 = vadd.f32 %v2225, %v2586
    %v2588 = vpop.f32.mrf.mxu0
    %v2589 = vadd.f32 %v2229, %v2588
    %2590 = vmatprep.mubr.f32.mxu0 %v2127
    %2591 = vmatmul.mubr.f32.gmra.mxu0 %v2126
    %v2592 = vpop.f32.mrf.mxu0
    %v2593 = vadd.f32 %v2225, %v2592
    %v2594 = vpop.f32.mrf.mxu0
    %v2595 = vadd.f32 %v2229, %v2594
    %2596 = vmatprep.mubr.f32.mxu0 %v2129
    %2597 = vmatmul.mubr.f32.gmra.mxu0 %v2128
    %v2598 = vpop.f32.mrf.mxu0
    %v2599 = vadd.f32 %v2225, %v2598
    %v2600 = vpop.f32.mrf.mxu0
    %v2601 = vadd.f32 %v2229, %v2600
    %2602 = vmatprep.mubr.f32.mxu0 %v2131
    %2603 = vmatmul.mubr.f32.gmra.mxu0 %v2130
    %v2604 = vpop.f32.mrf.mxu0
    %v2605 = vadd.f32 %v2225, %v2604
    %v2606 = vpop.f32.mrf.mxu0
    %v2607 = vadd.f32 %v2229, %v2606
    %2608 = vmatprep.mubr.f32.mxu0 %v2133
    %2609 = vmatmul.mubr.f32.gmra.mxu0 %v2132
    %v2610 = vpop.f32.mrf.mxu0
    %v2611 = vadd.f32 %v2225, %v2610
    %v2612 = vpop.f32.mrf.mxu0
    %v2613 = vadd.f32 %v2229, %v2612
    %2614 = vmatprep.mubr.f32.mxu0 %v2135
    %2615 = vmatmul.mubr.f32.gmra.mxu0 %v2134
    %v2616 = vpop.f32.mrf.mxu0
    %v2617 = vadd.f32 %v2225, %v2616
    %v2618 = vpop.f32.mrf.mxu0
    %v2619 = vadd.f32 %v2229, %v2618
    %2620 = vmatprep.mubr.f32.mxu0 %v2137
    %2621 = vmatmul.mubr.f32.gmra.mxu0 %v2136
    %v2622 = vpop.f32.mrf.mxu0
    %v2623 = vadd.f32 %v2225, %v2622
    %v2624 = vpop.f32.mrf.mxu0
    %v2625 = vadd.f32 %v2229, %v2624
    %2626 = vmatprep.mubr.f32.mxu0 %v2139
    %2627 = vmatmul.mubr.f32.gmra.mxu0 %v2138
    %v2628 = vpop.f32.mrf.mxu0
    %v2629 = vadd.f32 %v2225, %v2628
    %v2630 = vpop.f32.mrf.mxu0
    %v2631 = vadd.f32 %v2229, %v2630
    %2632 = vmatprep.mubr.f32.mxu0 %v2141
    %2633 = vmatmul.mubr.f32.gmra.mxu0 %v2140
    %v2634 = vpop.f32.mrf.mxu0
    %v2635 = vadd.f32 %v2225, %v2634
    %v2636 = vpop.f32.mrf.mxu0
    %v2637 = vadd.f32 %v2229, %v2636
    %2638 = vmatprep.mubr.f32.mxu0 %v2143
    %2639 = vmatmul.mubr.f32.gmra.mxu0 %v2142
    %v2640 = vpop.f32.mrf.mxu0
    %v2641 = vadd.f32 %v2225, %v2640
    %v2642 = vpop.f32.mrf.mxu0
    %v2643 = vadd.f32 %v2229, %v2642
    %2644 = vmatprep.mubr.f32.mxu0 %v2145
    %2645 = vmatmul.mubr.f32.gmra.mxu0 %v2144
    %v2646 = vpop.f32.mrf.mxu0
    %v2647 = vadd.f32 %v2225, %v2646
    %v2648 = vpop.f32.mrf.mxu0
    %v2649 = vadd.f32 %v2229, %v2648
    %2650 = vmatprep.mubr.f32.mxu0 %v2147
    %2651 = vmatmul.mubr.f32.gmra.mxu0 %v2146
    %v2652 = vpop.f32.mrf.mxu0
    %v2653 = vadd.f32 %v2225, %v2652
    %v2654 = vpop.f32.mrf.mxu0
    %v2655 = vadd.f32 %v2229, %v2654
    %2656 = vmatprep.mubr.f32.mxu0 %v2149
    %2657 = vmatmul.mubr.f32.gmra.mxu0 %v2148
    %v2658 = vpop.f32.mrf.mxu0
    %v2659 = vadd.f32 %v2225, %v2658
    %v2660 = vpop.f32.mrf.mxu0
    %v2661 = vadd.f32 %v2229, %v2660
    %2662 = vmatprep.mubr.f32.mxu0 %v2151
    %2663 = vmatmul.mubr.f32.gmra.mxu0 %v2150
    %v2664 = vpop.f32.mrf.mxu0
    %v2665 = vadd.f32 %v2225, %v2664
    %v2666 = vpop.f32.mrf.mxu0
    %v2667 = vadd.f32 %v2229, %v2666
    %2668 = vmatprep.mubr.f32.mxu0 %v2153
    %2669 = vmatmul.mubr.f32.gmra.mxu0 %v2152
    %v2670 = vpop.f32.mrf.mxu0
    %v2671 = vadd.f32 %v2225, %v2670
    %v2672 = vpop.f32.mrf.mxu0
    %v2673 = vadd.f32 %v2229, %v2672
    %2674 = vmatprep.mubr.f32.mxu0 %v2155
    %2675 = vmatmul.mubr.f32.gmra.mxu0 %v2154
    %v2676 = vpop.f32.mrf.mxu0
    %v2677 = vadd.f32 %v2225, %v2676
    %v2678 = vpop.f32.mrf.mxu0
    %v2679 = vadd.f32 %v2229, %v2678
    %2680 = vdwg.mxu0
    %2681 = vst [vmem:[#allocation10] sm:$0xff] %v2299
    %2682 = vst [vmem:[#allocation10 + $0x8] sm:$0xff] %v2301
    %2683 = vst [vmem:[#allocation10 + $0x10] sm:$0xff] %v2305
    %2684 = vst [vmem:[#allocation10 + $0x18] sm:$0xff] %v2307
    %2685 = vst [vmem:[#allocation10 + $0x20] sm:$0xff] %v2311
    %2686 = vst [vmem:[#allocation10 + $0x28] sm:$0xff] %v2313
    %2687 = vst [vmem:[#allocation10 + $0x30] sm:$0xff] %v2317
    %2688 = vst [vmem:[#allocation10 + $0x38] sm:$0xff] %v2319
    %2689 = vst [vmem:[#allocation10 + $0x40] sm:$0xff] %v2323
    %2690 = vst [vmem:[#allocation10 + $0x48] sm:$0xff] %v2325
    %2691 = vst [vmem:[#allocation10 + $0x50] sm:$0xff] %v2329
    %2692 = vst [vmem:[#allocation10 + $0x58] sm:$0xff] %v2331
    %2693 = vst [vmem:[#allocation10 + $0x60] sm:$0xff] %v2335
    %2694 = vst [vmem:[#allocation10 + $0x68] sm:$0xff] %v2337
    %2695 = vst [vmem:[#allocation10 + $0x70] sm:$0xff] %v2341
    %2696 = vst [vmem:[#allocation10 + $0x78] sm:$0xff] %v2343
    %2697 = vst [vmem:[#allocation10 + $0x80] sm:$0xff] %v2347
    %2698 = vst [vmem:[#allocation10 + $0x88] sm:$0xff] %v2349
    %2699 = vst [vmem:[#allocation10 + $0x90] sm:$0xff] %v2353
    %2700 = vst [vmem:[#allocation10 + $0x98] sm:$0xff] %v2355
    %2701 = vst [vmem:[#allocation10 + $0xa0] sm:$0xff] %v2359
    %2702 = vst [vmem:[#allocation10 + $0xa8] sm:$0xff] %v2361
    %2703 = vst [vmem:[#allocation10 + $0xb0] sm:$0xff] %v2365
    %2704 = vst [vmem:[#allocation10 + $0xb8] sm:$0xff] %v2367
    %2705 = vst [vmem:[#allocation10 + $0xc0] sm:$0xff] %v2371
    %2706 = vst [vmem:[#allocation10 + $0xc8] sm:$0xff] %v2373
    %2707 = vst [vmem:[#allocation10 + $0xd0] sm:$0xff] %v2377
    %2708 = vst [vmem:[#allocation10 + $0xd8] sm:$0xff] %v2379
    %2709 = vst [vmem:[#allocation10 + $0xe0] sm:$0xff] %v2383
    %2710 = vst [vmem:[#allocation10 + $0xe8] sm:$0xff] %v2385
    %2711 = vst [vmem:[#allocation10 + $0xf0] sm:$0xff] %v2389
    %2712 = vst [vmem:[#allocation10 + $0xf8] sm:$0xff] %v2391
    %2713 = vst [vmem:[#allocation10 + $0x100] sm:$0xff] %v2395
    %2714 = vst [vmem:[#allocation10 + $0x108] sm:$0xff] %v2397
    %2715 = vst [vmem:[#allocation10 + $0x110] sm:$0xff] %v2401
    %2716 = vst [vmem:[#allocation10 + $0x118] sm:$0xff] %v2403
    %2717 = vst [vmem:[#allocation10 + $0x120] sm:$0xff] %v2407
    %2718 = vst [vmem:[#allocation10 + $0x128] sm:$0xff] %v2409
    %2719 = vst [vmem:[#allocation10 + $0x130] sm:$0xff] %v2413
    %2720 = vst [vmem:[#allocation10 + $0x138] sm:$0xff] %v2415
    %2721 = vst [vmem:[#allocation10 + $0x140] sm:$0xff] %v2419
    %2722 = vst [vmem:[#allocation10 + $0x148] sm:$0xff] %v2421
    %2723 = vst [vmem:[#allocation10 + $0x150] sm:$0xff] %v2425
    %2724 = vst [vmem:[#allocation10 + $0x158] sm:$0xff] %v2427
    %2725 = vst [vmem:[#allocation10 + $0x160] sm:$0xff] %v2431
    %2726 = vst [vmem:[#allocation10 + $0x168] sm:$0xff] %v2433
    %2727 = vst [vmem:[#allocation10 + $0x170] sm:$0xff] %v2437
    %2728 = vst [vmem:[#allocation10 + $0x178] sm:$0xff] %v2439
    %2729 = vst [vmem:[#allocation10 + $0x180] sm:$0xff] %v2443
    %2730 = vst [vmem:[#allocation10 + $0x188] sm:$0xff] %v2445
    %2731 = vst [vmem:[#allocation10 + $0x190] sm:$0xff] %v2449
    %2732 = vst [vmem:[#allocation10 + $0x198] sm:$0xff] %v2451
    %2733 = vst [vmem:[#allocation10 + $0x1a0] sm:$0xff] %v2455
    %2734 = vst [vmem:[#allocation10 + $0x1a8] sm:$0xff] %v2457
    %2735 = vst [vmem:[#allocation10 + $0x1b0] sm:$0xff] %v2461
    %2736 = vst [vmem:[#allocation10 + $0x1b8] sm:$0xff] %v2463
    %2737 = vst [vmem:[#allocation10 + $0x1c0] sm:$0xff] %v2467
    %2738 = vst [vmem:[#allocation10 + $0x1c8] sm:$0xff] %v2469
    %2739 = vst [vmem:[#allocation10 + $0x1d0] sm:$0xff] %v2473
    %2740 = vst [vmem:[#allocation10 + $0x1d8] sm:$0xff] %v2475
    %2741 = vst [vmem:[#allocation10 + $0x1e0] sm:$0xff] %v2479
    %2742 = vst [vmem:[#allocation10 + $0x1e8] sm:$0xff] %v2481
    %2743 = vst [vmem:[#allocation10 + $0x1f0] sm:$0xff] %v2485
    %2744 = vst [vmem:[#allocation10 + $0x1f8] sm:$0xff] %v2487
    %2745 = vst [vmem:[#allocation10 + $0x200] sm:$0xff] %v2491
    %2746 = vst [vmem:[#allocation10 + $0x208] sm:$0xff] %v2493
    %2747 = vst [vmem:[#allocation10 + $0x210] sm:$0xff] %v2497
    %2748 = vst [vmem:[#allocation10 + $0x218] sm:$0xff] %v2499
    %2749 = vst [vmem:[#allocation10 + $0x220] sm:$0xff] %v2503
    %2750 = vst [vmem:[#allocation10 + $0x228] sm:$0xff] %v2505
    %2751 = vst [vmem:[#allocation10 + $0x230] sm:$0xff] %v2509
    %2752 = vst [vmem:[#allocation10 + $0x238] sm:$0xff] %v2511
    %2753 = vst [vmem:[#allocation10 + $0x240] sm:$0xff] %v2515
    %2754 = vst [vmem:[#allocation10 + $0x248] sm:$0xff] %v2517
    %2755 = vst [vmem:[#allocation10 + $0x250] sm:$0xff] %v2521
    %2756 = vst [vmem:[#allocation10 + $0x258] sm:$0xff] %v2523
    %2757 = vst [vmem:[#allocation10 + $0x260] sm:$0xff] %v2527
    %2758 = vst [vmem:[#allocation10 + $0x268] sm:$0xff] %v2529
    %2759 = vst [vmem:[#allocation10 + $0x270] sm:$0xff] %v2533
    %2760 = vst [vmem:[#allocation10 + $0x278] sm:$0xff] %v2535
    %2761 = vst [vmem:[#allocation10 + $0x280] sm:$0xff] %v2539
    %2762 = vst [vmem:[#allocation10 + $0x288] sm:$0xff] %v2541
    %2763 = vst [vmem:[#allocation10 + $0x290] sm:$0xff] %v2545
    %2764 = vst [vmem:[#allocation10 + $0x298] sm:$0xff] %v2547
    %2765 = vst [vmem:[#allocation10 + $0x2a0] sm:$0xff] %v2551
    %2766 = vst [vmem:[#allocation10 + $0x2a8] sm:$0xff] %v2553
    %2767 = vst [vmem:[#allocation10 + $0x2b0] sm:$0xff] %v2557
    %2768 = vst [vmem:[#allocation10 + $0x2b8] sm:$0xff] %v2559
    %2769 = vst [vmem:[#allocation10 + $0x2c0] sm:$0xff] %v2563
    %2770 = vst [vmem:[#allocation10 + $0x2c8] sm:$0xff] %v2565
    %2771 = vst [vmem:[#allocation10 + $0x2d0] sm:$0xff] %v2569
    %2772 = vst [vmem:[#allocation10 + $0x2d8] sm:$0xff] %v2571
    %2773 = vst [vmem:[#allocation10 + $0x2e0] sm:$0xff] %v2575
    %2774 = vst [vmem:[#allocation10 + $0x2e8] sm:$0xff] %v2577
    %2775 = vst [vmem:[#allocation10 + $0x2f0] sm:$0xff] %v2581
    %2776 = vst [vmem:[#allocation10 + $0x2f8] sm:$0xff] %v2583
    %2777 = vst [vmem:[#allocation10 + $0x300] sm:$0xff] %v2587
    %2778 = vst [vmem:[#allocation10 + $0x308] sm:$0xff] %v2589
    %2779 = vst [vmem:[#allocation10 + $0x310] sm:$0xff] %v2593
    %2780 = vst [vmem:[#allocation10 + $0x318] sm:$0xff] %v2595
    %2781 = vst [vmem:[#allocation10 + $0x320] sm:$0xff] %v2599
    %2782 = vst [vmem:[#allocation10 + $0x328] sm:$0xff] %v2601
    %2783 = vst [vmem:[#allocation10 + $0x330] sm:$0xff] %v2605
    %2784 = vst [vmem:[#allocation10 + $0x338] sm:$0xff] %v2607
    %2785 = vst [vmem:[#allocation10 + $0x340] sm:$0xff] %v2611
    %2786 = vst [vmem:[#allocation10 + $0x348] sm:$0xff] %v2613
    %2787 = vst [vmem:[#allocation10 + $0x350] sm:$0xff] %v2617
    %2788 = vst [vmem:[#allocation10 + $0x358] sm:$0xff] %v2619
    %2789 = vst [vmem:[#allocation10 + $0x360] sm:$0xff] %v2623
    %2790 = vst [vmem:[#allocation10 + $0x368] sm:$0xff] %v2625
    %2791 = vst [vmem:[#allocation10 + $0x370] sm:$0xff] %v2629
    %2792 = vst [vmem:[#allocation10 + $0x378] sm:$0xff] %v2631
    %2793 = vst [vmem:[#allocation10 + $0x380] sm:$0xff] %v2635
    %2794 = vst [vmem:[#allocation10 + $0x388] sm:$0xff] %v2637
    %2795 = vst [vmem:[#allocation10 + $0x390] sm:$0xff] %v2641
    %2796 = vst [vmem:[#allocation10 + $0x398] sm:$0xff] %v2643
    %2797 = vst [vmem:[#allocation10 + $0x3a0] sm:$0xff] %v2647
    %2798 = vst [vmem:[#allocation10 + $0x3a8] sm:$0xff] %v2649
    %2799 = vst [vmem:[#allocation10 + $0x3b0] sm:$0xff] %v2653
    %2800 = vst [vmem:[#allocation10 + $0x3b8] sm:$0xff] %v2655
    %2801 = vst [vmem:[#allocation10 + $0x3c0] sm:$0xff] %v2659
    %2802 = vst [vmem:[#allocation10 + $0x3c8] sm:$0xff] %v2661
    %2803 = vst [vmem:[#allocation10 + $0x3d0] sm:$0xff] %v2665
    %2804 = vst [vmem:[#allocation10 + $0x3d8] sm:$0xff] %v2667
    %2805 = vst [vmem:[#allocation10 + $0x3e0] sm:$0xff] %v2671
    %2806 = vst [vmem:[#allocation10 + $0x3e8] sm:$0xff] %v2673
    %2807 = vst [vmem:[#allocation10 + $0x3f0] sm:$0xff] %v2677
    %2808 = vst [vmem:[#allocation10 + $0x3f8] sm:$0xff] %v2679
    // Predicated region
    $region46: #{_swiglu_call.1} parent=1 // pred_check
      _
    $region47: #{_swiglu_call.1} parent=1 // pred_check_branch
      %2810 = sbr.rel (0) target = $region49
    $region48: #{_swiglu_call.1} parent=1 // pred_region
      %s2812 = ssub.s32 16384, 16384
      %2813 = vsyncadd [#allocation4], %s2812
      %s2814 = sshll.u32 [#allocation10], 4
      %s2815 = int_to_ptr.vmem [resolvable:$true] %s2814
      %2820 = dma.vmem_to_hbm [thread:$0]  %s2815, 16384, %s7, [#allocation4], 256, 256, 16
    $region49: #{_swiglu_call.1} parent=1 // pred_fallthru
      _
    // Predicated region
    $region50: #{_swiglu_call.1} parent=1 // pred_check
      _
    $region51: #{_swiglu_call.1} parent=1 // pred_check_branch
      %2822 = sbr.rel (0) target = $region53
    $region52: #{_swiglu_call.1} parent=1 // pred_region
      %2823 = dma.done [#allocation4], 16384
    $region53: #{_swiglu_call.1} parent=1 // pred_fallthru
      _
    %2824 = vsyncpa [#allocation3], 1
    %2825 = vsyncpa [#allocation6], 1
    %2826 = vsyncpa [#allocation9], 1
    %2827 = vsyncpa [#allocation4], 1

// kernel: _swiglu_call.1
$region0: #{_swiglu_call.1}
  #allocation0 [shape = 'u32[]', space=smem, size = 0x4, offset = 0x4, fixed_abs, tag = 'smem constant byte address 0x4 - core index']
  #allocation1 [shape = 'u32[144,128]{1,0:T(1,128)}', space=vmem, size = 0x12000, scoped, tag = 'internal scratch']
  %s0 = inlined_call_operand.hbm [shape: f32[512,256], index: 0, kind: input, shape index: {}]
  %s1 = inlined_call_operand.hbm [shape: f32[256,256], index: 1, kind: input, shape index: {}]
  %s2 = inlined_call_operand.vmem [shape: f32[1,256], index: 2, kind: input, shape index: {}]
  %s3 = inlined_call_operand.hbm [shape: f32[256,256], index: 3, kind: input, shape index: {}]
  %s4 = inlined_call_operand.vmem [shape: f32[1,256], index: 4, kind: input, shape index: {}]
  %s5 = inlined_call_operand.hbm [shape: f32[256,256], index: 5, kind: input, shape index: {}]
  %s6 = inlined_call_operand.vmem [shape: f32[1,256], index: 6, kind: input, shape index: {}]
  %s7 = inlined_call_operand.hbm [shape: f32[512,256], index: 7, kind: output, shape index: {}]
  %s8 = sld [smem:[#allocation0]]
  $region54: #{_swiglu_call.1} parent=0
    _
  %s10 = ssub.s32 1, %s8
  %s11 = scalar_select 0, %s10, %s8
  $region1: #{_swiglu_call.1} parent=0
    #allocation2 [shape = 'u8[524288]{0}', space=vmem, size = 0x80000, scoped, tag = 'input window, operand 0, single buffered']
    #allocation3 [shape = 's32[1]{0}', space=sflag, size = 0x4, scoped, tag = 'scoped memory for _swiglu_call.1']
    #allocation4 [shape = 's32[1]{0}', space=sflag, size = 0x4, scoped, tag = 'scoped memory for _swiglu_call.1']
    #allocation5 [shape = 'u8[262144]{0}', space=vmem, size = 0x40000, scoped, tag = 'input window, operand 1, single buffered']
    #allocation6 [shape = 's32[1]{0}', space=sflag, size = 0x4, scoped, tag = 'scoped memory for _swiglu_call.1']
    #allocation7 [shape = 'u8[262144]{0}', space=vmem, size = 0x40000, scoped, tag = 'input window, operand 3, single buffered']
    #allocation8 [shape = 'u8[262144]{0}', space=vmem, size = 0x40000, scoped, tag = 'input window, operand 5, single buffered']
    #allocation9 [shape = 's32[1]{0}', space=sflag, size = 0x4, scoped, tag = 'scoped memory for _swiglu_call.1']
    #allocation10 [shape = 'u8[524288]{0}', space=vmem, size = 0x80000, scoped, tag = 'output window, operand 0, single buffered']
    %12 = vsyncpa [#allocation3], 0
    %13 = vsyncpa [#allocation6], 0
    %14 = vsyncpa [#allocation9], 0
    %15 = vsyncpa [#allocation4], 0
    // Predicated region
    $region2: #{_swiglu_call.1} parent=1 // pred_check
      _
    $region3: #{_swiglu_call.1} parent=1 // pred_check_branch
      %17 = sbr.rel (0) target = $region5
    $region4: #{_swiglu_call.1} parent=1 // pred_region
      %s19 = ssub.s32 16384, 16384
      %20 = vsyncadd [#allocation3], %s19
      %s21 = sshll.u32 [#allocation2], 4
      %s22 = int_to_ptr.vmem [resolvable:$true] %s21
      %27 = dma.hbm_to_vmem [thread:$0]  %s0, 16384, %s22, [#allocation3], 256, 256, 16
    $region5: #{_swiglu_call.1} parent=1 // pred_fallthru
      _
    // Predicated region
    $region6: #{_swiglu_call.1} parent=1 // pred_check
      _
    $region7: #{_swiglu_call.1} parent=1 // pred_check_branch
      %29 = sbr.rel (0) target = $region9
    $region8: #{_swiglu_call.1} parent=1 // pred_region
      %s31 = ssub.s32 8192, 8192
      %32 = vsyncadd [#allocation6], %s31
      %s33 = sshll.u32 [#allocation5], 4
      %s34 = int_to_ptr.vmem [resolvable:$true] %s33
      %39 = dma.hbm_to_vmem [thread:$0]  %s1, 8192, %s34, [#allocation6], 256, 256, 16
    $region9: #{_swiglu_call.1} parent=1 // pred_fallthru
      _
    // Predicated region
    $region10: #{_swiglu_call.1} parent=1 // pred_check
      _
    $region11: #{_swiglu_call.1} parent=1 // pred_check_branch
      %41 = sbr.rel (0) target = $region13
    $region12: #{_swiglu_call.1} parent=1 // pred_region
      _
    $region13: #{_swiglu_call.1} parent=1 // pred_fallthru
      _
    // Predicated region
    $region14: #{_swiglu_call.1} parent=1 // pred_check
      _
    $region15: #{_swiglu_call.1} parent=1 // pred_check_branch
      %43 = sbr.rel (0) target = $region17
    $region16: #{_swiglu_call.1} parent=1 // pred_region
      %s45 = ssub.s32 8192, 8192
      %46 = vsyncadd [#allocation6], %s45
      %s47 = sshll.u32 [#allocation7], 4
      %s48 = int_to_ptr.vmem [resolvable:$true] %s47
      %53 = dma.hbm_to_vmem [thread:$0]  %s3, 8192, %s48, [#allocation6], 256, 256, 16
    $region17: #{_swiglu_call.1} parent=1 // pred_fallthru
      _
    // Predicated region
    $region18: #{_swiglu_call.1} parent=1 // pred_check
      _
    $region19: #{_swiglu_call.1} parent=1 // pred_check_branch
      %55 = sbr.rel (0) target = $region21
    $region20: #{_swiglu_call.1} parent=1 // pred_region
      _
    $region21: #{_swiglu_call.1} parent=1 // pred_fallthru
      _
    // Predicated region
    $region22: #{_swiglu_call.1} parent=1 // pred_check
      _
    $region23: #{_swiglu_call.1} parent=1 // pred_check_branch
      %57 = sbr.rel (0) target = $region25
    $region24: #{_swiglu_call.1} parent=1 // pred_region
      %s59 = ssub.s32 8192, 8192
      %60 = vsyncadd [#allocation9], %s59
      %s61 = sshll.u32 [#allocation8], 4
      %s62 = int_to_ptr.vmem [resolvable:$true] %s61
      %67 = dma.hbm_to_vmem [thread:$0]  %s5, 8192, %s62, [#allocation9], 256, 256, 16
    $region25: #{_swiglu_call.1} parent=1 // pred_fallthru
      _
    // Predicated region
    $region26: #{_swiglu_call.1} parent=1 // pred_check
      _
    $region27: #{_swiglu_call.1} parent=1 // pred_check_branch
      %69 = sbr.rel (0) target = $region29
    $region28: #{_swiglu_call.1} parent=1 // pred_region
      _
    $region29: #{_swiglu_call.1} parent=1 // pred_fallthru
      _
    // Predicated region
    $region30: #{_swiglu_call.1} parent=1 // pred_check
      _
    $region31: #{_swiglu_call.1} parent=1 // pred_check_branch
      %71 = sbr.rel (0) target = $region33
    $region32: #{_swiglu_call.1} parent=1 // pred_region
      %72 = dma.done [#allocation3], 16384
    $region33: #{_swiglu_call.1} parent=1 // pred_fallthru
      _
    // Predicated region
    $region34: #{_swiglu_call.1} parent=1 // pred_check
      _
    $region35: #{_swiglu_call.1} parent=1 // pred_check_branch
      %74 = sbr.rel (0) target = $region37
    $region36: #{_swiglu_call.1} parent=1 // pred_region
      %75 = dma.done [#allocation6], 8192
    $region37: #{_swiglu_call.1} parent=1 // pred_fallthru
      _
    // Predicated region
    $region38: #{_swiglu_call.1} parent=1 // pred_check
      _
    $region39: #{_swiglu_call.1} parent=1 // pred_check_branch
      %77 = sbr.rel (0) target = $region41
    $region40: #{_swiglu_call.1} parent=1 // pred_region
      %78 = dma.done [#allocation6], 8192
    $region41: #{_swiglu_call.1} parent=1 // pred_fallthru
      _
    // Predicated region
    $region42: #{_swiglu_call.1} parent=1 // pred_check
      _
    $region43: #{_swiglu_call.1} parent=1 // pred_check_branch
      %80 = sbr.rel (0) target = $region45
    $region44: #{_swiglu_call.1} parent=1 // pred_region
      %81 = dma.done [#allocation9], 8192
    $region45: #{_swiglu_call.1} parent=1 // pred_fallthru
      _
    %v82 = vld [vmem:[#allocation2] sm:$0xff]
    %v83 = vld [vmem:[#allocation2 + $0x8] sm:$0xff]
    %v84 = vld [vmem:[#allocation2 + $0x10] sm:$0xff]
    %v85 = vld [vmem:[#allocation2 + $0x18] sm:$0xff]
    %v86 = vld [vmem:[#allocation2 + $0x20] sm:$0xff]
    %v87 = vld [vmem:[#allocation2 + $0x28] sm:$0xff]
    %v88 = vld [vmem:[#allocation2 + $0x30] sm:$0xff]
    %v89 = vld [vmem:[#allocation2 + $0x38] sm:$0xff]
    %v90 = vld [vmem:[#allocation2 + $0x40] sm:$0xff]
    %v91 = vld [vmem:[#allocation2 + $0x48] sm:$0xff]
    %v92 = vld [vmem:[#allocation2 + $0x50] sm:$0xff]
    %v93 = vld [vmem:[#allocation2 + $0x58] sm:$0xff]
    %v94 = vld [vmem:[#allocation2 + $0x60] sm:$0xff]
    %v95 = vld [vmem:[#allocation2 + $0x68] sm:$0xff]
    %v96 = vld [vmem:[#allocation2 + $0x70] sm:$0xff]
    %v97 = vld [vmem:[#allocation2 + $0x78] sm:$0xff]
    %v98 = vld [vmem:[#allocation2 + $0x80] sm:$0xff]
    %v99 = vld [vmem:[#allocation2 + $0x88] sm:$0xff]
    %v100 = vld [vmem:[#allocation2 + $0x90] sm:$0xff]
    %v101 = vld [vmem:[#allocation2 + $0x98] sm:$0xff]
    %v102 = vld [vmem:[#allocation2 + $0xa0] sm:$0xff]
    %v103 = vld [vmem:[#allocation2 + $0xa8] sm:$0xff]
    %v104 = vld [vmem:[#allocation2 + $0xb0] sm:$0xff]
    %v105 = vld [vmem:[#allocation2 + $0xb8] sm:$0xff]
    %v106 = vld [vmem:[#allocation2 + $0xc0] sm:$0xff]
    %v107 = vld [vmem:[#allocation2 + $0xc8] sm:$0xff]
    %v108 = vld [vmem:[#allocation2 + $0xd0] sm:$0xff]
    %v109 = vld [vmem:[#allocation2 + $0xd8] sm:$0xff]
    %v110 = vld [vmem:[#allocation2 + $0xe0] sm:$0xff]
    %v111 = vld [vmem:[#allocation2 + $0xe8] sm:$0xff]
    %v112 = vld [vmem:[#allocation2 + $0xf0] sm:$0xff]
    %v113 = vld [vmem:[#allocation2 + $0xf8] sm:$0xff]
    %v114 = vld [vmem:[#allocation2 + $0x100] sm:$0xff]
    %v115 = vld [vmem:[#allocation2 + $0x108] sm:$0xff]
    %v116 = vld [vmem:[#allocation2 + $0x110] sm:$0xff]
    %v117 = vld [vmem:[#allocation2 + $0x118] sm:$0xff]
    %v118 = vld [vmem:[#allocation2 + $0x120] sm:$0xff]
    %v119 = vld [vmem:[#allocation2 + $0x128] sm:$0xff]
    %v120 = vld [vmem:[#allocation2 + $0x130] sm:$0xff]
    %v121 = vld [vmem:[#allocation2 + $0x138] sm:$0xff]
    %v122 = vld [vmem:[#allocation2 + $0x140] sm:$0xff]
    %v123 = vld [vmem:[#allocation2 + $0x148] sm:$0xff]
    %v124 = vld [vmem:[#allocation2 + $0x150] sm:$0xff]
    %v125 = vld [vmem:[#allocation2 + $0x158] sm:$0xff]
    %v126 = vld [vmem:[#allocation2 + $0x160] sm:$0xff]
    %v127 = vld [vmem:[#allocation2 + $0x168] sm:$0xff]
    %v128 = vld [vmem:[#allocation2 + $0x170] sm:$0xff]
    %v129 = vld [vmem:[#allocation2 + $0x178] sm:$0xff]
    %v130 = vld [vmem:[#allocation2 + $0x180] sm:$0xff]
    %v131 = vld [vmem:[#allocation2 + $0x188] sm:$0xff]
    %v132 = vld [vmem:[#allocation2 + $0x190] sm:$0xff]
    %v133 = vld [vmem:[#allocation2 + $0x198] sm:$0xff]
    %v134 = vld [vmem:[#allocation2 + $0x1a0] sm:$0xff]
    %v135 = vld [vmem:[#allocation2 + $0x1a8] sm:$0xff]
    %v136 = vld [vmem:[#allocation2 + $0x1b0] sm:$0xff]
    %v137 = vld [vmem:[#allocation2 + $0x1b8] sm:$0xff]
    %v138 = vld [vmem:[#allocation2 + $0x1c0] sm:$0xff]
    %v139 = vld [vmem:[#allocation2 + $0x1c8] sm:$0xff]
    %v140 = vld [vmem:[#allocation2 + $0x1d0] sm:$0xff]
    %v141 = vld [vmem:[#allocation2 + $0x1d8] sm:$0xff]
    %v142 = vld [vmem:[#allocation2 + $0x1e0] sm:$0xff]
    %v143 = vld [vmem:[#allocation2 + $0x1e8] sm:$0xff]
    %v144 = vld [vmem:[#allocation2 + $0x1f0] sm:$0xff]
    %v145 = vld [vmem:[#allocation2 + $0x1f8] sm:$0xff]
    %v146 = vld [vmem:[#allocation2 + $0x200] sm:$0xff]
    %v147 = vld [vmem:[#allocation2 + $0x208] sm:$0xff]
    %v148 = vld [vmem:[#allocation2 + $0x210] sm:$0xff]
    %v149 = vld [vmem:[#allocation2 + $0x218] sm:$0xff]
    %v150 = vld [vmem:[#allocation2 + $0x220] sm:$0xff]
    %v151 = vld [vmem:[#allocation2 + $0x228] sm:$0xff]
    %v152 = vld [vmem:[#allocation2 + $0x230] sm:$0xff]
    %v153 = vld [vmem:[#allocation2 + $0x238] sm:$0xff]
    %v154 = vld [vmem:[#allocation2 + $0x240] sm:$0xff]
    %v155 = vld [vmem:[#allocation2 + $0x248] sm:$0xff]
    %v156 = vld [vmem:[#allocation2 + $0x250] sm:$0xff]
    %v157 = vld [vmem:[#allocation2 + $0x258] sm:$0xff]
    %v158 = vld [vmem:[#allocation2 + $0x260] sm:$0xff]
    %v159 = vld [vmem:[#allocation2 + $0x268] sm:$0xff]
    %v160 = vld [vmem:[#allocation2 + $0x270] sm:$0xff]
    %v161 = vld [vmem:[#allocation2 + $0x278] sm:$0xff]
    %v162 = vld [vmem:[#allocation2 + $0x280] sm:$0xff]
    %v163 = vld [vmem:[#allocation2 + $0x288] sm:$0xff]
    %v164 = vld [vmem:[#allocation2 + $0x290] sm:$0xff]
    %v165 = vld [vmem:[#allocation2 + $0x298] sm:$0xff]
    %v166 = vld [vmem:[#allocation2 + $0x2a0] sm:$0xff]
    %v167 = vld [vmem:[#allocation2 + $0x2a8] sm:$0xff]
    %v168 = vld [vmem:[#allocation2 + $0x2b0] sm:$0xff]
    %v169 = vld [vmem:[#allocation2 + $0x2b8] sm:$0xff]
    %v170 = vld [vmem:[#allocation2 + $0x2c0] sm:$0xff]
    %v171 = vld [vmem:[#allocation2 + $0x2c8] sm:$0xff]
    %v172 = vld [vmem:[#allocation2 + $0x2d0] sm:$0xff]
    %v173 = vld [vmem:[#allocation2 + $0x2d8] sm:$0xff]
    %v174 = vld [vmem:[#allocation2 + $0x2e0] sm:$0xff]
    %v175 = vld [vmem:[#allocation2 + $0x2e8] sm:$0xff]
    %v176 = vld [vmem:[#allocation2 + $0x2f0] sm:$0xff]
    %v177 = vld [vmem:[#allocation2 + $0x2f8] sm:$0xff]
    %v178 = vld [vmem:[#allocation2 + $0x300] sm:$0xff]
    %v179 = vld [vmem:[#allocation2 + $0x308] sm:$0xff]
    %v180 = vld [vmem:[#allocation2 + $0x310] sm:$0xff]
    %v181 = vld [vmem:[#allocation2 + $0x318] sm:$0xff]
    %v182 = vld [vmem:[#allocation2 + $0x320] sm:$0xff]
    %v183 = vld [vmem:[#allocation2 + $0x328] sm:$0xff]
    %v184 = vld [vmem:[#allocation2 + $0x330] sm:$0xff]
    %v185 = vld [vmem:[#allocation2 + $0x338] sm:$0xff]
    %v186 = vld [vmem:[#allocation2 + $0x340] sm:$0xff]
    %v187 = vld [vmem:[#allocation2 + $0x348] sm:$0xff]
    %v188 = vld [vmem:[#allocation2 + $0x350] sm:$0xff]
    %v189 = vld [vmem:[#allocation2 + $0x358] sm:$0xff]
    %v190 = vld [vmem:[#allocation2 + $0x360] sm:$0xff]
    %v191 = vld [vmem:[#allocation2 + $0x368] sm:$0xff]
    %v192 = vld [vmem:[#allocation2 + $0x370] sm:$0xff]
    %v193 = vld [vmem:[#allocation2 + $0x378] sm:$0xff]
    %v194 = vld [vmem:[#allocation2 + $0x380] sm:$0xff]
    %v195 = vld [vmem:[#allocation2 + $0x388] sm:$0xff]
    %v196 = vld [vmem:[#allocation2 + $0x390] sm:$0xff]
    %v197 = vld [vmem:[#allocation2 + $0x398] sm:$0xff]
    %v198 = vld [vmem:[#allocation2 + $0x3a0] sm:$0xff]
    %v199 = vld [vmem:[#allocation2 + $0x3a8] sm:$0xff]
    %v200 = vld [vmem:[#allocation2 + $0x3b0] sm:$0xff]
    %v201 = vld [vmem:[#allocation2 + $0x3b8] sm:$0xff]
    %v202 = vld [vmem:[#allocation2 + $0x3c0] sm:$0xff]
    %v203 = vld [vmem:[#allocation2 + $0x3c8] sm:$0xff]
    %v204 = vld [vmem:[#allocation2 + $0x3d0] sm:$0xff]
    %v205 = vld [vmem:[#allocation2 + $0x3d8] sm:$0xff]
    %v206 = vld [vmem:[#allocation2 + $0x3e0] sm:$0xff]
    %v207 = vld [vmem:[#allocation2 + $0x3e8] sm:$0xff]
    %v208 = vld [vmem:[#allocation2 + $0x3f0] sm:$0xff]
    %v209 = vld [vmem:[#allocation2 + $0x3f8] sm:$0xff]
    %v210 = vld [vmem:[#allocation5] sm:$0xff]
    %v211 = vld [vmem:[#allocation5 + $0x8] sm:$0xff]
    %v212 = vld [vmem:[#allocation5 + $0x10] sm:$0xff]
    %v213 = vld [vmem:[#allocation5 + $0x18] sm:$0xff]
    %v214 = vld [vmem:[#allocation5 + $0x20] sm:$0xff]
    %v215 = vld [vmem:[#allocation5 + $0x28] sm:$0xff]
    %v216 = vld [vmem:[#allocation5 + $0x30] sm:$0xff]
    %v217 = vld [vmem:[#allocation5 + $0x38] sm:$0xff]
    %v218 = vld [vmem:[#allocation5 + $0x40] sm:$0xff]
    %v219 = vld [vmem:[#allocation5 + $0x48] sm:$0xff]
    %v220 = vld [vmem:[#allocation5 + $0x50] sm:$0xff]
    %v221 = vld [vmem:[#allocation5 + $0x58] sm:$0xff]
    %v222 = vld [vmem:[#allocation5 + $0x60] sm:$0xff]
    %v223 = vld [vmem:[#allocation5 + $0x68] sm:$0xff]
    %v224 = vld [vmem:[#allocation5 + $0x70] sm:$0xff]
    %v225 = vld [vmem:[#allocation5 + $0x78] sm:$0xff]
    %v226 = vld [vmem:[#allocation5 + $0x80] sm:$0xff]
    %v227 = vld [vmem:[#allocation5 + $0x88] sm:$0xff]
    %v228 = vld [vmem:[#allocation5 + $0x90] sm:$0xff]
    %v229 = vld [vmem:[#allocation5 + $0x98] sm:$0xff]
    %v230 = vld [vmem:[#allocation5 + $0xa0] sm:$0xff]
    %v231 = vld [vmem:[#allocation5 + $0xa8] sm:$0xff]
    %v232 = vld [vmem:[#allocation5 + $0xb0] sm:$0xff]
    %v233 = vld [vmem:[#allocation5 + $0xb8] sm:$0xff]
    %v234 = vld [vmem:[#allocation5 + $0xc0] sm:$0xff]
    %v235 = vld [vmem:[#allocation5 + $0xc8] sm:$0xff]
    %v236 = vld [vmem:[#allocation5 + $0xd0] sm:$0xff]
    %v237 = vld [vmem:[#allocation5 + $0xd8] sm:$0xff]
    %v238 = vld [vmem:[#allocation5 + $0xe0] sm:$0xff]
    %v239 = vld [vmem:[#allocation5 + $0xe8] sm:$0xff]
    %v240 = vld [vmem:[#allocation5 + $0xf0] sm:$0xff]
    %v241 = vld [vmem:[#allocation5 + $0xf8] sm:$0xff]
    %v242 = vld [vmem:[#allocation5 + $0x100] sm:$0xff]
    %v243 = vld [vmem:[#allocation5 + $0x108] sm:$0xff]
    %v244 = vld [vmem:[#allocation5 + $0x110] sm:$0xff]
    %v245 = vld [vmem:[#allocation5 + $0x118] sm:$0xff]
    %v246 = vld [vmem:[#allocation5 + $0x120] sm:$0xff]
    %v247 = vld [vmem:[#allocation5 + $0x128] sm:$0xff]
    %v248 = vld [vmem:[#allocation5 + $0x130] sm:$0xff]
    %v249 = vld [vmem:[#allocation5 + $0x138] sm:$0xff]
    %v250 = vld [vmem:[#allocation5 + $0x140] sm:$0xff]
    %v251 = vld [vmem:[#allocation5 + $0x148] sm:$0xff]
    %v252 = vld [vmem:[#allocation5 + $0x150] sm:$0xff]
    %v253 = vld [vmem:[#allocation5 + $0x158] sm:$0xff]
    %v254 = vld [vmem:[#allocation5 + $0x160] sm:$0xff]
    %v255 = vld [vmem:[#allocation5 + $0x168] sm:$0xff]
    %v256 = vld [vmem:[#allocation5 + $0x170] sm:$0xff]
    %v257 = vld [vmem:[#allocation5 + $0x178] sm:$0xff]
    %v258 = vld [vmem:[#allocation5 + $0x180] sm:$0xff]
    %v259 = vld [vmem:[#allocation5 + $0x188] sm:$0xff]
    %v260 = vld [vmem:[#allocation5 + $0x190] sm:$0xff]
    %v261 = vld [vmem:[#allocation5 + $0x198] sm:$0xff]
    %v262 = vld [vmem:[#allocation5 + $0x1a0] sm:$0xff]
    %v263 = vld [vmem:[#allocation5 + $0x1a8] sm:$0xff]
    %v264 = vld [vmem:[#allocation5 + $0x1b0] sm:$0xff]
    %v265 = vld [vmem:[#allocation5 + $0x1b8] sm:$0xff]
    %v266 = vld [vmem:[#allocation5 + $0x1c0] sm:$0xff]
    %v267 = vld [vmem:[#allocation5 + $0x1c8] sm:$0xff]
    %v268 = vld [vmem:[#allocation5 + $0x1d0] sm:$0xff]
    %v269 = vld [vmem:[#allocation5 + $0x1d8] sm:$0xff]
    %v270 = vld [vmem:[#allocation5 + $0x1e0] sm:$0xff]
    %v271 = vld [vmem:[#allocation5 + $0x1e8] sm:$0xff]
    %v272 = vld [vmem:[#allocation5 + $0x1f0] sm:$0xff]
    %v273 = vld [vmem:[#allocation5 + $0x1f8] sm:$0xff]
    %v274 = vld [vmem:[%s2] sm:$0x3]
    %v276 = vlaneseq
    %v277 = vshrl.u32 %v276, 7
    %v278 = vsub.s32 0, %v277
    %v279 = vrot.slane %v274, %v278
    %v280 = vlaneseq
    %v281 = vshrl.u32 %v280, 7
    %v282 = vsub.s32 1, %v281
    %v283 = vrot.slane %v274, %v282
    %286 = vmatprep.subr.mxu0 %v241
    %287 = vmatpush1.msra.mxu0 %v240
    %288 = vmatprep.subr.mxu0 %v239
    %289 = vmatpush1.msra.mxu0 %v238
    %290 = vmatprep.subr.mxu0 %v237
    %291 = vmatpush1.msra.mxu0 %v236
    %292 = vmatprep.subr.mxu0 %v235
    %293 = vmatpush1.msra.mxu0 %v234
    %294 = vmatprep.subr.mxu0 %v233
    %295 = vmatpush1.msra.mxu0 %v232
    %296 = vmatprep.subr.mxu0 %v231
    %297 = vmatpush1.msra.mxu0 %v230
    %298 = vmatprep.subr.mxu0 %v229
    %299 = vmatpush1.msra.mxu0 %v228
    %300 = vmatprep.subr.mxu0 %v227
    %301 = vmatpush1.msra.mxu0 %v226
    %302 = vmatprep.subr.mxu0 %v225
    %303 = vmatpush1.msra.mxu0 %v224
    %304 = vmatprep.subr.mxu0 %v223
    %305 = vmatpush1.msra.mxu0 %v222
    %306 = vmatprep.subr.mxu0 %v221
    %307 = vmatpush1.msra.mxu0 %v220
    %308 = vmatprep.subr.mxu0 %v219
    %309 = vmatpush1.msra.mxu0 %v218
    %310 = vmatprep.subr.mxu0 %v217
    %311 = vmatpush1.msra.mxu0 %v216
    %312 = vmatprep.subr.mxu0 %v215
    %313 = vmatpush1.msra.mxu0 %v214
    %314 = vmatprep.subr.mxu0 %v213
    %315 = vmatpush1.msra.mxu0 %v212
    %316 = vmatprep.subr.mxu0 %v211
    %317 = vmatpush1.msra.mxu0 %v210
    %318 = vmatprep.subr.mxu0 %v273
    %319 = vmatpush2.msra.mxu0 %v272
    %320 = vmatprep.subr.mxu0 %v271
    %321 = vmatpush2.msra.mxu0 %v270
    %322 = vmatprep.subr.mxu0 %v269
    %323 = vmatpush2.msra.mxu0 %v268
    %324 = vmatprep.subr.mxu0 %v267
    %325 = vmatpush2.msra.mxu0 %v266
    %326 = vmatprep.subr.mxu0 %v265
    %327 = vmatpush2.msra.mxu0 %v264
    %328 = vmatprep.subr.mxu0 %v263
    %329 = vmatpush2.msra.mxu0 %v262
    %330 = vmatprep.subr.mxu0 %v261
    %331 = vmatpush2.msra.mxu0 %v260
    %332 = vmatprep.subr.mxu0 %v259
    %333 = vmatpush2.msra.mxu0 %v258
    %334 = vmatprep.subr.mxu0 %v257
    %335 = vmatpush2.msra.mxu0 %v256
    %336 = vmatprep.subr.mxu0 %v255
    %337 = vmatpush2.msra.mxu0 %v254
    %338 = vmatprep.subr.mxu0 %v253
    %339 = vmatpush2.msra.mxu0 %v252
    %340 = vmatprep.subr.mxu0 %v251
    %341 = vmatpush2.msra.mxu0 %v250
    %342 = vmatprep.subr.mxu0 %v249
    %343 = vmatpush2.msra.mxu0 %v248
    %344 = vmatprep.subr.mxu0 %v247
    %345 = vmatpush2.msra.mxu0 %v246
    %346 = vmatprep.subr.mxu0 %v245
    %347 = vmatpush2.msra.mxu0 %v244
    %348 = vmatprep.subr.mxu0 %v243
    %349 = vmatpush2.msra.mxu0 %v242
    %350 = vmatprep.mubr.f32.mxu0 %v83
    %351 = vmatmul.mubr.f32.gmra.mxu0 %v82
    %v352 = vpop.f32.mrf.mxu0
    %v353 = vadd.f32 %v279, %v352
    %v354 = vpop.f32.mrf.mxu0
    %v355 = vadd.f32 %v283, %v354
    %356 = vmatprep.mubr.f32.mxu0 %v85
    %357 = vmatmul.mubr.f32.gmra.mxu0 %v84
    %v358 = vpop.f32.mrf.mxu0
    %v359 = vadd.f32 %v279, %v358
    %v360 = vpop.f32.mrf.mxu0
    %v361 = vadd.f32 %v283, %v360
    %362 = vmatprep.mubr.f32.mxu0 %v87
    %363 = vmatmul.mubr.f32.gmra.mxu0 %v86
    %v364 = vpop.f32.mrf.mxu0
    %v365 = vadd.f32 %v279, %v364
    %v366 = vpop.f32.mrf.mxu0
    %v367 = vadd.f32 %v283, %v366
    %368 = vmatprep.mubr.f32.mxu0 %v89
    %369 = vmatmul.mubr.f32.gmra.mxu0 %v88
    %v370 = vpop.f32.mrf.mxu0
    %v371 = vadd.f32 %v279, %v370
    %v372 = vpop.f32.mrf.mxu0
    %v373 = vadd.f32 %v283, %v372
    %374 = vmatprep.mubr.f32.mxu0 %v91
    %375 = vmatmul.mubr.f32.gmra.mxu0 %v90
    %v376 = vpop.f32.mrf.mxu0
    %v377 = vadd.f32 %v279, %v376
    %v378 = vpop.f32.mrf.mxu0
    %v379 = vadd.f32 %v283, %v378
    %380 = vmatprep.mubr.f32.mxu0 %v93
    %381 = vmatmul.mubr.f32.gmra.mxu0 %v92
    %v382 = vpop.f32.mrf.mxu0
    %v383 = vadd.f32 %v279, %v382
    %v384 = vpop.f32.mrf.mxu0
    %v385 = vadd.f32 %v283, %v384
    %386 = vmatprep.mubr.f32.mxu0 %v95
    %387 = vmatmul.mubr.f32.gmra.mxu0 %v94
    %v388 = vpop.f32.mrf.mxu0
    %v389 = vadd.f32 %v279, %v388
    %v390 = vpop.f32.mrf.mxu0
    %v391 = vadd.f32 %v283, %v390
    %392 = vmatprep.mubr.f32.mxu0 %v97
    %393 = vmatmul.mubr.f32.gmra.mxu0 %v96
    %v394 = vpop.f32.mrf.mxu0
    %v395 = vadd.f32 %v279, %v394
    %v396 = vpop.f32.mrf.mxu0
    %v397 = vadd.f32 %v283, %v396
    %398 = vmatprep.mubr.f32.mxu0 %v99
    %399 = vmatmul.mubr.f32.gmra.mxu0 %v98
    %v400 = vpop.f32.mrf.mxu0
    %v401 = vadd.f32 %v279, %v400
    %v402 = vpop.f32.mrf.mxu0
    %v403 = vadd.f32 %v283, %v402
    %404 = vmatprep.mubr.f32.mxu0 %v101
    %405 = vmatmul.mubr.f32.gmra.mxu0 %v100
    %v406 = vpop.f32.mrf.mxu0
    %v407 = vadd.f32 %v279, %v406
    %v408 = vpop.f32.mrf.mxu0
    %v409 = vadd.f32 %v283, %v408
    %410 = vmatprep.mubr.f32.mxu0 %v103
    %411 = vmatmul.mubr.f32.gmra.mxu0 %v102
    %v412 = vpop.f32.mrf.mxu0
    %v413 = vadd.f32 %v279, %v412
    %v414 = vpop.f32.mrf.mxu0
    %v415 = vadd.f32 %v283, %v414
    %416 = vmatprep.mubr.f32.mxu0 %v105
    %417 = vmatmul.mubr.f32.gmra.mxu0 %v104
    %v418 = vpop.f32.mrf.mxu0
    %v419 = vadd.f32 %v279, %v418
    %v420 = vpop.f32.mrf.mxu0
    %v421 = vadd.f32 %v283, %v420
    %422 = vmatprep.mubr.f32.mxu0 %v107
    %423 = vmatmul.mubr.f32.gmra.mxu0 %v106
    %v424 = vpop.f32.mrf.mxu0
    %v425 = vadd.f32 %v279, %v424
    %v426 = vpop.f32.mrf.mxu0
    %v427 = vadd.f32 %v283, %v426
    %428 = vmatprep.mubr.f32.mxu0 %v109
    %429 = vmatmul.mubr.f32.gmra.mxu0 %v108
    %v430 = vpop.f32.mrf.mxu0
    %v431 = vadd.f32 %v279, %v430
    %v432 = vpop.f32.mrf.mxu0
    %v433 = vadd.f32 %v283, %v432
    %434 = vmatprep.mubr.f32.mxu0 %v111
    %435 = vmatmul.mubr.f32.gmra.mxu0 %v110
    %v436 = vpop.f32.mrf.mxu0
    %v437 = vadd.f32 %v279, %v436
    %v438 = vpop.f32.mrf.mxu0
    %v439 = vadd.f32 %v283, %v438
    %440 = vmatprep.mubr.f32.mxu0 %v113
    %441 = vmatmul.mubr.f32.gmra.mxu0 %v112
    %v442 = vpop.f32.mrf.mxu0
    %v443 = vadd.f32 %v279, %v442
    %v444 = vpop.f32.mrf.mxu0
    %v445 = vadd.f32 %v283, %v444
    %446 = vmatprep.mubr.f32.mxu0 %v115
    %447 = vmatmul.mubr.f32.gmra.mxu0 %v114
    %v448 = vpop.f32.mrf.mxu0
    %v449 = vadd.f32 %v279, %v448
    %v450 = vpop.f32.mrf.mxu0
    %v451 = vadd.f32 %v283, %v450
    %452 = vmatprep.mubr.f32.mxu0 %v117
    %453 = vmatmul.mubr.f32.gmra.mxu0 %v116
    %v454 = vpop.f32.mrf.mxu0
    %v455 = vadd.f32 %v279, %v454
    %v456 = vpop.f32.mrf.mxu0
    %v457 = vadd.f32 %v283, %v456
    %458 = vmatprep.mubr.f32.mxu0 %v119
    %459 = vmatmul.mubr.f32.gmra.mxu0 %v118
    %v460 = vpop.f32.mrf.mxu0
    %v461 = vadd.f32 %v279, %v460
    %v462 = vpop.f32.mrf.mxu0
    %v463 = vadd.f32 %v283, %v462
    %464 = vmatprep.mubr.f32.mxu0 %v121
    %465 = vmatmul.mubr.f32.gmra.mxu0 %v120
    %v466 = vpop.f32.mrf.mxu0
    %v467 = vadd.f32 %v279, %v466
    %v468 = vpop.f32.mrf.mxu0
    %v469 = vadd.f32 %v283, %v468
    %470 = vmatprep.mubr.f32.mxu0 %v123
    %471 = vmatmul.mubr.f32.gmra.mxu0 %v122
    %v472 = vpop.f32.mrf.mxu0
    %v473 = vadd.f32 %v279, %v472
    %v474 = vpop.f32.mrf.mxu0
    %v475 = vadd.f32 %v283, %v474
    %476 = vmatprep.mubr.f32.mxu0 %v125
    %477 = vmatmul.mubr.f32.gmra.mxu0 %v124
    %v478 = vpop.f32.mrf.mxu0
    %v479 = vadd.f32 %v279, %v478
    %v480 = vpop.f32.mrf.mxu0
    %v481 = vadd.f32 %v283, %v480
    %482 = vmatprep.mubr.f32.mxu0 %v127
    %483 = vmatmul.mubr.f32.gmra.mxu0 %v126
    %v484 = vpop.f32.mrf.mxu0
    %v485 = vadd.f32 %v279, %v484
    %v486 = vpop.f32.mrf.mxu0
    %v487 = vadd.f32 %v283, %v486
    %488 = vmatprep.mubr.f32.mxu0 %v129
    %489 = vmatmul.mubr.f32.gmra.mxu0 %v128
    %v490 = vpop.f32.mrf.mxu0
    %v491 = vadd.f32 %v279, %v490
    %v492 = vpop.f32.mrf.mxu0
    %v493 = vadd.f32 %v283, %v492
    %494 = vmatprep.mubr.f32.mxu0 %v131
    %495 = vmatmul.mubr.f32.gmra.mxu0 %v130
    %v496 = vpop.f32.mrf.mxu0
    %v497 = vadd.f32 %v279, %v496
    %v498 = vpop.f32.mrf.mxu0
    %v499 = vadd.f32 %v283, %v498
    %500 = vmatprep.mubr.f32.mxu0 %v133
    %501 = vmatmul.mubr.f32.gmra.mxu0 %v132
    %v502 = vpop.f32.mrf.mxu0
    %v503 = vadd.f32 %v279, %v502
    %v504 = vpop.f32.mrf.mxu0
    %v505 = vadd.f32 %v283, %v504
    %506 = vmatprep.mubr.f32.mxu0 %v135
    %507 = vmatmul.mubr.f32.gmra.mxu0 %v134
    %v508 = vpop.f32.mrf.mxu0
    %v509 = vadd.f32 %v279, %v508
    %v510 = vpop.f32.mrf.mxu0
    %v511 = vadd.f32 %v283, %v510
    %512 = vmatprep.mubr.f32.mxu0 %v137
    %513 = vmatmul.mubr.f32.gmra.mxu0 %v136
    %v514 = vpop.f32.mrf.mxu0
    %v515 = vadd.f32 %v279, %v514
    %v516 = vpop.f32.mrf.mxu0
    %v517 = vadd.f32 %v283, %v516
    %518 = vmatprep.mubr.f32.mxu0 %v139
    %519 = vmatmul.mubr.f32.gmra.mxu0 %v138
    %v520 = vpop.f32.mrf.mxu0
    %v521 = vadd.f32 %v279, %v520
    %v522 = vpop.f32.mrf.mxu0
    %v523 = vadd.f32 %v283, %v522
    %524 = vmatprep.mubr.f32.mxu0 %v141
    %525 = vmatmul.mubr.f32.gmra.mxu0 %v140
    %v526 = vpop.f32.mrf.mxu0
    %v527 = vadd.f32 %v279, %v526
    %v528 = vpop.f32.mrf.mxu0
    %v529 = vadd.f32 %v283, %v528
    %530 = vmatprep.mubr.f32.mxu0 %v143
    %531 = vmatmul.mubr.f32.gmra.mxu0 %v142
    %v532 = vpop.f32.mrf.mxu0
    %v533 = vadd.f32 %v279, %v532
    %v534 = vpop.f32.mrf.mxu0
    %v535 = vadd.f32 %v283, %v534
    %536 = vmatprep.mubr.f32.mxu0 %v145
    %537 = vmatmul.mubr.f32.gmra.mxu0 %v144
    %v538 = vpop.f32.mrf.mxu0
    %v539 = vadd.f32 %v279, %v538
    %v540 = vpop.f32.mrf.mxu0
    %v541 = vadd.f32 %v283, %v540
    %542 = vmatprep.mubr.f32.mxu0 %v147
    %543 = vmatmul.mubr.f32.gmra.mxu0 %v146
    %v544 = vpop.f32.mrf.mxu0
    %v545 = vadd.f32 %v279, %v544
    %v546 = vpop.f32.mrf.mxu0
    %v547 = vadd.f32 %v283, %v546
    %548 = vmatprep.mubr.f32.mxu0 %v149
    %549 = vmatmul.mubr.f32.gmra.mxu0 %v148
    %v550 = vpop.f32.mrf.mxu0
    %v551 = vadd.f32 %v279, %v550
    %v552 = vpop.f32.mrf.mxu0
    %v553 = vadd.f32 %v283, %v552
    %554 = vmatprep.mubr.f32.mxu0 %v151
    %555 = vmatmul.mubr.f32.gmra.mxu0 %v150
    %v556 = vpop.f32.mrf.mxu0
    %v557 = vadd.f32 %v279, %v556
    %v558 = vpop.f32.mrf.mxu0
    %v559 = vadd.f32 %v283, %v558
    %560 = vmatprep.mubr.f32.mxu0 %v153
    %561 = vmatmul.mubr.f32.gmra.mxu0 %v152
    %v562 = vpop.f32.mrf.mxu0
    %v563 = vadd.f32 %v279, %v562
    %v564 = vpop.f32.mrf.mxu0
    %v565 = vadd.f32 %v283, %v564
    %566 = vmatprep.mubr.f32.mxu0 %v155
    %567 = vmatmul.mubr.f32.gmra.mxu0 %v154
    %v568 = vpop.f32.mrf.mxu0
    %v569 = vadd.f32 %v279, %v568
    %v570 = vpop.f32.mrf.mxu0
    %v571 = vadd.f32 %v283, %v570
    %572 = vmatprep.mubr.f32.mxu0 %v157
    %573 = vmatmul.mubr.f32.gmra.mxu0 %v156
    %v574 = vpop.f32.mrf.mxu0
    %v575 = vadd.f32 %v279, %v574
    %v576 = vpop.f32.mrf.mxu0
    %v577 = vadd.f32 %v283, %v576
    %578 = vmatprep.mubr.f32.mxu0 %v159
    %579 = vmatmul.mubr.f32.gmra.mxu0 %v158
    %v580 = vpop.f32.mrf.mxu0
    %v581 = vadd.f32 %v279, %v580
    %v582 = vpop.f32.mrf.mxu0
    %v583 = vadd.f32 %v283, %v582
    %584 = vmatprep.mubr.f32.mxu0 %v161
    %585 = vmatmul.mubr.f32.gmra.mxu0 %v160
    %v586 = vpop.f32.mrf.mxu0
    %v587 = vadd.f32 %v279, %v586
    %v588 = vpop.f32.mrf.mxu0
    %v589 = vadd.f32 %v283, %v588
    %590 = vmatprep.mubr.f32.mxu0 %v163
    %591 = vmatmul.mubr.f32.gmra.mxu0 %v162
    %v592 = vpop.f32.mrf.mxu0
    %v593 = vadd.f32 %v279, %v592
    %v594 = vpop.f32.mrf.mxu0
    %v595 = vadd.f32 %v283, %v594
    %596 = vmatprep.mubr.f32.mxu0 %v165
    %597 = vmatmul.mubr.f32.gmra.mxu0 %v164
    %v598 = vpop.f32.mrf.mxu0
    %v599 = vadd.f32 %v279, %v598
    %v600 = vpop.f32.mrf.mxu0
    %v601 = vadd.f32 %v283, %v600
    %602 = vmatprep.mubr.f32.mxu0 %v167
    %603 = vmatmul.mubr.f32.gmra.mxu0 %v166
    %v604 = vpop.f32.mrf.mxu0
    %v605 = vadd.f32 %v279, %v604
    %v606 = vpop.f32.mrf.mxu0
    %v607 = vadd.f32 %v283, %v606
    %608 = vmatprep.mubr.f32.mxu0 %v169
    %609 = vmatmul.mubr.f32.gmra.mxu0 %v168
    %v610 = vpop.f32.mrf.mxu0
    %v611 = vadd.f32 %v279, %v610
    %v612 = vpop.f32.mrf.mxu0
    %v613 = vadd.f32 %v283, %v612
    %614 = vmatprep.mubr.f32.mxu0 %v171
    %615 = vmatmul.mubr.f32.gmra.mxu0 %v170
    %v616 = vpop.f32.mrf.mxu0
    %v617 = vadd.f32 %v279, %v616
    %v618 = vpop.f32.mrf.mxu0
    %v619 = vadd.f32 %v283, %v618
    %620 = vmatprep.mubr.f32.mxu0 %v173
    %621 = vmatmul.mubr.f32.gmra.mxu0 %v172
    %v622 = vpop.f32.mrf.mxu0
    %v623 = vadd.f32 %v279, %v622
    %v624 = vpop.f32.mrf.mxu0
    %v625 = vadd.f32 %v283, %v624
    %626 = vmatprep.mubr.f32.mxu0 %v175
    %627 = vmatmul.mubr.f32.gmra.mxu0 %v174
    %v628 = vpop.f32.mrf.mxu0
    %v629 = vadd.f32 %v279, %v628
    %v630 = vpop.f32.mrf.mxu0
    %v631 = vadd.f32 %v283, %v630
    %632 = vmatprep.mubr.f32.mxu0 %v177
    %633 = vmatmul.mubr.f32.gmra.mxu0 %v176
    %v634 = vpop.f32.mrf.mxu0
    %v635 = vadd.f32 %v279, %v634
    %v636 = vpop.f32.mrf.mxu0
    %v637 = vadd.f32 %v283, %v636
    %638 = vmatprep.mubr.f32.mxu0 %v179
    %639 = vmatmul.mubr.f32.gmra.mxu0 %v178
    %v640 = vpop.f32.mrf.mxu0
    %v641 = vadd.f32 %v279, %v640
    %v642 = vpop.f32.mrf.mxu0
    %v643 = vadd.f32 %v283, %v642
    %644 = vmatprep.mubr.f32.mxu0 %v181
    %645 = vmatmul.mubr.f32.gmra.mxu0 %v180
    %v646 = vpop.f32.mrf.mxu0
    %v647 = vadd.f32 %v279, %v646
    %v648 = vpop.f32.mrf.mxu0
    %v649 = vadd.f32 %v283, %v648
    %650 = vmatprep.mubr.f32.mxu0 %v183
    %651 = vmatmul.mubr.f32.gmra.mxu0 %v182
    %v652 = vpop.f32.mrf.mxu0
    %v653 = vadd.f32 %v279, %v652
    %v654 = vpop.f32.mrf.mxu0
    %v655 = vadd.f32 %v283, %v654
    %656 = vmatprep.mubr.f32.mxu0 %v185
    %657 = vmatmul.mubr.f32.gmra.mxu0 %v184
    %v658 = vpop.f32.mrf.mxu0
    %v659 = vadd.f32 %v279, %v658
    %v660 = vpop.f32.mrf.mxu0
    %v661 = vadd.f32 %v283, %v660
    %662 = vmatprep.mubr.f32.mxu0 %v187
    %663 = vmatmul.mubr.f32.gmra.mxu0 %v186
    %v664 = vpop.f32.mrf.mxu0
    %v665 = vadd.f32 %v279, %v664
    %v666 = vpop.f32.mrf.mxu0
    %v667 = vadd.f32 %v283, %v666
    %668 = vmatprep.mubr.f32.mxu0 %v189
    %669 = vmatmul.mubr.f32.gmra.mxu0 %v188
    %v670 = vpop.f32.mrf.mxu0
    %v671 = vadd.f32 %v279, %v670
    %v672 = vpop.f32.mrf.mxu0
    %v673 = vadd.f32 %v283, %v672
    %674 = vmatprep.mubr.f32.mxu0 %v191
    %675 = vmatmul.mubr.f32.gmra.mxu0 %v190
    %v676 = vpop.f32.mrf.mxu0
    %v677 = vadd.f32 %v279, %v676
    %v678 = vpop.f32.mrf.mxu0
    %v679 = vadd.f32 %v283, %v678
    %680 = vmatprep.mubr.f32.mxu0 %v193
    %681 = vmatmul.mubr.f32.gmra.mxu0 %v192
    %v682 = vpop.f32.mrf.mxu0
    %v683 = vadd.f32 %v279, %v682
    %v684 = vpop.f32.mrf.mxu0
    %v685 = vadd.f32 %v283, %v684
    %686 = vmatprep.mubr.f32.mxu0 %v195
    %687 = vmatmul.mubr.f32.gmra.mxu0 %v194
    %v688 = vpop.f32.mrf.mxu0
    %v689 = vadd.f32 %v279, %v688
    %v690 = vpop.f32.mrf.mxu0
    %v691 = vadd.f32 %v283, %v690
    %692 = vmatprep.mubr.f32.mxu0 %v197
    %693 = vmatmul.mubr.f32.gmra.mxu0 %v196
    %v694 = vpop.f32.mrf.mxu0
    %v695 = vadd.f32 %v279, %v694
    %v696 = vpop.f32.mrf.mxu0
    %v697 = vadd.f32 %v283, %v696
    %698 = vmatprep.mubr.f32.mxu0 %v199
    %699 = vmatmul.mubr.f32.gmra.mxu0 %v198
    %v700 = vpop.f32.mrf.mxu0
    %v701 = vadd.f32 %v279, %v700
    %v702 = vpop.f32.mrf.mxu0
    %v703 = vadd.f32 %v283, %v702
    %704 = vmatprep.mubr.f32.mxu0 %v201
    %705 = vmatmul.mubr.f32.gmra.mxu0 %v200
    %v706 = vpop.f32.mrf.mxu0
    %v707 = vadd.f32 %v279, %v706
    %v708 = vpop.f32.mrf.mxu0
    %v709 = vadd.f32 %v283, %v708
    %710 = vmatprep.mubr.f32.mxu0 %v203
    %711 = vmatmul.mubr.f32.gmra.mxu0 %v202
    %v712 = vpop.f32.mrf.mxu0
    %v713 = vadd.f32 %v279, %v712
    %v714 = vpop.f32.mrf.mxu0
    %v715 = vadd.f32 %v283, %v714
    %716 = vmatprep.mubr.f32.mxu0 %v205
    %717 = vmatmul.mubr.f32.gmra.mxu0 %v204
    %v718 = vpop.f32.mrf.mxu0
    %v719 = vadd.f32 %v279, %v718
    %v720 = vpop.f32.mrf.mxu0
    %v721 = vadd.f32 %v283, %v720
    %722 = vmatprep.mubr.f32.mxu0 %v207
    %723 = vmatmul.mubr.f32.gmra.mxu0 %v206
    %v724 = vpop.f32.mrf.mxu0
    %v725 = vadd.f32 %v279, %v724
    %v726 = vpop.f32.mrf.mxu0
    %v727 = vadd.f32 %v283, %v726
    %728 = vmatprep.mubr.f32.mxu0 %v209
    %729 = vmatmul.mubr.f32.gmra.mxu0 %v208
    %v730 = vpop.f32.mrf.mxu0
    %v731 = vadd.f32 %v279, %v730
    %v732 = vpop.f32.mrf.mxu0
    %v733 = vadd.f32 %v283, %v732
    %734 = vdwg.mxu0
    %v735 = vld [vmem:[#allocation7] sm:$0xff]
    %v736 = vld [vmem:[#allocation7 + $0x8] sm:$0xff]
    %v737 = vld [vmem:[#allocation7 + $0x10] sm:$0xff]
    %v738 = vld [vmem:[#allocation7 + $0x18] sm:$0xff]
    %v739 = vld [vmem:[#allocation7 + $0x20] sm:$0xff]
    %v740 = vld [vmem:[#allocation7 + $0x28] sm:$0xff]
    %v741 = vld [vmem:[#allocation7 + $0x30] sm:$0xff]
    %v742 = vld [vmem:[#allocation7 + $0x38] sm:$0xff]
    %v743 = vld [vmem:[#allocation7 + $0x40] sm:$0xff]
    %v744 = vld [vmem:[#allocation7 + $0x48] sm:$0xff]
    %v745 = vld [vmem:[#allocation7 + $0x50] sm:$0xff]
    %v746 = vld [vmem:[#allocation7 + $0x58] sm:$0xff]
    %v747 = vld [vmem:[#allocation7 + $0x60] sm:$0xff]
    %v748 = vld [vmem:[#allocation7 + $0x68] sm:$0xff]
    %v749 = vld [vmem:[#allocation7 + $0x70] sm:$0xff]
    %v750 = vld [vmem:[#allocation7 + $0x78] sm:$0xff]
    %v751 = vld [vmem:[#allocation7 + $0x80] sm:$0xff]
    %v752 = vld [vmem:[#allocation7 + $0x88] sm:$0xff]
    %v753 = vld [vmem:[#allocation7 + $0x90] sm:$0xff]
    %v754 = vld [vmem:[#allocation7 + $0x98] sm:$0xff]
    %v755 = vld [vmem:[#allocation7 + $0xa0] sm:$0xff]
    %v756 = vld [vmem:[#allocation7 + $0xa8] sm:$0xff]
    %v757 = vld [vmem:[#allocation7 + $0xb0] sm:$0xff]
    %v758 = vld [vmem:[#allocation7 + $0xb8] sm:$0xff]
    %v759 = vld [vmem:[#allocation7 + $0xc0] sm:$0xff]
    %v760 = vld [vmem:[#allocation7 + $0xc8] sm:$0xff]
    %v761 = vld [vmem:[#allocation7 + $0xd0] sm:$0xff]
    %v762 = vld [vmem:[#allocation7 + $0xd8] sm:$0xff]
    %v763 = vld [vmem:[#allocation7 + $0xe0] sm:$0xff]
    %v764 = vld [vmem:[#allocation7 + $0xe8] sm:$0xff]
    %v765 = vld [vmem:[#allocation7 + $0xf0] sm:$0xff]
    %v766 = vld [vmem:[#allocation7 + $0xf8] sm:$0xff]
    %v767 = vld [vmem:[#allocation7 + $0x100] sm:$0xff]
    %v768 = vld [vmem:[#allocation7 + $0x108] sm:$0xff]
    %v769 = vld [vmem:[#allocation7 + $0x110] sm:$0xff]
    %v770 = vld [vmem:[#allocation7 + $0x118] sm:$0xff]
    %v771 = vld [vmem:[#allocation7 + $0x120] sm:$0xff]
    %v772 = vld [vmem:[#allocation7 + $0x128] sm:$0xff]
    %v773 = vld [vmem:[#allocation7 + $0x130] sm:$0xff]
    %v774 = vld [vmem:[#allocation7 + $0x138] sm:$0xff]
    %v775 = vld [vmem:[#allocation7 + $0x140] sm:$0xff]
    %v776 = vld [vmem:[#allocation7 + $0x148] sm:$0xff]
    %v777 = vld [vmem:[#allocation7 + $0x150] sm:$0xff]
    %v778 = vld [vmem:[#allocation7 + $0x158] sm:$0xff]
    %v779 = vld [vmem:[#allocation7 + $0x160] sm:$0xff]
    %v780 = vld [vmem:[#allocation7 + $0x168] sm:$0xff]
    %v781 = vld [vmem:[#allocation7 + $0x170] sm:$0xff]
    %v782 = vld [vmem:[#allocation7 + $0x178] sm:$0xff]
    %v783 = vld [vmem:[#allocation7 + $0x180] sm:$0xff]
    %v784 = vld [vmem:[#allocation7 + $0x188] sm:$0xff]
    %v785 = vld [vmem:[#allocation7 + $0x190] sm:$0xff]
    %v786 = vld [vmem:[#allocation7 + $0x198] sm:$0xff]
    %v787 = vld [vmem:[#allocation7 + $0x1a0] sm:$0xff]
    %v788 = vld [vmem:[#allocation7 + $0x1a8] sm:$0xff]
    %v789 = vld [vmem:[#allocation7 + $0x1b0] sm:$0xff]
    %v790 = vld [vmem:[#allocation7 + $0x1b8] sm:$0xff]
    %v791 = vld [vmem:[#allocation7 + $0x1c0] sm:$0xff]
    %v792 = vld [vmem:[#allocation7 + $0x1c8] sm:$0xff]
    %v793 = vld [vmem:[#allocation7 + $0x1d0] sm:$0xff]
    %v794 = vld [vmem:[#allocation7 + $0x1d8] sm:$0xff]
    %v795 = vld [vmem:[#allocation7 + $0x1e0] sm:$0xff]
    %v796 = vld [vmem:[#allocation7 + $0x1e8] sm:$0xff]
    %v797 = vld [vmem:[#allocation7 + $0x1f0] sm:$0xff]
    %v798 = vld [vmem:[#allocation7 + $0x1f8] sm:$0xff]
    %v799 = vld [vmem:[%s4] sm:$0x3]
    %v801 = vlaneseq
    %v802 = vshrl.u32 %v801, 7
    %v803 = vsub.s32 0, %v802
    %v804 = vrot.slane %v799, %v803
    %v805 = vlaneseq
    %v806 = vshrl.u32 %v805, 7
    %v807 = vsub.s32 1, %v806
    %v808 = vrot.slane %v799, %v807
    %811 = vmatprep.subr.mxu0 %v766
    %812 = vmatpush1.msra.mxu0 %v765
    %813 = vmatprep.subr.mxu0 %v764
    %814 = vmatpush1.msra.mxu0 %v763
    %815 = vmatprep.subr.mxu0 %v762
    %816 = vmatpush1.msra.mxu0 %v761
    %817 = vmatprep.subr.mxu0 %v760
    %818 = vmatpush1.msra.mxu0 %v759
    %819 = vmatprep.subr.mxu0 %v758
    %820 = vmatpush1.msra.mxu0 %v757
    %821 = vmatprep.subr.mxu0 %v756
    %822 = vmatpush1.msra.mxu0 %v755
    %823 = vmatprep.subr.mxu0 %v754
    %824 = vmatpush1.msra.mxu0 %v753
    %825 = vmatprep.subr.mxu0 %v752
    %826 = vmatpush1.msra.mxu0 %v751
    %827 = vmatprep.subr.mxu0 %v750
    %828 = vmatpush1.msra.mxu0 %v749
    %829 = vmatprep.subr.mxu0 %v748
    %830 = vmatpush1.msra.mxu0 %v747
    %831 = vmatprep.subr.mxu0 %v746
    %832 = vmatpush1.msra.mxu0 %v745
    %833 = vmatprep.subr.mxu0 %v744
    %834 = vmatpush1.msra.mxu0 %v743
    %835 = vmatprep.subr.mxu0 %v742
    %836 = vmatpush1.msra.mxu0 %v741
    %837 = vmatprep.subr.mxu0 %v740
    %838 = vmatpush1.msra.mxu0 %v739
    %839 = vmatprep.subr.mxu0 %v738
    %840 = vmatpush1.msra.mxu0 %v737
    %841 = vmatprep.subr.mxu0 %v736
    %842 = vmatpush1.msra.mxu0 %v735
    %843 = vmatprep.subr.mxu0 %v798
    %844 = vmatpush2.msra.mxu0 %v797
    %845 = vmatprep.subr.mxu0 %v796
    %846 = vmatpush2.msra.mxu0 %v795
    %847 = vmatprep.subr.mxu0 %v794
    %848 = vmatpush2.msra.mxu0 %v793
    %849 = vmatprep.subr.mxu0 %v792
    %850 = vmatpush2.msra.mxu0 %v791
    %851 = vmatprep.subr.mxu0 %v790
    %852 = vmatpush2.msra.mxu0 %v789
    %853 = vmatprep.subr.mxu0 %v788
    %854 = vmatpush2.msra.mxu0 %v787
    %855 = vmatprep.subr.mxu0 %v786
    %856 = vmatpush2.msra.mxu0 %v785
    %857 = vmatprep.subr.mxu0 %v784
    %858 = vmatpush2.msra.mxu0 %v783
    %859 = vmatprep.subr.mxu0 %v782
    %860 = vmatpush2.msra.mxu0 %v781
    %861 = vmatprep.subr.mxu0 %v780
    %862 = vmatpush2.msra.mxu0 %v779
    %863 = vmatprep.subr.mxu0 %v778
    %864 = vmatpush2.msra.mxu0 %v777
    %865 = vmatprep.subr.mxu0 %v776
    %866 = vmatpush2.msra.mxu0 %v775
    %867 = vmatprep.subr.mxu0 %v774
    %868 = vmatpush2.msra.mxu0 %v773
    %869 = vmatprep.subr.mxu0 %v772
    %870 = vmatpush2.msra.mxu0 %v771
    %871 = vmatprep.subr.mxu0 %v770
    %872 = vmatpush2.msra.mxu0 %v769
    %873 = vmatprep.subr.mxu0 %v768
    %874 = vmatpush2.msra.mxu0 %v767
    %875 = vmatprep.mubr.f32.mxu0 %v83
    %876 = vmatmul.mubr.f32.gmra.mxu0 %v82
    %v877 = vpop.f32.mrf.mxu0
    %v878 = vadd.f32 %v804, %v877
    %v879 = vpop.f32.mrf.mxu0
    %v880 = vadd.f32 %v808, %v879
    %881 = vmatprep.mubr.f32.mxu0 %v85
    %882 = vmatmul.mubr.f32.gmra.mxu0 %v84
    %v883 = vpop.f32.mrf.mxu0
    %v884 = vadd.f32 %v804, %v883
    %v885 = vpop.f32.mrf.mxu0
    %v886 = vadd.f32 %v808, %v885
    %887 = vmatprep.mubr.f32.mxu0 %v87
    %888 = vmatmul.mubr.f32.gmra.mxu0 %v86
    %v889 = vpop.f32.mrf.mxu0
    %v890 = vadd.f32 %v804, %v889
    %v891 = vpop.f32.mrf.mxu0
    %v892 = vadd.f32 %v808, %v891
    %893 = vmatprep.mubr.f32.mxu0 %v89
    %894 = vmatmul.mubr.f32.gmra.mxu0 %v88
    %v895 = vpop.f32.mrf.mxu0
    %v896 = vadd.f32 %v804, %v895
    %v897 = vpop.f32.mrf.mxu0
    %v898 = vadd.f32 %v808, %v897
    %899 = vmatprep.mubr.f32.mxu0 %v91
    %900 = vmatmul.mubr.f32.gmra.mxu0 %v90
    %v901 = vpop.f32.mrf.mxu0
    %v902 = vadd.f32 %v804, %v901
    %v903 = vpop.f32.mrf.mxu0
    %v904 = vadd.f32 %v808, %v903
    %905 = vmatprep.mubr.f32.mxu0 %v93
    %906 = vmatmul.mubr.f32.gmra.mxu0 %v92
    %v907 = vpop.f32.mrf.mxu0
    %v908 = vadd.f32 %v804, %v907
    %v909 = vpop.f32.mrf.mxu0
    %v910 = vadd.f32 %v808, %v909
    %911 = vmatprep.mubr.f32.mxu0 %v95
    %912 = vmatmul.mubr.f32.gmra.mxu0 %v94
    %v913 = vpop.f32.mrf.mxu0
    %v914 = vadd.f32 %v804, %v913
    %v915 = vpop.f32.mrf.mxu0
    %v916 = vadd.f32 %v808, %v915
    %917 = vmatprep.mubr.f32.mxu0 %v97
    %918 = vmatmul.mubr.f32.gmra.mxu0 %v96
    %v919 = vpop.f32.mrf.mxu0
    %v920 = vadd.f32 %v804, %v919
    %v921 = vpop.f32.mrf.mxu0
    %v922 = vadd.f32 %v808, %v921
    %923 = vmatprep.mubr.f32.mxu0 %v99
    %924 = vmatmul.mubr.f32.gmra.mxu0 %v98
    %v925 = vpop.f32.mrf.mxu0
    %v926 = vadd.f32 %v804, %v925
    %v927 = vpop.f32.mrf.mxu0
    %v928 = vadd.f32 %v808, %v927
    %929 = vmatprep.mubr.f32.mxu0 %v101
    %930 = vmatmul.mubr.f32.gmra.mxu0 %v100
    %v931 = vpop.f32.mrf.mxu0
    %v932 = vadd.f32 %v804, %v931
    %v933 = vpop.f32.mrf.mxu0
    %v934 = vadd.f32 %v808, %v933
    %935 = vmatprep.mubr.f32.mxu0 %v103
    %936 = vmatmul.mubr.f32.gmra.mxu0 %v102
    %v937 = vpop.f32.mrf.mxu0
    %v938 = vadd.f32 %v804, %v937
    %v939 = vpop.f32.mrf.mxu0
    %v940 = vadd.f32 %v808, %v939
    %941 = vmatprep.mubr.f32.mxu0 %v105
    %942 = vmatmul.mubr.f32.gmra.mxu0 %v104
    %v943 = vpop.f32.mrf.mxu0
    %v944 = vadd.f32 %v804, %v943
    %v945 = vpop.f32.mrf.mxu0
    %v946 = vadd.f32 %v808, %v945
    %947 = vmatprep.mubr.f32.mxu0 %v107
    %948 = vmatmul.mubr.f32.gmra.mxu0 %v106
    %v949 = vpop.f32.mrf.mxu0
    %v950 = vadd.f32 %v804, %v949
    %v951 = vpop.f32.mrf.mxu0
    %v952 = vadd.f32 %v808, %v951
    %953 = vmatprep.mubr.f32.mxu0 %v109
    %954 = vmatmul.mubr.f32.gmra.mxu0 %v108
    %v955 = vpop.f32.mrf.mxu0
    %v956 = vadd.f32 %v804, %v955
    %v957 = vpop.f32.mrf.mxu0
    %v958 = vadd.f32 %v808, %v957
    %959 = vmatprep.mubr.f32.mxu0 %v111
    %960 = vmatmul.mubr.f32.gmra.mxu0 %v110
    %v961 = vpop.f32.mrf.mxu0
    %v962 = vadd.f32 %v804, %v961
    %v963 = vpop.f32.mrf.mxu0
    %v964 = vadd.f32 %v808, %v963
    %965 = vmatprep.mubr.f32.mxu0 %v113
    %966 = vmatmul.mubr.f32.gmra.mxu0 %v112
    %v967 = vpop.f32.mrf.mxu0
    %v968 = vadd.f32 %v804, %v967
    %v969 = vpop.f32.mrf.mxu0
    %v970 = vadd.f32 %v808, %v969
    %971 = vmatprep.mubr.f32.mxu0 %v115
    %972 = vmatmul.mubr.f32.gmra.mxu0 %v114
    %v973 = vpop.f32.mrf.mxu0
    %v974 = vadd.f32 %v804, %v973
    %v975 = vpop.f32.mrf.mxu0
    %v976 = vadd.f32 %v808, %v975
    %977 = vmatprep.mubr.f32.mxu0 %v117
    %978 = vmatmul.mubr.f32.gmra.mxu0 %v116
    %v979 = vpop.f32.mrf.mxu0
    %v980 = vadd.f32 %v804, %v979
    %v981 = vpop.f32.mrf.mxu0
    %v982 = vadd.f32 %v808, %v981
    %983 = vmatprep.mubr.f32.mxu0 %v119
    %984 = vmatmul.mubr.f32.gmra.mxu0 %v118
    %v985 = vpop.f32.mrf.mxu0
    %v986 = vadd.f32 %v804, %v985
    %v987 = vpop.f32.mrf.mxu0
    %v988 = vadd.f32 %v808, %v987
    %989 = vmatprep.mubr.f32.mxu0 %v121
    %990 = vmatmul.mubr.f32.gmra.mxu0 %v120
    %v991 = vpop.f32.mrf.mxu0
    %v992 = vadd.f32 %v804, %v991
    %v993 = vpop.f32.mrf.mxu0
    %v994 = vadd.f32 %v808, %v993
    %995 = vmatprep.mubr.f32.mxu0 %v123
    %996 = vmatmul.mubr.f32.gmra.mxu0 %v122
    %v997 = vpop.f32.mrf.mxu0
    %v998 = vadd.f32 %v804, %v997
    %v999 = vpop.f32.mrf.mxu0
    %v1000 = vadd.f32 %v808, %v999
    %1001 = vmatprep.mubr.f32.mxu0 %v125
    %1002 = vmatmul.mubr.f32.gmra.mxu0 %v124
    %v1003 = vpop.f32.mrf.mxu0
    %v1004 = vadd.f32 %v804, %v1003
    %v1005 = vpop.f32.mrf.mxu0
    %v1006 = vadd.f32 %v808, %v1005
    %1007 = vmatprep.mubr.f32.mxu0 %v127
    %1008 = vmatmul.mubr.f32.gmra.mxu0 %v126
    %v1009 = vpop.f32.mrf.mxu0
    %v1010 = vadd.f32 %v804, %v1009
    %v1011 = vpop.f32.mrf.mxu0
    %v1012 = vadd.f32 %v808, %v1011
    %1013 = vmatprep.mubr.f32.mxu0 %v129
    %1014 = vmatmul.mubr.f32.gmra.mxu0 %v128
    %v1015 = vpop.f32.mrf.mxu0
    %v1016 = vadd.f32 %v804, %v1015
    %v1017 = vpop.f32.mrf.mxu0
    %v1018 = vadd.f32 %v808, %v1017
    %1019 = vmatprep.mubr.f32.mxu0 %v131
    %1020 = vmatmul.mubr.f32.gmra.mxu0 %v130
    %v1021 = vpop.f32.mrf.mxu0
    %v1022 = vadd.f32 %v804, %v1021
    %v1023 = vpop.f32.mrf.mxu0
    %v1024 = vadd.f32 %v808, %v1023
    %1025 = vmatprep.mubr.f32.mxu0 %v133
    %1026 = vmatmul.mubr.f32.gmra.mxu0 %v132
    %v1027 = vpop.f32.mrf.mxu0
    %v1028 = vadd.f32 %v804, %v1027
    %v1029 = vpop.f32.mrf.mxu0
    %v1030 = vadd.f32 %v808, %v1029
    %1031 = vmatprep.mubr.f32.mxu0 %v135
    %1032 = vmatmul.mubr.f32.gmra.mxu0 %v134
    %v1033 = vpop.f32.mrf.mxu0
    %v1034 = vadd.f32 %v804, %v1033
    %v1035 = vpop.f32.mrf.mxu0
    %v1036 = vadd.f32 %v808, %v1035
    %1037 = vmatprep.mubr.f32.mxu0 %v137
    %1038 = vmatmul.mubr.f32.gmra.mxu0 %v136
    %v1039 = vpop.f32.mrf.mxu0
    %v1040 = vadd.f32 %v804, %v1039
    %v1041 = vpop.f32.mrf.mxu0
    %v1042 = vadd.f32 %v808, %v1041
    %1043 = vmatprep.mubr.f32.mxu0 %v139
    %1044 = vmatmul.mubr.f32.gmra.mxu0 %v138
    %v1045 = vpop.f32.mrf.mxu0
    %v1046 = vadd.f32 %v804, %v1045
    %v1047 = vpop.f32.mrf.mxu0
    %v1048 = vadd.f32 %v808, %v1047
    %1049 = vmatprep.mubr.f32.mxu0 %v141
    %1050 = vmatmul.mubr.f32.gmra.mxu0 %v140
    %v1051 = vpop.f32.mrf.mxu0
    %v1052 = vadd.f32 %v804, %v1051
    %v1053 = vpop.f32.mrf.mxu0
    %v1054 = vadd.f32 %v808, %v1053
    %1055 = vmatprep.mubr.f32.mxu0 %v143
    %1056 = vmatmul.mubr.f32.gmra.mxu0 %v142
    %v1057 = vpop.f32.mrf.mxu0
    %v1058 = vadd.f32 %v804, %v1057
    %v1059 = vpop.f32.mrf.mxu0
    %v1060 = vadd.f32 %v808, %v1059
    %1061 = vmatprep.mubr.f32.mxu0 %v145
    %1062 = vmatmul.mubr.f32.gmra.mxu0 %v144
    %v1063 = vpop.f32.mrf.mxu0
    %v1064 = vadd.f32 %v804, %v1063
    %v1065 = vpop.f32.mrf.mxu0
    %v1066 = vadd.f32 %v808, %v1065
    %1067 = vmatprep.mubr.f32.mxu0 %v147
    %1068 = vmatmul.mubr.f32.gmra.mxu0 %v146
    %v1069 = vpop.f32.mrf.mxu0
    %v1070 = vadd.f32 %v804, %v1069
    %v1071 = vpop.f32.mrf.mxu0
    %v1072 = vadd.f32 %v808, %v1071
    %1073 = vmatprep.mubr.f32.mxu0 %v149
    %1074 = vmatmul.mubr.f32.gmra.mxu0 %v148
    %v1075 = vpop.f32.mrf.mxu0
    %v1076 = vadd.f32 %v804, %v1075
    %v1077 = vpop.f32.mrf.mxu0
    %v1078 = vadd.f32 %v808, %v1077
    %1079 = vmatprep.mubr.f32.mxu0 %v151
    %1080 = vmatmul.mubr.f32.gmra.mxu0 %v150
    %v1081 = vpop.f32.mrf.mxu0
    %v1082 = vadd.f32 %v804, %v1081
    %v1083 = vpop.f32.mrf.mxu0
    %v1084 = vadd.f32 %v808, %v1083
    %1085 = vmatprep.mubr.f32.mxu0 %v153
    %1086 = vmatmul.mubr.f32.gmra.mxu0 %v152
    %v1087 = vpop.f32.mrf.mxu0
    %v1088 = vadd.f32 %v804, %v1087
    %v1089 = vpop.f32.mrf.mxu0
    %v1090 = vadd.f32 %v808, %v1089
    %1091 = vmatprep.mubr.f32.mxu0 %v155
    %1092 = vmatmul.mubr.f32.gmra.mxu0 %v154
    %v1093 = vpop.f32.mrf.mxu0
    %v1094 = vadd.f32 %v804, %v1093
    %v1095 = vpop.f32.mrf.mxu0
    %v1096 = vadd.f32 %v808, %v1095
    %1097 = vmatprep.mubr.f32.mxu0 %v157
    %1098 = vmatmul.mubr.f32.gmra.mxu0 %v156
    %v1099 = vpop.f32.mrf.mxu0
    %v1100 = vadd.f32 %v804, %v1099
    %v1101 = vpop.f32.mrf.mxu0
    %v1102 = vadd.f32 %v808, %v1101
    %1103 = vmatprep.mubr.f32.mxu0 %v159
    %1104 = vmatmul.mubr.f32.gmra.mxu0 %v158
    %v1105 = vpop.f32.mrf.mxu0
    %v1106 = vadd.f32 %v804, %v1105
    %v1107 = vpop.f32.mrf.mxu0
    %v1108 = vadd.f32 %v808, %v1107
    %1109 = vmatprep.mubr.f32.mxu0 %v161
    %1110 = vmatmul.mubr.f32.gmra.mxu0 %v160
    %v1111 = vpop.f32.mrf.mxu0
    %v1112 = vadd.f32 %v804, %v1111
    %v1113 = vpop.f32.mrf.mxu0
    %v1114 = vadd.f32 %v808, %v1113
    %1115 = vmatprep.mubr.f32.mxu0 %v163
    %1116 = vmatmul.mubr.f32.gmra.mxu0 %v162
    %v1117 = vpop.f32.mrf.mxu0
    %v1118 = vadd.f32 %v804, %v1117
    %v1119 = vpop.f32.mrf.mxu0
    %v1120 = vadd.f32 %v808, %v1119
    %1121 = vmatprep.mubr.f32.mxu0 %v165
    %1122 = vmatmul.mubr.f32.gmra.mxu0 %v164
    %v1123 = vpop.f32.mrf.mxu0
    %v1124 = vadd.f32 %v804, %v1123
    %v1125 = vpop.f32.mrf.mxu0
    %v1126 = vadd.f32 %v808, %v1125
    %1127 = vmatprep.mubr.f32.mxu0 %v167
    %1128 = vmatmul.mubr.f32.gmra.mxu0 %v166
    %v1129 = vpop.f32.mrf.mxu0
    %v1130 = vadd.f32 %v804, %v1129
    %v1131 = vpop.f32.mrf.mxu0
    %v1132 = vadd.f32 %v808, %v1131
    %1133 = vmatprep.mubr.f32.mxu0 %v169
    %1134 = vmatmul.mubr.f32.gmra.mxu0 %v168
    %v1135 = vpop.f32.mrf.mxu0
    %v1136 = vadd.f32 %v804, %v1135
    %v1137 = vpop.f32.mrf.mxu0
    %v1138 = vadd.f32 %v808, %v1137
    %1139 = vmatprep.mubr.f32.mxu0 %v171
    %1140 = vmatmul.mubr.f32.gmra.mxu0 %v170
    %v1141 = vpop.f32.mrf.mxu0
    %v1142 = vadd.f32 %v804, %v1141
    %v1143 = vpop.f32.mrf.mxu0
    %v1144 = vadd.f32 %v808, %v1143
    %1145 = vmatprep.mubr.f32.mxu0 %v173
    %1146 = vmatmul.mubr.f32.gmra.mxu0 %v172
    %v1147 = vpop.f32.mrf.mxu0
    %v1148 = vadd.f32 %v804, %v1147
    %v1149 = vpop.f32.mrf.mxu0
    %v1150 = vadd.f32 %v808, %v1149
    %1151 = vmatprep.mubr.f32.mxu0 %v175
    %1152 = vmatmul.mubr.f32.gmra.mxu0 %v174
    %v1153 = vpop.f32.mrf.mxu0
    %v1154 = vadd.f32 %v804, %v1153
    %v1155 = vpop.f32.mrf.mxu0
    %v1156 = vadd.f32 %v808, %v1155
    %1157 = vmatprep.mubr.f32.mxu0 %v177
    %1158 = vmatmul.mubr.f32.gmra.mxu0 %v176
    %v1159 = vpop.f32.mrf.mxu0
    %v1160 = vadd.f32 %v804, %v1159
    %v1161 = vpop.f32.mrf.mxu0
    %v1162 = vadd.f32 %v808, %v1161
    %1163 = vmatprep.mubr.f32.mxu0 %v179
    %1164 = vmatmul.mubr.f32.gmra.mxu0 %v178
    %v1165 = vpop.f32.mrf.mxu0
    %v1166 = vadd.f32 %v804, %v1165
    %v1167 = vpop.f32.mrf.mxu0
    %v1168 = vadd.f32 %v808, %v1167
    %1169 = vmatprep.mubr.f32.mxu0 %v181
    %1170 = vmatmul.mubr.f32.gmra.mxu0 %v180
    %v1171 = vpop.f32.mrf.mxu0
    %v1172 = vadd.f32 %v804, %v1171
    %v1173 = vpop.f32.mrf.mxu0
    %v1174 = vadd.f32 %v808, %v1173
    %1175 = vmatprep.mubr.f32.mxu0 %v183
    %1176 = vmatmul.mubr.f32.gmra.mxu0 %v182
    %v1177 = vpop.f32.mrf.mxu0
    %v1178 = vadd.f32 %v804, %v1177
    %v1179 = vpop.f32.mrf.mxu0
    %v1180 = vadd.f32 %v808, %v1179
    %1181 = vmatprep.mubr.f32.mxu0 %v185
    %1182 = vmatmul.mubr.f32.gmra.mxu0 %v184
    %v1183 = vpop.f32.mrf.mxu0
    %v1184 = vadd.f32 %v804, %v1183
    %v1185 = vpop.f32.mrf.mxu0
    %v1186 = vadd.f32 %v808, %v1185
    %1187 = vmatprep.mubr.f32.mxu0 %v187
    %1188 = vmatmul.mubr.f32.gmra.mxu0 %v186
    %v1189 = vpop.f32.mrf.mxu0
    %v1190 = vadd.f32 %v804, %v1189
    %v1191 = vpop.f32.mrf.mxu0
    %v1192 = vadd.f32 %v808, %v1191
    %1193 = vmatprep.mubr.f32.mxu0 %v189
    %1194 = vmatmul.mubr.f32.gmra.mxu0 %v188
    %v1195 = vpop.f32.mrf.mxu0
    %v1196 = vadd.f32 %v804, %v1195
    %v1197 = vpop.f32.mrf.mxu0
    %v1198 = vadd.f32 %v808, %v1197
    %1199 = vmatprep.mubr.f32.mxu0 %v191
    %1200 = vmatmul.mubr.f32.gmra.mxu0 %v190
    %v1201 = vpop.f32.mrf.mxu0
    %v1202 = vadd.f32 %v804, %v1201
    %v1203 = vpop.f32.mrf.mxu0
    %v1204 = vadd.f32 %v808, %v1203
    %1205 = vmatprep.mubr.f32.mxu0 %v193
    %1206 = vmatmul.mubr.f32.gmra.mxu0 %v192
    %v1207 = vpop.f32.mrf.mxu0
    %v1208 = vadd.f32 %v804, %v1207
    %v1209 = vpop.f32.mrf.mxu0
    %v1210 = vadd.f32 %v808, %v1209
    %1211 = vmatprep.mubr.f32.mxu0 %v195
    %1212 = vmatmul.mubr.f32.gmra.mxu0 %v194
    %v1213 = vpop.f32.mrf.mxu0
    %v1214 = vadd.f32 %v804, %v1213
    %v1215 = vpop.f32.mrf.mxu0
    %v1216 = vadd.f32 %v808, %v1215
    %1217 = vmatprep.mubr.f32.mxu0 %v197
    %1218 = vmatmul.mubr.f32.gmra.mxu0 %v196
    %v1219 = vpop.f32.mrf.mxu0
    %v1220 = vadd.f32 %v804, %v1219
    %v1221 = vpop.f32.mrf.mxu0
    %v1222 = vadd.f32 %v808, %v1221
    %1223 = vmatprep.mubr.f32.mxu0 %v199
    %1224 = vmatmul.mubr.f32.gmra.mxu0 %v198
    %v1225 = vpop.f32.mrf.mxu0
    %v1226 = vadd.f32 %v804, %v1225
    %v1227 = vpop.f32.mrf.mxu0
    %v1228 = vadd.f32 %v808, %v1227
    %1229 = vmatprep.mubr.f32.mxu0 %v201
    %1230 = vmatmul.mubr.f32.gmra.mxu0 %v200
    %v1231 = vpop.f32.mrf.mxu0
    %v1232 = vadd.f32 %v804, %v1231
    %v1233 = vpop.f32.mrf.mxu0
    %v1234 = vadd.f32 %v808, %v1233
    %1235 = vmatprep.mubr.f32.mxu0 %v203
    %1236 = vmatmul.mubr.f32.gmra.mxu0 %v202
    %v1237 = vpop.f32.mrf.mxu0
    %v1238 = vadd.f32 %v804, %v1237
    %v1239 = vpop.f32.mrf.mxu0
    %v1240 = vadd.f32 %v808, %v1239
    %1241 = vmatprep.mubr.f32.mxu0 %v205
    %1242 = vmatmul.mubr.f32.gmra.mxu0 %v204
    %v1243 = vpop.f32.mrf.mxu0
    %v1244 = vadd.f32 %v804, %v1243
    %v1245 = vpop.f32.mrf.mxu0
    %v1246 = vadd.f32 %v808, %v1245
    %1247 = vmatprep.mubr.f32.mxu0 %v207
    %1248 = vmatmul.mubr.f32.gmra.mxu0 %v206
    %v1249 = vpop.f32.mrf.mxu0
    %v1250 = vadd.f32 %v804, %v1249
    %v1251 = vpop.f32.mrf.mxu0
    %v1252 = vadd.f32 %v808, %v1251
    %1253 = vmatprep.mubr.f32.mxu0 %v209
    %1254 = vmatmul.mubr.f32.gmra.mxu0 %v208
    %v1255 = vpop.f32.mrf.mxu0
    %v1256 = vadd.f32 %v804, %v1255
    %v1257 = vpop.f32.mrf.mxu0
    %v1258 = vadd.f32 %v808, %v1257
    %1259 = vdwg.mxu0
    %v1260 = vsub.f32 0.0, %v878
    %v1261 = vsub.f32 0.0, %v880
    %v1262 = vsub.f32 0.0, %v884
    %v1263 = vsub.f32 0.0, %v886
    %v1264 = vsub.f32 0.0, %v890
    %v1265 = vsub.f32 0.0, %v892
    %v1266 = vsub.f32 0.0, %v896
    %v1267 = vsub.f32 0.0, %v898
    %v1268 = vsub.f32 0.0, %v902
    %v1269 = vsub.f32 0.0, %v904
    %v1270 = vsub.f32 0.0, %v908
    %v1271 = vsub.f32 0.0, %v910
    %v1272 = vsub.f32 0.0, %v914
    %v1273 = vsub.f32 0.0, %v916
    %v1274 = vsub.f32 0.0, %v920
    %v1275 = vsub.f32 0.0, %v922
    %v1276 = vsub.f32 0.0, %v926
    %v1277 = vsub.f32 0.0, %v928
    %v1278 = vsub.f32 0.0, %v932
    %v1279 = vsub.f32 0.0, %v934
    %v1280 = vsub.f32 0.0, %v938
    %v1281 = vsub.f32 0.0, %v940
    %v1282 = vsub.f32 0.0, %v944
    %v1283 = vsub.f32 0.0, %v946
    %v1284 = vsub.f32 0.0, %v950
    %v1285 = vsub.f32 0.0, %v952
    %v1286 = vsub.f32 0.0, %v956
    %v1287 = vsub.f32 0.0, %v958
    %v1288 = vsub.f32 0.0, %v962
    %v1289 = vsub.f32 0.0, %v964
    %v1290 = vsub.f32 0.0, %v968
    %v1291 = vsub.f32 0.0, %v970
    %v1292 = vsub.f32 0.0, %v974
    %v1293 = vsub.f32 0.0, %v976
    %v1294 = vsub.f32 0.0, %v980
    %v1295 = vsub.f32 0.0, %v982
    %v1296 = vsub.f32 0.0, %v986
    %v1297 = vsub.f32 0.0, %v988
    %v1298 = vsub.f32 0.0, %v992
    %v1299 = vsub.f32 0.0, %v994
    %v1300 = vsub.f32 0.0, %v998
    %v1301 = vsub.f32 0.0, %v1000
    %v1302 = vsub.f32 0.0, %v1004
    %v1303 = vsub.f32 0.0, %v1006
    %v1304 = vsub.f32 0.0, %v1010
    %v1305 = vsub.f32 0.0, %v1012
    %v1306 = vsub.f32 0.0, %v1016
    %v1307 = vsub.f32 0.0, %v1018
    %v1308 = vsub.f32 0.0, %v1022
    %v1309 = vsub.f32 0.0, %v1024
    %v1310 = vsub.f32 0.0, %v1028
    %v1311 = vsub.f32 0.0, %v1030
    %v1312 = vsub.f32 0.0, %v1034
    %v1313 = vsub.f32 0.0, %v1036
    %v1314 = vsub.f32 0.0, %v1040
    %v1315 = vsub.f32 0.0, %v1042
    %v1316 = vsub.f32 0.0, %v1046
    %v1317 = vsub.f32 0.0, %v1048
    %v1318 = vsub.f32 0.0, %v1052
    %v1319 = vsub.f32 0.0, %v1054
    %v1320 = vsub.f32 0.0, %v1058
    %v1321 = vsub.f32 0.0, %v1060
    %v1322 = vsub.f32 0.0, %v1064
    %v1323 = vsub.f32 0.0, %v1066
    %v1324 = vsub.f32 0.0, %v1070
    %v1325 = vsub.f32 0.0, %v1072
    %v1326 = vsub.f32 0.0, %v1076
    %v1327 = vsub.f32 0.0, %v1078
    %v1328 = vsub.f32 0.0, %v1082
    %v1329 = vsub.f32 0.0, %v1084
    %v1330 = vsub.f32 0.0, %v1088
    %v1331 = vsub.f32 0.0, %v1090
    %v1332 = vsub.f32 0.0, %v1094
    %v1333 = vsub.f32 0.0, %v1096
    %v1334 = vsub.f32 0.0, %v1100
    %v1335 = vsub.f32 0.0, %v1102
    %v1336 = vsub.f32 0.0, %v1106
    %v1337 = vsub.f32 0.0, %v1108
    %v1338 = vsub.f32 0.0, %v1112
    %v1339 = vsub.f32 0.0, %v1114
    %v1340 = vsub.f32 0.0, %v1118
    %v1341 = vsub.f32 0.0, %v1120
    %v1342 = vsub.f32 0.0, %v1124
    %v1343 = vsub.f32 0.0, %v1126
    %v1344 = vsub.f32 0.0, %v1130
    %v1345 = vsub.f32 0.0, %v1132
    %v1346 = vsub.f32 0.0, %v1136
    %v1347 = vsub.f32 0.0, %v1138
    %v1348 = vsub.f32 0.0, %v1142
    %v1349 = vsub.f32 0.0, %v1144
    %v1350 = vsub.f32 0.0, %v1148
    %v1351 = vsub.f32 0.0, %v1150
    %v1352 = vsub.f32 0.0, %v1154
    %v1353 = vsub.f32 0.0, %v1156
    %v1354 = vsub.f32 0.0, %v1160
    %v1355 = vsub.f32 0.0, %v1162
    %v1356 = vsub.f32 0.0, %v1166
    %v1357 = vsub.f32 0.0, %v1168
    %v1358 = vsub.f32 0.0, %v1172
    %v1359 = vsub.f32 0.0, %v1174
    %v1360 = vsub.f32 0.0, %v1178
    %v1361 = vsub.f32 0.0, %v1180
    %v1362 = vsub.f32 0.0, %v1184
    %v1363 = vsub.f32 0.0, %v1186
    %v1364 = vsub.f32 0.0, %v1190
    %v1365 = vsub.f32 0.0, %v1192
    %v1366 = vsub.f32 0.0, %v1196
    %v1367 = vsub.f32 0.0, %v1198
    %v1368 = vsub.f32 0.0, %v1202
    %v1369 = vsub.f32 0.0, %v1204
    %v1370 = vsub.f32 0.0, %v1208
    %v1371 = vsub.f32 0.0, %v1210
    %v1372 = vsub.f32 0.0, %v1214
    %v1373 = vsub.f32 0.0, %v1216
    %v1374 = vsub.f32 0.0, %v1220
    %v1375 = vsub.f32 0.0, %v1222
    %v1376 = vsub.f32 0.0, %v1226
    %v1377 = vsub.f32 0.0, %v1228
    %v1378 = vsub.f32 0.0, %v1232
    %v1379 = vsub.f32 0.0, %v1234
    %v1380 = vsub.f32 0.0, %v1238
    %v1381 = vsub.f32 0.0, %v1240
    %v1382 = vsub.f32 0.0, %v1244
    %v1383 = vsub.f32 0.0, %v1246
    %v1384 = vsub.f32 0.0, %v1250
    %v1385 = vsub.f32 0.0, %v1252
    %v1386 = vsub.f32 0.0, %v1256
    %v1387 = vsub.f32 0.0, %v1258
    %v1388 = vmul.f32 %v1260, 1.442695
    %v1389 = vpow.pop %v1388
    %v1390 = vmul.f32 %v1261, 1.442695
    %v1391 = vpow.pop %v1390
    %v1392 = vmul.f32 %v1262, 1.442695
    %v1393 = vpow.pop %v1392
    %v1394 = vmul.f32 %v1263, 1.442695
    %v1395 = vpow.pop %v1394
    %v1396 = vmul.f32 %v1264, 1.442695
    %v1397 = vpow.pop %v1396
    %v1398 = vmul.f32 %v1265, 1.442695
    %v1399 = vpow.pop %v1398
    %v1400 = vmul.f32 %v1266, 1.442695
    %v1401 = vpow.pop %v1400
    %v1402 = vmul.f32 %v1267, 1.442695
    %v1403 = vpow.pop %v1402
    %v1404 = vmul.f32 %v1268, 1.442695
    %v1405 = vpow.pop %v1404
    %v1406 = vmul.f32 %v1269, 1.442695
    %v1407 = vpow.pop %v1406
    %v1408 = vmul.f32 %v1270, 1.442695
    %v1409 = vpow.pop %v1408
    %v1410 = vmul.f32 %v1271, 1.442695
    %v1411 = vpow.pop %v1410
    %v1412 = vmul.f32 %v1272, 1.442695
    %v1413 = vpow.pop %v1412
    %v1414 = vmul.f32 %v1273, 1.442695
    %v1415 = vpow.pop %v1414
    %v1416 = vmul.f32 %v1274, 1.442695
    %v1417 = vpow.pop %v1416
    %v1418 = vmul.f32 %v1275, 1.442695
    %v1419 = vpow.pop %v1418
    %v1420 = vmul.f32 %v1276, 1.442695
    %v1421 = vpow.pop %v1420
    %v1422 = vmul.f32 %v1277, 1.442695
    %v1423 = vpow.pop %v1422
    %v1424 = vmul.f32 %v1278, 1.442695
    %v1425 = vpow.pop %v1424
    %v1426 = vmul.f32 %v1279, 1.442695
    %v1427 = vpow.pop %v1426
    %v1428 = vmul.f32 %v1280, 1.442695
    %v1429 = vpow.pop %v1428
    %v1430 = vmul.f32 %v1281, 1.442695
    %v1431 = vpow.pop %v1430
    %v1432 = vmul.f32 %v1282, 1.442695
    %v1433 = vpow.pop %v1432
    %v1434 = vmul.f32 %v1283, 1.442695
    %v1435 = vpow.pop %v1434
    %v1436 = vmul.f32 %v1284, 1.442695
    %v1437 = vpow.pop %v1436
    %v1438 = vmul.f32 %v1285, 1.442695
    %v1439 = vpow.pop %v1438
    %v1440 = vmul.f32 %v1286, 1.442695
    %v1441 = vpow.pop %v1440
    %v1442 = vmul.f32 %v1287, 1.442695
    %v1443 = vpow.pop %v1442
    %v1444 = vmul.f32 %v1288, 1.442695
    %v1445 = vpow.pop %v1444
    %v1446 = vmul.f32 %v1289, 1.442695
    %v1447 = vpow.pop %v1446
    %v1448 = vmul.f32 %v1290, 1.442695
    %v1449 = vpow.pop %v1448
    %v1450 = vmul.f32 %v1291, 1.442695
    %v1451 = vpow.pop %v1450
    %v1452 = vmul.f32 %v1292, 1.442695
    %v1453 = vpow.pop %v1452
    %v1454 = vmul.f32 %v1293, 1.442695
    %v1455 = vpow.pop %v1454
    %v1456 = vmul.f32 %v1294, 1.442695
    %v1457 = vpow.pop %v1456
    %v1458 = vmul.f32 %v1295, 1.442695
    %v1459 = vpow.pop %v1458
    %v1460 = vmul.f32 %v1296, 1.442695
    %v1461 = vpow.pop %v1460
    %v1462 = vmul.f32 %v1297, 1.442695
    %v1463 = vpow.pop %v1462
    %v1464 = vmul.f32 %v1298, 1.442695
    %v1465 = vpow.pop %v1464
    %v1466 = vmul.f32 %v1299, 1.442695
    %v1467 = vpow.pop %v1466
    %v1468 = vmul.f32 %v1300, 1.442695
    %v1469 = vpow.pop %v1468
    %v1470 = vmul.f32 %v1301, 1.442695
    %v1471 = vpow.pop %v1470
    %v1472 = vmul.f32 %v1302, 1.442695
    %v1473 = vpow.pop %v1472
    %v1474 = vmul.f32 %v1303, 1.442695
    %v1475 = vpow.pop %v1474
    %v1476 = vmul.f32 %v1304, 1.442695
    %v1477 = vpow.pop %v1476
    %v1478 = vmul.f32 %v1305, 1.442695
    %v1479 = vpow.pop %v1478
    %v1480 = vmul.f32 %v1306, 1.442695
    %v1481 = vpow.pop %v1480
    %v1482 = vmul.f32 %v1307, 1.442695
    %v1483 = vpow.pop %v1482
    %v1484 = vmul.f32 %v1308, 1.442695
    %v1485 = vpow.pop %v1484
    %v1486 = vmul.f32 %v1309, 1.442695
    %v1487 = vpow.pop %v1486
    %v1488 = vmul.f32 %v1310, 1.442695
    %v1489 = vpow.pop %v1488
    %v1490 = vmul.f32 %v1311, 1.442695
    %v1491 = vpow.pop %v1490
    %v1492 = vmul.f32 %v1312, 1.442695
    %v1493 = vpow.pop %v1492
    %v1494 = vmul.f32 %v1313, 1.442695
    %v1495 = vpow.pop %v1494
    %v1496 = vmul.f32 %v1314, 1.442695
    %v1497 = vpow.pop %v1496
    %v1498 = vmul.f32 %v1315, 1.442695
    %v1499 = vpow.pop %v1498
    %v1500 = vmul.f32 %v1316, 1.442695
    %v1501 = vpow.pop %v1500
    %v1502 = vmul.f32 %v1317, 1.442695
    %v1503 = vpow.pop %v1502
    %v1504 = vmul.f32 %v1318, 1.442695
    %v1505 = vpow.pop %v1504
    %v1506 = vmul.f32 %v1319, 1.442695
    %v1507 = vpow.pop %v1506
    %v1508 = vmul.f32 %v1320, 1.442695
    %v1509 = vpow.pop %v1508
    %v1510 = vmul.f32 %v1321, 1.442695
    %v1511 = vpow.pop %v1510
    %v1512 = vmul.f32 %v1322, 1.442695
    %v1513 = vpow.pop %v1512
    %v1514 = vmul.f32 %v1323, 1.442695
    %v1515 = vpow.pop %v1514
    %v1516 = vmul.f32 %v1324, 1.442695
    %v1517 = vpow.pop %v1516
    %v1518 = vmul.f32 %v1325, 1.442695
    %v1519 = vpow.pop %v1518
    %v1520 = vmul.f32 %v1326, 1.442695
    %v1521 = vpow.pop %v1520
    %v1522 = vmul.f32 %v1327, 1.442695
    %v1523 = vpow.pop %v1522
    %v1524 = vmul.f32 %v1328, 1.442695
    %v1525 = vpow.pop %v1524
    %v1526 = vmul.f32 %v1329, 1.442695
    %v1527 = vpow.pop %v1526
    %v1528 = vmul.f32 %v1330, 1.442695
    %v1529 = vpow.pop %v1528
    %v1530 = vmul.f32 %v1331, 1.442695
    %v1531 = vpow.pop %v1530
    %v1532 = vmul.f32 %v1332, 1.442695
    %v1533 = vpow.pop %v1532
    %v1534 = vmul.f32 %v1333, 1.442695
    %v1535 = vpow.pop %v1534
    %v1536 = vmul.f32 %v1334, 1.442695
    %v1537 = vpow.pop %v1536
    %v1538 = vmul.f32 %v1335, 1.442695
    %v1539 = vpow.pop %v1538
    %v1540 = vmul.f32 %v1336, 1.442695
    %v1541 = vpow.pop %v1540
    %v1542 = vmul.f32 %v1337, 1.442695
    %v1543 = vpow.pop %v1542
    %v1544 = vmul.f32 %v1338, 1.442695
    %v1545 = vpow.pop %v1544
    %v1546 = vmul.f32 %v1339, 1.442695
    %v1547 = vpow.pop %v1546
    %v1548 = vmul.f32 %v1340, 1.442695
    %v1549 = vpow.pop %v1548
    %v1550 = vmul.f32 %v1341, 1.442695
    %v1551 = vpow.pop %v1550
    %v1552 = vmul.f32 %v1342, 1.442695
    %v1553 = vpow.pop %v1552
    %v1554 = vmul.f32 %v1343, 1.442695
    %v1555 = vpow.pop %v1554
    %v1556 = vmul.f32 %v1344, 1.442695
    %v1557 = vpow.pop %v1556
    %v1558 = vmul.f32 %v1345, 1.442695
    %v1559 = vpow.pop %v1558
    %v1560 = vmul.f32 %v1346, 1.442695
    %v1561 = vpow.pop %v1560
    %v1562 = vmul.f32 %v1347, 1.442695
    %v1563 = vpow.pop %v1562
    %v1564 = vmul.f32 %v1348, 1.442695
    %v1565 = vpow.pop %v1564
    %v1566 = vmul.f32 %v1349, 1.442695
    %v1567 = vpow.pop %v1566
    %v1568 = vmul.f32 %v1350, 1.442695
    %v1569 = vpow.pop %v1568
    %v1570 = vmul.f32 %v1351, 1.442695
    %v1571 = vpow.pop %v1570
    %v1572 = vmul.f32 %v1352, 1.442695
    %v1573 = vpow.pop %v1572
    %v1574 = vmul.f32 %v1353, 1.442695
    %v1575 = vpow.pop %v1574
    %v1576 = vmul.f32 %v1354, 1.442695
    %v1577 = vpow.pop %v1576
    %v1578 = vmul.f32 %v1355, 1.442695
    %v1579 = vpow.pop %v1578
    %v1580 = vmul.f32 %v1356, 1.442695
    %v1581 = vpow.pop %v1580
    %v1582 = vmul.f32 %v1357, 1.442695
    %v1583 = vpow.pop %v1582
    %v1584 = vmul.f32 %v1358, 1.442695
    %v1585 = vpow.pop %v1584
    %v1586 = vmul.f32 %v1359, 1.442695
    %v1587 = vpow.pop %v1586
    %v1588 = vmul.f32 %v1360, 1.442695
    %v1589 = vpow.pop %v1588
    %v1590 = vmul.f32 %v1361, 1.442695
    %v1591 = vpow.pop %v1590
    %v1592 = vmul.f32 %v1362, 1.442695
    %v1593 = vpow.pop %v1592
    %v1594 = vmul.f32 %v1363, 1.442695
    %v1595 = vpow.pop %v1594
    %v1596 = vmul.f32 %v1364, 1.442695
    %v1597 = vpow.pop %v1596
    %v1598 = vmul.f32 %v1365, 1.442695
    %v1599 = vpow.pop %v1598
    %v1600 = vmul.f32 %v1366, 1.442695
    %v1601 = vpow.pop %v1600
    %v1602 = vmul.f32 %v1367, 1.442695
    %v1603 = vpow.pop %v1602
    %v1604 = vmul.f32 %v1368, 1.442695
    %v1605 = vpow.pop %v1604
    %v1606 = vmul.f32 %v1369, 1.442695
    %v1607 = vpow.pop %v1606
    %v1608 = vmul.f32 %v1370, 1.442695
    %v1609 = vpow.pop %v1608
    %v1610 = vmul.f32 %v1371, 1.442695
    %v1611 = vpow.pop %v1610
    %v1612 = vmul.f32 %v1372, 1.442695
    %v1613 = vpow.pop %v1612
    %v1614 = vmul.f32 %v1373, 1.442695
    %v1615 = vpow.pop %v1614
    %v1616 = vmul.f32 %v1374, 1.442695
    %v1617 = vpow.pop %v1616
    %v1618 = vmul.f32 %v1375, 1.442695
    %v1619 = vpow.pop %v1618
    %v1620 = vmul.f32 %v1376, 1.442695
    %v1621 = vpow.pop %v1620
    %v1622 = vmul.f32 %v1377, 1.442695
    %v1623 = vpow.pop %v1622
    %v1624 = vmul.f32 %v1378, 1.442695
    %v1625 = vpow.pop %v1624
    %v1626 = vmul.f32 %v1379, 1.442695
    %v1627 = vpow.pop %v1626
    %v1628 = vmul.f32 %v1380, 1.442695
    %v1629 = vpow.pop %v1628
    %v1630 = vmul.f32 %v1381, 1.442695
    %v1631 = vpow.pop %v1630
    %v1632 = vmul.f32 %v1382, 1.442695
    %v1633 = vpow.pop %v1632
    %v1634 = vmul.f32 %v1383, 1.442695
    %v1635 = vpow.pop %v1634
    %v1636 = vmul.f32 %v1384, 1.442695
    %v1637 = vpow.pop %v1636
    %v1638 = vmul.f32 %v1385, 1.442695
    %v1639 = vpow.pop %v1638
    %v1640 = vmul.f32 %v1386, 1.442695
    %v1641 = vpow.pop %v1640
    %v1642 = vmul.f32 %v1387, 1.442695
    %v1643 = vpow.pop %v1642
    %v1644 = vadd.f32 %v1389, 1.0
    %v1645 = vadd.f32 %v1391, 1.0
    %v1646 = vadd.f32 %v1393, 1.0
    %v1647 = vadd.f32 %v1395, 1.0
    %v1648 = vadd.f32 %v1397, 1.0
    %v1649 = vadd.f32 %v1399, 1.0
    %v1650 = vadd.f32 %v1401, 1.0
    %v1651 = vadd.f32 %v1403, 1.0
    %v1652 = vadd.f32 %v1405, 1.0
    %v1653 = vadd.f32 %v1407, 1.0
    %v1654 = vadd.f32 %v1409, 1.0
    %v1655 = vadd.f32 %v1411, 1.0
    %v1656 = vadd.f32 %v1413, 1.0
    %v1657 = vadd.f32 %v1415, 1.0
    %v1658 = vadd.f32 %v1417, 1.0
    %v1659 = vadd.f32 %v1419, 1.0
    %v1660 = vadd.f32 %v1421, 1.0
    %v1661 = vadd.f32 %v1423, 1.0
    %v1662 = vadd.f32 %v1425, 1.0
    %v1663 = vadd.f32 %v1427, 1.0
    %v1664 = vadd.f32 %v1429, 1.0
    %v1665 = vadd.f32 %v1431, 1.0
    %v1666 = vadd.f32 %v1433, 1.0
    %v1667 = vadd.f32 %v1435, 1.0
    %v1668 = vadd.f32 %v1437, 1.0
    %v1669 = vadd.f32 %v1439, 1.0
    %v1670 = vadd.f32 %v1441, 1.0
    %v1671 = vadd.f32 %v1443, 1.0
    %v1672 = vadd.f32 %v1445, 1.0
    %v1673 = vadd.f32 %v1447, 1.0
    %v1674 = vadd.f32 %v1449, 1.0
    %v1675 = vadd.f32 %v1451, 1.0
    %v1676 = vadd.f32 %v1453, 1.0
    %v1677 = vadd.f32 %v1455, 1.0
    %v1678 = vadd.f32 %v1457, 1.0
    %v1679 = vadd.f32 %v1459, 1.0
    %v1680 = vadd.f32 %v1461, 1.0
    %v1681 = vadd.f32 %v1463, 1.0
    %v1682 = vadd.f32 %v1465, 1.0
    %v1683 = vadd.f32 %v1467, 1.0
    %v1684 = vadd.f32 %v1469, 1.0
    %v1685 = vadd.f32 %v1471, 1.0
    %v1686 = vadd.f32 %v1473, 1.0
    %v1687 = vadd.f32 %v1475, 1.0
    %v1688 = vadd.f32 %v1477, 1.0
    %v1689 = vadd.f32 %v1479, 1.0
    %v1690 = vadd.f32 %v1481, 1.0
    %v1691 = vadd.f32 %v1483, 1.0
    %v1692 = vadd.f32 %v1485, 1.0
    %v1693 = vadd.f32 %v1487, 1.0
    %v1694 = vadd.f32 %v1489, 1.0
    %v1695 = vadd.f32 %v1491, 1.0
    %v1696 = vadd.f32 %v1493, 1.0
    %v1697 = vadd.f32 %v1495, 1.0
    %v1698 = vadd.f32 %v1497, 1.0
    %v1699 = vadd.f32 %v1499, 1.0
    %v1700 = vadd.f32 %v1501, 1.0
    %v1701 = vadd.f32 %v1503, 1.0
    %v1702 = vadd.f32 %v1505, 1.0
    %v1703 = vadd.f32 %v1507, 1.0
    %v1704 = vadd.f32 %v1509, 1.0
    %v1705 = vadd.f32 %v1511, 1.0
    %v1706 = vadd.f32 %v1513, 1.0
    %v1707 = vadd.f32 %v1515, 1.0
    %v1708 = vadd.f32 %v1517, 1.0
    %v1709 = vadd.f32 %v1519, 1.0
    %v1710 = vadd.f32 %v1521, 1.0
    %v1711 = vadd.f32 %v1523, 1.0
    %v1712 = vadd.f32 %v1525, 1.0
    %v1713 = vadd.f32 %v1527, 1.0
    %v1714 = vadd.f32 %v1529, 1.0
    %v1715 = vadd.f32 %v1531, 1.0
    %v1716 = vadd.f32 %v1533, 1.0
    %v1717 = vadd.f32 %v1535, 1.0
    %v1718 = vadd.f32 %v1537, 1.0
    %v1719 = vadd.f32 %v1539, 1.0
    %v1720 = vadd.f32 %v1541, 1.0
    %v1721 = vadd.f32 %v1543, 1.0
    %v1722 = vadd.f32 %v1545, 1.0
    %v1723 = vadd.f32 %v1547, 1.0
    %v1724 = vadd.f32 %v1549, 1.0
    %v1725 = vadd.f32 %v1551, 1.0
    %v1726 = vadd.f32 %v1553, 1.0
    %v1727 = vadd.f32 %v1555, 1.0
    %v1728 = vadd.f32 %v1557, 1.0
    %v1729 = vadd.f32 %v1559, 1.0
    %v1730 = vadd.f32 %v1561, 1.0
    %v1731 = vadd.f32 %v1563, 1.0
    %v1732 = vadd.f32 %v1565, 1.0
    %v1733 = vadd.f32 %v1567, 1.0
    %v1734 = vadd.f32 %v1569, 1.0
    %v1735 = vadd.f32 %v1571, 1.0
    %v1736 = vadd.f32 %v1573, 1.0
    %v1737 = vadd.f32 %v1575, 1.0
    %v1738 = vadd.f32 %v1577, 1.0
    %v1739 = vadd.f32 %v1579, 1.0
    %v1740 = vadd.f32 %v1581, 1.0
    %v1741 = vadd.f32 %v1583, 1.0
    %v1742 = vadd.f32 %v1585, 1.0
    %v1743 = vadd.f32 %v1587, 1.0
    %v1744 = vadd.f32 %v1589, 1.0
    %v1745 = vadd.f32 %v1591, 1.0
    %v1746 = vadd.f32 %v1593, 1.0
    %v1747 = vadd.f32 %v1595, 1.0
    %v1748 = vadd.f32 %v1597, 1.0
    %v1749 = vadd.f32 %v1599, 1.0
    %v1750 = vadd.f32 %v1601, 1.0
    %v1751 = vadd.f32 %v1603, 1.0
    %v1752 = vadd.f32 %v1605, 1.0
    %v1753 = vadd.f32 %v1607, 1.0
    %v1754 = vadd.f32 %v1609, 1.0
    %v1755 = vadd.f32 %v1611, 1.0
    %v1756 = vadd.f32 %v1613, 1.0
    %v1757 = vadd.f32 %v1615, 1.0
    %v1758 = vadd.f32 %v1617, 1.0
    %v1759 = vadd.f32 %v1619, 1.0
    %v1760 = vadd.f32 %v1621, 1.0
    %v1761 = vadd.f32 %v1623, 1.0
    %v1762 = vadd.f32 %v1625, 1.0
    %v1763 = vadd.f32 %v1627, 1.0
    %v1764 = vadd.f32 %v1629, 1.0
    %v1765 = vadd.f32 %v1631, 1.0
    %v1766 = vadd.f32 %v1633, 1.0
    %v1767 = vadd.f32 %v1635, 1.0
    %v1768 = vadd.f32 %v1637, 1.0
    %v1769 = vadd.f32 %v1639, 1.0
    %v1770 = vadd.f32 %v1641, 1.0
    %v1771 = vadd.f32 %v1643, 1.0
    %v1772 = vrcp.pop %v1644
    %v1773 = vrcp.pop %v1645
    %v1774 = vrcp.pop %v1646
    %v1775 = vrcp.pop %v1647
    %v1776 = vrcp.pop %v1648
    %v1777 = vrcp.pop %v1649
    %v1778 = vrcp.pop %v1650
    %v1779 = vrcp.pop %v1651
    %v1780 = vrcp.pop %v1652
    %v1781 = vrcp.pop %v1653
    %v1782 = vrcp.pop %v1654
    %v1783 = vrcp.pop %v1655
    %v1784 = vrcp.pop %v1656
    %v1785 = vrcp.pop %v1657
    %v1786 = vrcp.pop %v1658
    %v1787 = vrcp.pop %v1659
    %v1788 = vrcp.pop %v1660
    %v1789 = vrcp.pop %v1661
    %v1790 = vrcp.pop %v1662
    %v1791 = vrcp.pop %v1663
    %v1792 = vrcp.pop %v1664
    %v1793 = vrcp.pop %v1665
    %v1794 = vrcp.pop %v1666
    %v1795 = vrcp.pop %v1667
    %v1796 = vrcp.pop %v1668
    %v1797 = vrcp.pop %v1669
    %v1798 = vrcp.pop %v1670
    %v1799 = vrcp.pop %v1671
    %v1800 = vrcp.pop %v1672
    %v1801 = vrcp.pop %v1673
    %v1802 = vrcp.pop %v1674
    %v1803 = vrcp.pop %v1675
    %v1804 = vrcp.pop %v1676
    %v1805 = vrcp.pop %v1677
    %v1806 = vrcp.pop %v1678
    %v1807 = vrcp.pop %v1679
    %v1808 = vrcp.pop %v1680
    %v1809 = vrcp.pop %v1681
    %v1810 = vrcp.pop %v1682
    %v1811 = vrcp.pop %v1683
    %v1812 = vrcp.pop %v1684
    %v1813 = vrcp.pop %v1685
    %v1814 = vrcp.pop %v1686
    %v1815 = vrcp.pop %v1687
    %v1816 = vrcp.pop %v1688
    %v1817 = vrcp.pop %v1689
    %v1818 = vrcp.pop %v1690
    %v1819 = vrcp.pop %v1691
    %v1820 = vrcp.pop %v1692
    %v1821 = vrcp.pop %v1693
    %v1822 = vrcp.pop %v1694
    %v1823 = vrcp.pop %v1695
    %v1824 = vrcp.pop %v1696
    %v1825 = vrcp.pop %v1697
    %v1826 = vrcp.pop %v1698
    %v1827 = vrcp.pop %v1699
    %v1828 = vrcp.pop %v1700
    %v1829 = vrcp.pop %v1701
    %v1830 = vrcp.pop %v1702
    %v1831 = vrcp.pop %v1703
    %v1832 = vrcp.pop %v1704
    %v1833 = vrcp.pop %v1705
    %v1834 = vrcp.pop %v1706
    %v1835 = vrcp.pop %v1707
    %v1836 = vrcp.pop %v1708
    %v1837 = vrcp.pop %v1709
    %v1838 = vrcp.pop %v1710
    %v1839 = vrcp.pop %v1711
    %v1840 = vrcp.pop %v1712
    %v1841 = vrcp.pop %v1713
    %v1842 = vrcp.pop %v1714
    %v1843 = vrcp.pop %v1715
    %v1844 = vrcp.pop %v1716
    %v1845 = vrcp.pop %v1717
    %v1846 = vrcp.pop %v1718
    %v1847 = vrcp.pop %v1719
    %v1848 = vrcp.pop %v1720
    %v1849 = vrcp.pop %v1721
    %v1850 = vrcp.pop %v1722
    %v1851 = vrcp.pop %v1723
    %v1852 = vrcp.pop %v1724
    %v1853 = vrcp.pop %v1725
    %v1854 = vrcp.pop %v1726
    %v1855 = vrcp.pop %v1727
    %v1856 = vrcp.pop %v1728
    %v1857 = vrcp.pop %v1729
    %v1858 = vrcp.pop %v1730
    %v1859 = vrcp.pop %v1731
    %v1860 = vrcp.pop %v1732
    %v1861 = vrcp.pop %v1733
    %v1862 = vrcp.pop %v1734
    %v1863 = vrcp.pop %v1735
    %v1864 = vrcp.pop %v1736
    %v1865 = vrcp.pop %v1737
    %v1866 = vrcp.pop %v1738
    %v1867 = vrcp.pop %v1739
    %v1868 = vrcp.pop %v1740
    %v1869 = vrcp.pop %v1741
    %v1870 = vrcp.pop %v1742
    %v1871 = vrcp.pop %v1743
    %v1872 = vrcp.pop %v1744
    %v1873 = vrcp.pop %v1745
    %v1874 = vrcp.pop %v1746
    %v1875 = vrcp.pop %v1747
    %v1876 = vrcp.pop %v1748
    %v1877 = vrcp.pop %v1749
    %v1878 = vrcp.pop %v1750
    %v1879 = vrcp.pop %v1751
    %v1880 = vrcp.pop %v1752
    %v1881 = vrcp.pop %v1753
    %v1882 = vrcp.pop %v1754
    %v1883 = vrcp.pop %v1755
    %v1884 = vrcp.pop %v1756
    %v1885 = vrcp.pop %v1757
    %v1886 = vrcp.pop %v1758
    %v1887 = vrcp.pop %v1759
    %v1888 = vrcp.pop %v1760
    %v1889 = vrcp.pop %v1761
    %v1890 = vrcp.pop %v1762
    %v1891 = vrcp.pop %v1763
    %v1892 = vrcp.pop %v1764
    %v1893 = vrcp.pop %v1765
    %v1894 = vrcp.pop %v1766
    %v1895 = vrcp.pop %v1767
    %v1896 = vrcp.pop %v1768
    %v1897 = vrcp.pop %v1769
    %v1898 = vrcp.pop %v1770
    %v1899 = vrcp.pop %v1771
    %v1900 = vmul.f32 %v878, %v1772
    %v1901 = vmul.f32 %v880, %v1773
    %v1902 = vmul.f32 %v884, %v1774
    %v1903 = vmul.f32 %v886, %v1775
    %v1904 = vmul.f32 %v890, %v1776
    %v1905 = vmul.f32 %v892, %v1777
    %v1906 = vmul.f32 %v896, %v1778
    %v1907 = vmul.f32 %v898, %v1779
    %v1908 = vmul.f32 %v902, %v1780
    %v1909 = vmul.f32 %v904, %v1781
    %v1910 = vmul.f32 %v908, %v1782
    %v1911 = vmul.f32 %v910, %v1783
    %v1912 = vmul.f32 %v914, %v1784
    %v1913 = vmul.f32 %v916, %v1785
    %v1914 = vmul.f32 %v920, %v1786
    %v1915 = vmul.f32 %v922, %v1787
    %v1916 = vmul.f32 %v926, %v1788
    %v1917 = vmul.f32 %v928, %v1789
    %v1918 = vmul.f32 %v932, %v1790
    %v1919 = vmul.f32 %v934, %v1791
    %v1920 = vmul.f32 %v938, %v1792
    %v1921 = vmul.f32 %v940, %v1793
    %v1922 = vmul.f32 %v944, %v1794
    %v1923 = vmul.f32 %v946, %v1795
    %v1924 = vmul.f32 %v950, %v1796
    %v1925 = vmul.f32 %v952, %v1797
    %v1926 = vmul.f32 %v956, %v1798
    %v1927 = vmul.f32 %v958, %v1799
    %v1928 = vmul.f32 %v962, %v1800
    %v1929 = vmul.f32 %v964, %v1801
    %v1930 = vmul.f32 %v968, %v1802
    %v1931 = vmul.f32 %v970, %v1803
    %v1932 = vmul.f32 %v974, %v1804
    %v1933 = vmul.f32 %v976, %v1805
    %v1934 = vmul.f32 %v980, %v1806
    %v1935 = vmul.f32 %v982, %v1807
    %v1936 = vmul.f32 %v986, %v1808
    %v1937 = vmul.f32 %v988, %v1809
    %v1938 = vmul.f32 %v992, %v1810
    %v1939 = vmul.f32 %v994, %v1811
    %v1940 = vmul.f32 %v998, %v1812
    %v1941 = vmul.f32 %v1000, %v1813
    %v1942 = vmul.f32 %v1004, %v1814
    %v1943 = vmul.f32 %v1006, %v1815
    %v1944 = vmul.f32 %v1010, %v1816
    %v1945 = vmul.f32 %v1012, %v1817
    %v1946 = vmul.f32 %v1016, %v1818
    %v1947 = vmul.f32 %v1018, %v1819
    %v1948 = vmul.f32 %v1022, %v1820
    %v1949 = vmul.f32 %v1024, %v1821
    %v1950 = vmul.f32 %v1028, %v1822
    %v1951 = vmul.f32 %v1030, %v1823
    %v1952 = vmul.f32 %v1034, %v1824
    %v1953 = vmul.f32 %v1036, %v1825
    %v1954 = vmul.f32 %v1040, %v1826
    %v1955 = vmul.f32 %v1042, %v1827
    %v1956 = vmul.f32 %v1046, %v1828
    %v1957 = vmul.f32 %v1048, %v1829
    %v1958 = vmul.f32 %v1052, %v1830
    %v1959 = vmul.f32 %v1054, %v1831
    %v1960 = vmul.f32 %v1058, %v1832
    %v1961 = vmul.f32 %v1060, %v1833
    %v1962 = vmul.f32 %v1064, %v1834
    %v1963 = vmul.f32 %v1066, %v1835
    %v1964 = vmul.f32 %v1070, %v1836
    %v1965 = vmul.f32 %v1072, %v1837
    %v1966 = vmul.f32 %v1076, %v1838
    %v1967 = vmul.f32 %v1078, %v1839
    %v1968 = vmul.f32 %v1082, %v1840
    %v1969 = vmul.f32 %v1084, %v1841
    %v1970 = vmul.f32 %v1088, %v1842
    %v1971 = vmul.f32 %v1090, %v1843
    %v1972 = vmul.f32 %v1094, %v1844
    %v1973 = vmul.f32 %v1096, %v1845
    %v1974 = vmul.f32 %v1100, %v1846
    %v1975 = vmul.f32 %v1102, %v1847
    %v1976 = vmul.f32 %v1106, %v1848
    %v1977 = vmul.f32 %v1108, %v1849
    %v1978 = vmul.f32 %v1112, %v1850
    %v1979 = vmul.f32 %v1114, %v1851
    %v1980 = vmul.f32 %v1118, %v1852
    %v1981 = vmul.f32 %v1120, %v1853
    %v1982 = vmul.f32 %v1124, %v1854
    %v1983 = vmul.f32 %v1126, %v1855
    %v1984 = vmul.f32 %v1130, %v1856
    %v1985 = vmul.f32 %v1132, %v1857
    %v1986 = vmul.f32 %v1136, %v1858
    %v1987 = vmul.f32 %v1138, %v1859
    %v1988 = vmul.f32 %v1142, %v1860
    %v1989 = vmul.f32 %v1144, %v1861
    %v1990 = vmul.f32 %v1148, %v1862
    %v1991 = vmul.f32 %v1150, %v1863
    %v1992 = vmul.f32 %v1154, %v1864
    %v1993 = vmul.f32 %v1156, %v1865
    %v1994 = vmul.f32 %v1160, %v1866
    %v1995 = vmul.f32 %v1162, %v1867
    %v1996 = vmul.f32 %v1166, %v1868
    %v1997 = vmul.f32 %v1168, %v1869
    %v1998 = vmul.f32 %v1172, %v1870
    %v1999 = vmul.f32 %v1174, %v1871
    %v2000 = vmul.f32 %v1178, %v1872
    %v2001 = vmul.f32 %v1180, %v1873
    %v2002 = vmul.f32 %v1184, %v1874
    %v2003 = vmul.f32 %v1186, %v1875
    %v2004 = vmul.f32 %v1190, %v1876
    %v2005 = vmul.f32 %v1192, %v1877
    %v2006 = vmul.f32 %v1196, %v1878
    %v2007 = vmul.f32 %v1198, %v1879
    %v2008 = vmul.f32 %v1202, %v1880
    %v2009 = vmul.f32 %v1204, %v1881
    %v2010 = vmul.f32 %v1208, %v1882
    %v2011 = vmul.f32 %v1210, %v1883
    %v2012 = vmul.f32 %v1214, %v1884
    %v2013 = vmul.f32 %v1216, %v1885
    %v2014 = vmul.f32 %v1220, %v1886
    %v2015 = vmul.f32 %v1222, %v1887
    %v2016 = vmul.f32 %v1226, %v1888
    %v2017 = vmul.f32 %v1228, %v1889
    %v2018 = vmul.f32 %v1232, %v1890
    %v2019 = vmul.f32 %v1234, %v1891
    %v2020 = vmul.f32 %v1238, %v1892
    %v2021 = vmul.f32 %v1240, %v1893
    %v2022 = vmul.f32 %v1244, %v1894
    %v2023 = vmul.f32 %v1246, %v1895
    %v2024 = vmul.f32 %v1250, %v1896
    %v2025 = vmul.f32 %v1252, %v1897
    %v2026 = vmul.f32 %v1256, %v1898
    %v2027 = vmul.f32 %v1258, %v1899
    %v2028 = vmul.f32 %v353, %v1900
    %v2029 = vmul.f32 %v355, %v1901
    %v2030 = vmul.f32 %v359, %v1902
    %v2031 = vmul.f32 %v361, %v1903
    %v2032 = vmul.f32 %v365, %v1904
    %v2033 = vmul.f32 %v367, %v1905
    %v2034 = vmul.f32 %v371, %v1906
    %v2035 = vmul.f32 %v373, %v1907
    %v2036 = vmul.f32 %v377, %v1908
    %v2037 = vmul.f32 %v379, %v1909
    %v2038 = vmul.f32 %v383, %v1910
    %v2039 = vmul.f32 %v385, %v1911
    %v2040 = vmul.f32 %v389, %v1912
    %v2041 = vmul.f32 %v391, %v1913
    %v2042 = vmul.f32 %v395, %v1914
    %v2043 = vmul.f32 %v397, %v1915
    %v2044 = vmul.f32 %v401, %v1916
    %v2045 = vmul.f32 %v403, %v1917
    %v2046 = vmul.f32 %v407, %v1918
    %v2047 = vmul.f32 %v409, %v1919
    %v2048 = vmul.f32 %v413, %v1920
    %v2049 = vmul.f32 %v415, %v1921
    %v2050 = vmul.f32 %v419, %v1922
    %v2051 = vmul.f32 %v421, %v1923
    %v2052 = vmul.f32 %v425, %v1924
    %v2053 = vmul.f32 %v427, %v1925
    %v2054 = vmul.f32 %v431, %v1926
    %v2055 = vmul.f32 %v433, %v1927
    %v2056 = vmul.f32 %v437, %v1928
    %v2057 = vmul.f32 %v439, %v1929
    %v2058 = vmul.f32 %v443, %v1930
    %v2059 = vmul.f32 %v445, %v1931
    %v2060 = vmul.f32 %v449, %v1932
    %v2061 = vmul.f32 %v451, %v1933
    %v2062 = vmul.f32 %v455, %v1934
    %v2063 = vmul.f32 %v457, %v1935
    %v2064 = vmul.f32 %v461, %v1936
    %v2065 = vmul.f32 %v463, %v1937
    %v2066 = vmul.f32 %v467, %v1938
    %v2067 = vmul.f32 %v469, %v1939
    %v2068 = vmul.f32 %v473, %v1940
    %v2069 = vmul.f32 %v475, %v1941
    %v2070 = vmul.f32 %v479, %v1942
    %v2071 = vmul.f32 %v481, %v1943
    %v2072 = vmul.f32 %v485, %v1944
    %v2073 = vmul.f32 %v487, %v1945
    %v2074 = vmul.f32 %v491, %v1946
    %v2075 = vmul.f32 %v493, %v1947
    %v2076 = vmul.f32 %v497, %v1948
    %v2077 = vmul.f32 %v499, %v1949
    %v2078 = vmul.f32 %v503, %v1950
    %v2079 = vmul.f32 %v505, %v1951
    %v2080 = vmul.f32 %v509, %v1952
    %v2081 = vmul.f32 %v511, %v1953
    %v2082 = vmul.f32 %v515, %v1954
    %v2083 = vmul.f32 %v517, %v1955
    %v2084 = vmul.f32 %v521, %v1956
    %v2085 = vmul.f32 %v523, %v1957
    %v2086 = vmul.f32 %v527, %v1958
    %v2087 = vmul.f32 %v529, %v1959
    %v2088 = vmul.f32 %v533, %v1960
    %v2089 = vmul.f32 %v535, %v1961
    %v2090 = vmul.f32 %v539, %v1962
    %v2091 = vmul.f32 %v541, %v1963
    %v2092 = vmul.f32 %v545, %v1964
    %v2093 = vmul.f32 %v547, %v1965
    %v2094 = vmul.f32 %v551, %v1966
    %v2095 = vmul.f32 %v553, %v1967
    %v2096 = vmul.f32 %v557, %v1968
    %v2097 = vmul.f32 %v559, %v1969
    %v2098 = vmul.f32 %v563, %v1970
    %v2099 = vmul.f32 %v565, %v1971
    %v2100 = vmul.f32 %v569, %v1972
    %v2101 = vmul.f32 %v571, %v1973
    %v2102 = vmul.f32 %v575, %v1974
    %v2103 = vmul.f32 %v577, %v1975
    %v2104 = vmul.f32 %v581, %v1976
    %v2105 = vmul.f32 %v583, %v1977
    %v2106 = vmul.f32 %v587, %v1978
    %v2107 = vmul.f32 %v589, %v1979
    %v2108 = vmul.f32 %v593, %v1980
    %v2109 = vmul.f32 %v595, %v1981
    %v2110 = vmul.f32 %v599, %v1982
    %v2111 = vmul.f32 %v601, %v1983
    %v2112 = vmul.f32 %v605, %v1984
    %v2113 = vmul.f32 %v607, %v1985
    %v2114 = vmul.f32 %v611, %v1986
    %v2115 = vmul.f32 %v613, %v1987
    %v2116 = vmul.f32 %v617, %v1988
    %v2117 = vmul.f32 %v619, %v1989
    %v2118 = vmul.f32 %v623, %v1990
    %v2119 = vmul.f32 %v625, %v1991
    %v2120 = vmul.f32 %v629, %v1992
    %v2121 = vmul.f32 %v631, %v1993
    %v2122 = vmul.f32 %v635, %v1994
    %v2123 = vmul.f32 %v637, %v1995
    %v2124 = vmul.f32 %v641, %v1996
    %v2125 = vmul.f32 %v643, %v1997
    %v2126 = vmul.f32 %v647, %v1998
    %v2127 = vmul.f32 %v649, %v1999
    %v2128 = vmul.f32 %v653, %v2000
    %v2129 = vmul.f32 %v655, %v2001
    %v2130 = vmul.f32 %v659, %v2002
    %v2131 = vmul.f32 %v661, %v2003
    %v2132 = vmul.f32 %v665, %v2004
    %v2133 = vmul.f32 %v667, %v2005
    %v2134 = vmul.f32 %v671, %v2006
    %v2135 = vmul.f32 %v673, %v2007
    %v2136 = vmul.f32 %v677, %v2008
    %v2137 = vmul.f32 %v679, %v2009
    %v2138 = vmul.f32 %v683, %v2010
    %v2139 = vmul.f32 %v685, %v2011
    %v2140 = vmul.f32 %v689, %v2012
    %v2141 = vmul.f32 %v691, %v2013
    %v2142 = vmul.f32 %v695, %v2014
    %v2143 = vmul.f32 %v697, %v2015
    %v2144 = vmul.f32 %v701, %v2016
    %v2145 = vmul.f32 %v703, %v2017
    %v2146 = vmul.f32 %v707, %v2018
    %v2147 = vmul.f32 %v709, %v2019
    %v2148 = vmul.f32 %v713, %v2020
    %v2149 = vmul.f32 %v715, %v2021
    %v2150 = vmul.f32 %v719, %v2022
    %v2151 = vmul.f32 %v721, %v2023
    %v2152 = vmul.f32 %v725, %v2024
    %v2153 = vmul.f32 %v727, %v2025
    %v2154 = vmul.f32 %v731, %v2026
    %v2155 = vmul.f32 %v733, %v2027
    %v2156 = vld [vmem:[#allocation8] sm:$0xff]
    %v2157 = vld [vmem:[#allocation8 + $0x8] sm:$0xff]
    %v2158 = vld [vmem:[#allocation8 + $0x10] sm:$0xff]
    %v2159 = vld [vmem:[#allocation8 + $0x18] sm:$0xff]
    %v2160 = vld [vmem:[#allocation8 + $0x20] sm:$0xff]
    %v2161 = vld [vmem:[#allocation8 + $0x28] sm:$0xff]
    %v2162 = vld [vmem:[#allocation8 + $0x30] sm:$0xff]
    %v2163 = vld [vmem:[#allocation8 + $0x38] sm:$0xff]
    %v2164 = vld [vmem:[#allocation8 + $0x40] sm:$0xff]
    %v2165 = vld [vmem:[#allocation8 + $0x48] sm:$0xff]
    %v2166 = vld [vmem:[#allocation8 + $0x50] sm:$0xff]
    %v2167 = vld [vmem:[#allocation8 + $0x58] sm:$0xff]
    %v2168 = vld [vmem:[#allocation8 + $0x60] sm:$0xff]
    %v2169 = vld [vmem:[#allocation8 + $0x68] sm:$0xff]
    %v2170 = vld [vmem:[#allocation8 + $0x70] sm:$0xff]
    %v2171 = vld [vmem:[#allocation8 + $0x78] sm:$0xff]
    %v2172 = vld [vmem:[#allocation8 + $0x80] sm:$0xff]
    %v2173 = vld [vmem:[#allocation8 + $0x88] sm:$0xff]
    %v2174 = vld [vmem:[#allocation8 + $0x90] sm:$0xff]
    %v2175 = vld [vmem:[#allocation8 + $0x98] sm:$0xff]
    %v2176 = vld [vmem:[#allocation8 + $0xa0] sm:$0xff]
    %v2177 = vld [vmem:[#allocation8 + $0xa8] sm:$0xff]
    %v2178 = vld [vmem:[#allocation8 + $0xb0] sm:$0xff]
    %v2179 = vld [vmem:[#allocation8 + $0xb8] sm:$0xff]
    %v2180 = vld [vmem:[#allocation8 + $0xc0] sm:$0xff]
    %v2181 = vld [vmem:[#allocation8 + $0xc8] sm:$0xff]
    %v2182 = vld [vmem:[#allocation8 + $0xd0] sm:$0xff]
    %v2183 = vld [vmem:[#allocation8 + $0xd8] sm:$0xff]
    %v2184 = vld [vmem:[#allocation8 + $0xe0] sm:$0xff]
    %v2185 = vld [vmem:[#allocation8 + $0xe8] sm:$0xff]
    %v2186 = vld [vmem:[#allocation8 + $0xf0] sm:$0xff]
    %v2187 = vld [vmem:[#allocation8 + $0xf8] sm:$0xff]
    %v2188 = vld [vmem:[#allocation8 + $0x100] sm:$0xff]
    %v2189 = vld [vmem:[#allocation8 + $0x108] sm:$0xff]
    %v2190 = vld [vmem:[#allocation8 + $0x110] sm:$0xff]
    %v2191 = vld [vmem:[#allocation8 + $0x118] sm:$0xff]
    %v2192 = vld [vmem:[#allocation8 + $0x120] sm:$0xff]
    %v2193 = vld [vmem:[#allocation8 + $0x128] sm:$0xff]
    %v2194 = vld [vmem:[#allocation8 + $0x130] sm:$0xff]
    %v2195 = vld [vmem:[#allocation8 + $0x138] sm:$0xff]
    %v2196 = vld [vmem:[#allocation8 + $0x140] sm:$0xff]
    %v2197 = vld [vmem:[#allocation8 + $0x148] sm:$0xff]
    %v2198 = vld [vmem:[#allocation8 + $0x150] sm:$0xff]
    %v2199 = vld [vmem:[#allocation8 + $0x158] sm:$0xff]
    %v2200 = vld [vmem:[#allocation8 + $0x160] sm:$0xff]
    %v2201 = vld [vmem:[#allocation8 + $0x168] sm:$0xff]
    %v2202 = vld [vmem:[#allocation8 + $0x170] sm:$0xff]
    %v2203 = vld [vmem:[#allocation8 + $0x178] sm:$0xff]
    %v2204 = vld [vmem:[#allocation8 + $0x180] sm:$0xff]
    %v2205 = vld [vmem:[#allocation8 + $0x188] sm:$0xff]
    %v2206 = vld [vmem:[#allocation8 + $0x190] sm:$0xff]
    %v2207 = vld [vmem:[#allocation8 + $0x198] sm:$0xff]
    %v2208 = vld [vmem:[#allocation8 + $0x1a0] sm:$0xff]
    %v2209 = vld [vmem:[#allocation8 + $0x1a8] sm:$0xff]
    %v2210 = vld [vmem:[#allocation8 + $0x1b0] sm:$0xff]
    %v2211 = vld [vmem:[#allocation8 + $0x1b8] sm:$0xff]
    %v2212 = vld [vmem:[#allocation8 + $0x1c0] sm:$0xff]
    %v2213 = vld [vmem:[#allocation8 + $0x1c8] sm:$0xff]
    %v2214 = vld [vmem:[#allocation8 + $0x1d0] sm:$0xff]
    %v2215 = vld [vmem:[#allocation8 + $0x1d8] sm:$0xff]
    %v2216 = vld [vmem:[#allocation8 + $0x1e0] sm:$0xff]
    %v2217 = vld [vmem:[#allocation8 + $0x1e8] sm:$0xff]
    %v2218 = vld [vmem:[#allocation8 + $0x1f0] sm:$0xff]
    %v2219 = vld [vmem:[#allocation8 + $0x1f8] sm:$0xff]
    %v2220 = vld [vmem:[%s6] sm:$0x3]
    %v2222 = vlaneseq
    %v2223 = vshrl.u32 %v2222, 7
    %v2224 = vsub.s32 0, %v2223
    %v2225 = vrot.slane %v2220, %v2224
    %v2226 = vlaneseq
    %v2227 = vshrl.u32 %v2226, 7
    %v2228 = vsub.s32 1, %v2227
    %v2229 = vrot.slane %v2220, %v2228
    %2232 = vmatprep.subr.mxu0 %v2187
    %2233 = vmatpush1.msra.mxu0 %v2186
    %2234 = vmatprep.subr.mxu0 %v2185
    %2235 = vmatpush1.msra.mxu0 %v2184
    %2236 = vmatprep.subr.mxu0 %v2183
    %2237 = vmatpush1.msra.mxu0 %v2182
    %2238 = vmatprep.subr.mxu0 %v2181
    %2239 = vmatpush1.msra.mxu0 %v2180
    %2240 = vmatprep.subr.mxu0 %v2179
    %2241 = vmatpush1.msra.mxu0 %v2178
    %2242 = vmatprep.subr.mxu0 %v2177
    %2243 = vmatpush1.msra.mxu0 %v2176
    %2244 = vmatprep.subr.mxu0 %v2175
    %2245 = vmatpush1.msra.mxu0 %v2174
    %2246 = vmatprep.subr.mxu0 %v2173
    %2247 = vmatpush1.msra.mxu0 %v2172
    %2248 = vmatprep.subr.mxu0 %v2171
    %2249 = vmatpush1.msra.mxu0 %v2170
    %2250 = vmatprep.subr.mxu0 %v2169
    %2251 = vmatpush1.msra.mxu0 %v2168
    %2252 = vmatprep.subr.mxu0 %v2167
    %2253 = vmatpush1.msra.mxu0 %v2166
    %2254 = vmatprep.subr.mxu0 %v2165
    %2255 = vmatpush1.msra.mxu0 %v2164
    %2256 = vmatprep.subr.mxu0 %v2163
    %2257 = vmatpush1.msra.mxu0 %v2162
    %2258 = vmatprep.subr.mxu0 %v2161
    %2259 = vmatpush1.msra.mxu0 %v2160
    %2260 = vmatprep.subr.mxu0 %v2159
    %2261 = vmatpush1.msra.mxu0 %v2158
    %2262 = vmatprep.subr.mxu0 %v2157
    %2263 = vmatpush1.msra.mxu0 %v2156
    %2264 = vmatprep.subr.mxu0 %v2219
    %2265 = vmatpush2.msra.mxu0 %v2218
    %2266 = vmatprep.subr.mxu0 %v2217
    %2267 = vmatpush2.msra.mxu0 %v2216
    %2268 = vmatprep.subr.mxu0 %v2215
    %2269 = vmatpush2.msra.mxu0 %v2214
    %2270 = vmatprep.subr.mxu0 %v2213
    %2271 = vmatpush2.msra.mxu0 %v2212
    %2272 = vmatprep.subr.mxu0 %v2211
    %2273 = vmatpush2.msra.mxu0 %v2210
    %2274 = vmatprep.subr.mxu0 %v2209
    %2275 = vmatpush2.msra.mxu0 %v2208
    %2276 = vmatprep.subr.mxu0 %v2207
    %2277 = vmatpush2.msra.mxu0 %v2206
    %2278 = vmatprep.subr.mxu0 %v2205
    %2279 = vmatpush2.msra.mxu0 %v2204
    %2280 = vmatprep.subr.mxu0 %v2203
    %2281 = vmatpush2.msra.mxu0 %v2202
    %2282 = vmatprep.subr.mxu0 %v2201
    %2283 = vmatpush2.msra.mxu0 %v2200
    %2284 = vmatprep.subr.mxu0 %v2199
    %2285 = vmatpush2.msra.mxu0 %v2198
    %2286 = vmatprep.subr.mxu0 %v2197
    %2287 = vmatpush2.msra.mxu0 %v2196
    %2288 = vmatprep.subr.mxu0 %v2195
    %2289 = vmatpush2.msra.mxu0 %v2194
    %2290 = vmatprep.subr.mxu0 %v2193
    %2291 = vmatpush2.msra.mxu0 %v2192
    %2292 = vmatprep.subr.mxu0 %v2191
    %2293 = vmatpush2.msra.mxu0 %v2190
    %2294 = vmatprep.subr.mxu0 %v2189
    %2295 = vmatpush2.msra.mxu0 %v2188
    %2296 = vmatprep.mubr.f32.mxu0 %v2029
    %2297 = vmatmul.mubr.f32.gmra.mxu0 %v2028
    %v2298 = vpop.f32.mrf.mxu0
    %v2299 = vadd.f32 %v2225, %v2298
    %v2300 = vpop.f32.mrf.mxu0
    %v2301 = vadd.f32 %v2229, %v2300
    %2302 = vmatprep.mubr.f32.mxu0 %v2031
    %2303 = vmatmul.mubr.f32.gmra.mxu0 %v2030
    %v2304 = vpop.f32.mrf.mxu0
    %v2305 = vadd.f32 %v2225, %v2304
    %v2306 = vpop.f32.mrf.mxu0
    %v2307 = vadd.f32 %v2229, %v2306
    %2308 = vmatprep.mubr.f32.mxu0 %v2033
    %2309 = vmatmul.mubr.f32.gmra.mxu0 %v2032
    %v2310 = vpop.f32.mrf.mxu0
    %v2311 = vadd.f32 %v2225, %v2310
    %v2312 = vpop.f32.mrf.mxu0
    %v2313 = vadd.f32 %v2229, %v2312
    %2314 = vmatprep.mubr.f32.mxu0 %v2035
    %2315 = vmatmul.mubr.f32.gmra.mxu0 %v2034
    %v2316 = vpop.f32.mrf.mxu0
    %v2317 = vadd.f32 %v2225, %v2316
    %v2318 = vpop.f32.mrf.mxu0
    %v2319 = vadd.f32 %v2229, %v2318
    %2320 = vmatprep.mubr.f32.mxu0 %v2037
    %2321 = vmatmul.mubr.f32.gmra.mxu0 %v2036
    %v2322 = vpop.f32.mrf.mxu0
    %v2323 = vadd.f32 %v2225, %v2322
    %v2324 = vpop.f32.mrf.mxu0
    %v2325 = vadd.f32 %v2229, %v2324
    %2326 = vmatprep.mubr.f32.mxu0 %v2039
    %2327 = vmatmul.mubr.f32.gmra.mxu0 %v2038
    %v2328 = vpop.f32.mrf.mxu0
    %v2329 = vadd.f32 %v2225, %v2328
    %v2330 = vpop.f32.mrf.mxu0
    %v2331 = vadd.f32 %v2229, %v2330
    %2332 = vmatprep.mubr.f32.mxu0 %v2041
    %2333 = vmatmul.mubr.f32.gmra.mxu0 %v2040
    %v2334 = vpop.f32.mrf.mxu0
    %v2335 = vadd.f32 %v2225, %v2334
    %v2336 = vpop.f32.mrf.mxu0
    %v2337 = vadd.f32 %v2229, %v2336
    %2338 = vmatprep.mubr.f32.mxu0 %v2043
    %2339 = vmatmul.mubr.f32.gmra.mxu0 %v2042
    %v2340 = vpop.f32.mrf.mxu0
    %v2341 = vadd.f32 %v2225, %v2340
    %v2342 = vpop.f32.mrf.mxu0
    %v2343 = vadd.f32 %v2229, %v2342
    %2344 = vmatprep.mubr.f32.mxu0 %v2045
    %2345 = vmatmul.mubr.f32.gmra.mxu0 %v2044
    %v2346 = vpop.f32.mrf.mxu0
    %v2347 = vadd.f32 %v2225, %v2346
    %v2348 = vpop.f32.mrf.mxu0
    %v2349 = vadd.f32 %v2229, %v2348
    %2350 = vmatprep.mubr.f32.mxu0 %v2047
    %2351 = vmatmul.mubr.f32.gmra.mxu0 %v2046
    %v2352 = vpop.f32.mrf.mxu0
    %v2353 = vadd.f32 %v2225, %v2352
    %v2354 = vpop.f32.mrf.mxu0
    %v2355 = vadd.f32 %v2229, %v2354
    %2356 = vmatprep.mubr.f32.mxu0 %v2049
    %2357 = vmatmul.mubr.f32.gmra.mxu0 %v2048
    %v2358 = vpop.f32.mrf.mxu0
    %v2359 = vadd.f32 %v2225, %v2358
    %v2360 = vpop.f32.mrf.mxu0
    %v2361 = vadd.f32 %v2229, %v2360
    %2362 = vmatprep.mubr.f32.mxu0 %v2051
    %2363 = vmatmul.mubr.f32.gmra.mxu0 %v2050
    %v2364 = vpop.f32.mrf.mxu0
    %v2365 = vadd.f32 %v2225, %v2364
    %v2366 = vpop.f32.mrf.mxu0
    %v2367 = vadd.f32 %v2229, %v2366
    %2368 = vmatprep.mubr.f32.mxu0 %v2053
    %2369 = vmatmul.mubr.f32.gmra.mxu0 %v2052
    %v2370 = vpop.f32.mrf.mxu0
    %v2371 = vadd.f32 %v2225, %v2370
    %v2372 = vpop.f32.mrf.mxu0
    %v2373 = vadd.f32 %v2229, %v2372
    %2374 = vmatprep.mubr.f32.mxu0 %v2055
    %2375 = vmatmul.mubr.f32.gmra.mxu0 %v2054
    %v2376 = vpop.f32.mrf.mxu0
    %v2377 = vadd.f32 %v2225, %v2376
    %v2378 = vpop.f32.mrf.mxu0
    %v2379 = vadd.f32 %v2229, %v2378
    %2380 = vmatprep.mubr.f32.mxu0 %v2057
    %2381 = vmatmul.mubr.f32.gmra.mxu0 %v2056
    %v2382 = vpop.f32.mrf.mxu0
    %v2383 = vadd.f32 %v2225, %v2382
    %v2384 = vpop.f32.mrf.mxu0
    %v2385 = vadd.f32 %v2229, %v2384
    %2386 = vmatprep.mubr.f32.mxu0 %v2059
    %2387 = vmatmul.mubr.f32.gmra.mxu0 %v2058
    %v2388 = vpop.f32.mrf.mxu0
    %v2389 = vadd.f32 %v2225, %v2388
    %v2390 = vpop.f32.mrf.mxu0
    %v2391 = vadd.f32 %v2229, %v2390
    %2392 = vmatprep.mubr.f32.mxu0 %v2061
    %2393 = vmatmul.mubr.f32.gmra.mxu0 %v2060
    %v2394 = vpop.f32.mrf.mxu0
    %v2395 = vadd.f32 %v2225, %v2394
    %v2396 = vpop.f32.mrf.mxu0
    %v2397 = vadd.f32 %v2229, %v2396
    %2398 = vmatprep.mubr.f32.mxu0 %v2063
    %2399 = vmatmul.mubr.f32.gmra.mxu0 %v2062
    %v2400 = vpop.f32.mrf.mxu0
    %v2401 = vadd.f32 %v2225, %v2400
    %v2402 = vpop.f32.mrf.mxu0
    %v2403 = vadd.f32 %v2229, %v2402
    %2404 = vmatprep.mubr.f32.mxu0 %v2065
    %2405 = vmatmul.mubr.f32.gmra.mxu0 %v2064
    %v2406 = vpop.f32.mrf.mxu0
    %v2407 = vadd.f32 %v2225, %v2406
    %v2408 = vpop.f32.mrf.mxu0
    %v2409 = vadd.f32 %v2229, %v2408
    %2410 = vmatprep.mubr.f32.mxu0 %v2067
    %2411 = vmatmul.mubr.f32.gmra.mxu0 %v2066
    %v2412 = vpop.f32.mrf.mxu0
    %v2413 = vadd.f32 %v2225, %v2412
    %v2414 = vpop.f32.mrf.mxu0
    %v2415 = vadd.f32 %v2229, %v2414
    %2416 = vmatprep.mubr.f32.mxu0 %v2069
    %2417 = vmatmul.mubr.f32.gmra.mxu0 %v2068
    %v2418 = vpop.f32.mrf.mxu0
    %v2419 = vadd.f32 %v2225, %v2418
    %v2420 = vpop.f32.mrf.mxu0
    %v2421 = vadd.f32 %v2229, %v2420
    %2422 = vmatprep.mubr.f32.mxu0 %v2071
    %2423 = vmatmul.mubr.f32.gmra.mxu0 %v2070
    %v2424 = vpop.f32.mrf.mxu0
    %v2425 = vadd.f32 %v2225, %v2424
    %v2426 = vpop.f32.mrf.mxu0
    %v2427 = vadd.f32 %v2229, %v2426
    %2428 = vmatprep.mubr.f32.mxu0 %v2073
    %2429 = vmatmul.mubr.f32.gmra.mxu0 %v2072
    %v2430 = vpop.f32.mrf.mxu0
    %v2431 = vadd.f32 %v2225, %v2430
    %v2432 = vpop.f32.mrf.mxu0
    %v2433 = vadd.f32 %v2229, %v2432
    %2434 = vmatprep.mubr.f32.mxu0 %v2075
    %2435 = vmatmul.mubr.f32.gmra.mxu0 %v2074
    %v2436 = vpop.f32.mrf.mxu0
    %v2437 = vadd.f32 %v2225, %v2436
    %v2438 = vpop.f32.mrf.mxu0
    %v2439 = vadd.f32 %v2229, %v2438
    %2440 = vmatprep.mubr.f32.mxu0 %v2077
    %2441 = vmatmul.mubr.f32.gmra.mxu0 %v2076
    %v2442 = vpop.f32.mrf.mxu0
    %v2443 = vadd.f32 %v2225, %v2442
    %v2444 = vpop.f32.mrf.mxu0
    %v2445 = vadd.f32 %v2229, %v2444
    %2446 = vmatprep.mubr.f32.mxu0 %v2079
    %2447 = vmatmul.mubr.f32.gmra.mxu0 %v2078
    %v2448 = vpop.f32.mrf.mxu0
    %v2449 = vadd.f32 %v2225, %v2448
    %v2450 = vpop.f32.mrf.mxu0
    %v2451 = vadd.f32 %v2229, %v2450
    %2452 = vmatprep.mubr.f32.mxu0 %v2081
    %2453 = vmatmul.mubr.f32.gmra.mxu0 %v2080
    %v2454 = vpop.f32.mrf.mxu0
    %v2455 = vadd.f32 %v2225, %v2454
    %v2456 = vpop.f32.mrf.mxu0
    %v2457 = vadd.f32 %v2229, %v2456
    %2458 = vmatprep.mubr.f32.mxu0 %v2083
    %2459 = vmatmul.mubr.f32.gmra.mxu0 %v2082
    %v2460 = vpop.f32.mrf.mxu0
    %v2461 = vadd.f32 %v2225, %v2460
    %v2462 = vpop.f32.mrf.mxu0
    %v2463 = vadd.f32 %v2229, %v2462
    %2464 = vmatprep.mubr.f32.mxu0 %v2085
    %2465 = vmatmul.mubr.f32.gmra.mxu0 %v2084
    %v2466 = vpop.f32.mrf.mxu0
    %v2467 = vadd.f32 %v2225, %v2466
    %v2468 = vpop.f32.mrf.mxu0
    %v2469 = vadd.f32 %v2229, %v2468
    %2470 = vmatprep.mubr.f32.mxu0 %v2087
    %2471 = vmatmul.mubr.f32.gmra.mxu0 %v2086
    %v2472 = vpop.f32.mrf.mxu0
    %v2473 = vadd.f32 %v2225, %v2472
    %v2474 = vpop.f32.mrf.mxu0
    %v2475 = vadd.f32 %v2229, %v2474
    %2476 = vmatprep.mubr.f32.mxu0 %v2089
    %2477 = vmatmul.mubr.f32.gmra.mxu0 %v2088
    %v2478 = vpop.f32.mrf.mxu0
    %v2479 = vadd.f32 %v2225, %v2478
    %v2480 = vpop.f32.mrf.mxu0
    %v2481 = vadd.f32 %v2229, %v2480
    %2482 = vmatprep.mubr.f32.mxu0 %v2091
    %2483 = vmatmul.mubr.f32.gmra.mxu0 %v2090
    %v2484 = vpop.f32.mrf.mxu0
    %v2485 = vadd.f32 %v2225, %v2484
    %v2486 = vpop.f32.mrf.mxu0
    %v2487 = vadd.f32 %v2229, %v2486
    %2488 = vmatprep.mubr.f32.mxu0 %v2093
    %2489 = vmatmul.mubr.f32.gmra.mxu0 %v2092
    %v2490 = vpop.f32.mrf.mxu0
    %v2491 = vadd.f32 %v2225, %v2490
    %v2492 = vpop.f32.mrf.mxu0
    %v2493 = vadd.f32 %v2229, %v2492
    %2494 = vmatprep.mubr.f32.mxu0 %v2095
    %2495 = vmatmul.mubr.f32.gmra.mxu0 %v2094
    %v2496 = vpop.f32.mrf.mxu0
    %v2497 = vadd.f32 %v2225, %v2496
    %v2498 = vpop.f32.mrf.mxu0
    %v2499 = vadd.f32 %v2229, %v2498
    %2500 = vmatprep.mubr.f32.mxu0 %v2097
    %2501 = vmatmul.mubr.f32.gmra.mxu0 %v2096
    %v2502 = vpop.f32.mrf.mxu0
    %v2503 = vadd.f32 %v2225, %v2502
    %v2504 = vpop.f32.mrf.mxu0
    %v2505 = vadd.f32 %v2229, %v2504
    %2506 = vmatprep.mubr.f32.mxu0 %v2099
    %2507 = vmatmul.mubr.f32.gmra.mxu0 %v2098
    %v2508 = vpop.f32.mrf.mxu0
    %v2509 = vadd.f32 %v2225, %v2508
    %v2510 = vpop.f32.mrf.mxu0
    %v2511 = vadd.f32 %v2229, %v2510
    %2512 = vmatprep.mubr.f32.mxu0 %v2101
    %2513 = vmatmul.mubr.f32.gmra.mxu0 %v2100
    %v2514 = vpop.f32.mrf.mxu0
    %v2515 = vadd.f32 %v2225, %v2514
    %v2516 = vpop.f32.mrf.mxu0
    %v2517 = vadd.f32 %v2229, %v2516
    %2518 = vmatprep.mubr.f32.mxu0 %v2103
    %2519 = vmatmul.mubr.f32.gmra.mxu0 %v2102
    %v2520 = vpop.f32.mrf.mxu0
    %v2521 = vadd.f32 %v2225, %v2520
    %v2522 = vpop.f32.mrf.mxu0
    %v2523 = vadd.f32 %v2229, %v2522
    %2524 = vmatprep.mubr.f32.mxu0 %v2105
    %2525 = vmatmul.mubr.f32.gmra.mxu0 %v2104
    %v2526 = vpop.f32.mrf.mxu0
    %v2527 = vadd.f32 %v2225, %v2526
    %v2528 = vpop.f32.mrf.mxu0
    %v2529 = vadd.f32 %v2229, %v2528
    %2530 = vmatprep.mubr.f32.mxu0 %v2107
    %2531 = vmatmul.mubr.f32.gmra.mxu0 %v2106
    %v2532 = vpop.f32.mrf.mxu0
    %v2533 = vadd.f32 %v2225, %v2532
    %v2534 = vpop.f32.mrf.mxu0
    %v2535 = vadd.f32 %v2229, %v2534
    %2536 = vmatprep.mubr.f32.mxu0 %v2109
    %2537 = vmatmul.mubr.f32.gmra.mxu0 %v2108
    %v2538 = vpop.f32.mrf.mxu0
    %v2539 = vadd.f32 %v2225, %v2538
    %v2540 = vpop.f32.mrf.mxu0
    %v2541 = vadd.f32 %v2229, %v2540
    %2542 = vmatprep.mubr.f32.mxu0 %v2111
    %2543 = vmatmul.mubr.f32.gmra.mxu0 %v2110
    %v2544 = vpop.f32.mrf.mxu0
    %v2545 = vadd.f32 %v2225, %v2544
    %v2546 = vpop.f32.mrf.mxu0
    %v2547 = vadd.f32 %v2229, %v2546
    %2548 = vmatprep.mubr.f32.mxu0 %v2113
    %2549 = vmatmul.mubr.f32.gmra.mxu0 %v2112
    %v2550 = vpop.f32.mrf.mxu0
    %v2551 = vadd.f32 %v2225, %v2550
    %v2552 = vpop.f32.mrf.mxu0
    %v2553 = vadd.f32 %v2229, %v2552
    %2554 = vmatprep.mubr.f32.mxu0 %v2115
    %2555 = vmatmul.mubr.f32.gmra.mxu0 %v2114
    %v2556 = vpop.f32.mrf.mxu0
    %v2557 = vadd.f32 %v2225, %v2556
    %v2558 = vpop.f32.mrf.mxu0
    %v2559 = vadd.f32 %v2229, %v2558
    %2560 = vmatprep.mubr.f32.mxu0 %v2117
    %2561 = vmatmul.mubr.f32.gmra.mxu0 %v2116
    %v2562 = vpop.f32.mrf.mxu0
    %v2563 = vadd.f32 %v2225, %v2562
    %v2564 = vpop.f32.mrf.mxu0
    %v2565 = vadd.f32 %v2229, %v2564
    %2566 = vmatprep.mubr.f32.mxu0 %v2119
    %2567 = vmatmul.mubr.f32.gmra.mxu0 %v2118
    %v2568 = vpop.f32.mrf.mxu0
    %v2569 = vadd.f32 %v2225, %v2568
    %v2570 = vpop.f32.mrf.mxu0
    %v2571 = vadd.f32 %v2229, %v2570
    %2572 = vmatprep.mubr.f32.mxu0 %v2121
    %2573 = vmatmul.mubr.f32.gmra.mxu0 %v2120
    %v2574 = vpop.f32.mrf.mxu0
    %v2575 = vadd.f32 %v2225, %v2574
    %v2576 = vpop.f32.mrf.mxu0
    %v2577 = vadd.f32 %v2229, %v2576
    %2578 = vmatprep.mubr.f32.mxu0 %v2123
    %2579 = vmatmul.mubr.f32.gmra.mxu0 %v2122
    %v2580 = vpop.f32.mrf.mxu0
    %v2581 = vadd.f32 %v2225, %v2580
    %v2582 = vpop.f32.mrf.mxu0
    %v2583 = vadd.f32 %v2229, %v2582
    %2584 = vmatprep.mubr.f32.mxu0 %v2125
    %2585 = vmatmul.mubr.f32.gmra.mxu0 %v2124
    %v2586 = vpop.f32.mrf.mxu0
    %v2587 = vadd.f32 %v2225, %v2586
    %v2588 = vpop.f32.mrf.mxu0
    %v2589 = vadd.f32 %v2229, %v2588
    %2590 = vmatprep.mubr.f32.mxu0 %v2127
    %2591 = vmatmul.mubr.f32.gmra.mxu0 %v2126
    %v2592 = vpop.f32.mrf.mxu0
    %v2593 = vadd.f32 %v2225, %v2592
    %v2594 = vpop.f32.mrf.mxu0
    %v2595 = vadd.f32 %v2229, %v2594
    %2596 = vmatprep.mubr.f32.mxu0 %v2129
    %2597 = vmatmul.mubr.f32.gmra.mxu0 %v2128
    %v2598 = vpop.f32.mrf.mxu0
    %v2599 = vadd.f32 %v2225, %v2598
    %v2600 = vpop.f32.mrf.mxu0
    %v2601 = vadd.f32 %v2229, %v2600
    %2602 = vmatprep.mubr.f32.mxu0 %v2131
    %2603 = vmatmul.mubr.f32.gmra.mxu0 %v2130
    %v2604 = vpop.f32.mrf.mxu0
    %v2605 = vadd.f32 %v2225, %v2604
    %v2606 = vpop.f32.mrf.mxu0
    %v2607 = vadd.f32 %v2229, %v2606
    %2608 = vmatprep.mubr.f32.mxu0 %v2133
    %2609 = vmatmul.mubr.f32.gmra.mxu0 %v2132
    %v2610 = vpop.f32.mrf.mxu0
    %v2611 = vadd.f32 %v2225, %v2610
    %v2612 = vpop.f32.mrf.mxu0
    %v2613 = vadd.f32 %v2229, %v2612
    %2614 = vmatprep.mubr.f32.mxu0 %v2135
    %2615 = vmatmul.mubr.f32.gmra.mxu0 %v2134
    %v2616 = vpop.f32.mrf.mxu0
    %v2617 = vadd.f32 %v2225, %v2616
    %v2618 = vpop.f32.mrf.mxu0
    %v2619 = vadd.f32 %v2229, %v2618
    %2620 = vmatprep.mubr.f32.mxu0 %v2137
    %2621 = vmatmul.mubr.f32.gmra.mxu0 %v2136
    %v2622 = vpop.f32.mrf.mxu0
    %v2623 = vadd.f32 %v2225, %v2622
    %v2624 = vpop.f32.mrf.mxu0
    %v2625 = vadd.f32 %v2229, %v2624
    %2626 = vmatprep.mubr.f32.mxu0 %v2139
    %2627 = vmatmul.mubr.f32.gmra.mxu0 %v2138
    %v2628 = vpop.f32.mrf.mxu0
    %v2629 = vadd.f32 %v2225, %v2628
    %v2630 = vpop.f32.mrf.mxu0
    %v2631 = vadd.f32 %v2229, %v2630
    %2632 = vmatprep.mubr.f32.mxu0 %v2141
    %2633 = vmatmul.mubr.f32.gmra.mxu0 %v2140
    %v2634 = vpop.f32.mrf.mxu0
    %v2635 = vadd.f32 %v2225, %v2634
    %v2636 = vpop.f32.mrf.mxu0
    %v2637 = vadd.f32 %v2229, %v2636
    %2638 = vmatprep.mubr.f32.mxu0 %v2143
    %2639 = vmatmul.mubr.f32.gmra.mxu0 %v2142
    %v2640 = vpop.f32.mrf.mxu0
    %v2641 = vadd.f32 %v2225, %v2640
    %v2642 = vpop.f32.mrf.mxu0
    %v2643 = vadd.f32 %v2229, %v2642
    %2644 = vmatprep.mubr.f32.mxu0 %v2145
    %2645 = vmatmul.mubr.f32.gmra.mxu0 %v2144
    %v2646 = vpop.f32.mrf.mxu0
    %v2647 = vadd.f32 %v2225, %v2646
    %v2648 = vpop.f32.mrf.mxu0
    %v2649 = vadd.f32 %v2229, %v2648
    %2650 = vmatprep.mubr.f32.mxu0 %v2147
    %2651 = vmatmul.mubr.f32.gmra.mxu0 %v2146
    %v2652 = vpop.f32.mrf.mxu0
    %v2653 = vadd.f32 %v2225, %v2652
    %v2654 = vpop.f32.mrf.mxu0
    %v2655 = vadd.f32 %v2229, %v2654
    %2656 = vmatprep.mubr.f32.mxu0 %v2149
    %2657 = vmatmul.mubr.f32.gmra.mxu0 %v2148
    %v2658 = vpop.f32.mrf.mxu0
    %v2659 = vadd.f32 %v2225, %v2658
    %v2660 = vpop.f32.mrf.mxu0
    %v2661 = vadd.f32 %v2229, %v2660
    %2662 = vmatprep.mubr.f32.mxu0 %v2151
    %2663 = vmatmul.mubr.f32.gmra.mxu0 %v2150
    %v2664 = vpop.f32.mrf.mxu0
    %v2665 = vadd.f32 %v2225, %v2664
    %v2666 = vpop.f32.mrf.mxu0
    %v2667 = vadd.f32 %v2229, %v2666
    %2668 = vmatprep.mubr.f32.mxu0 %v2153
    %2669 = vmatmul.mubr.f32.gmra.mxu0 %v2152
    %v2670 = vpop.f32.mrf.mxu0
    %v2671 = vadd.f32 %v2225, %v2670
    %v2672 = vpop.f32.mrf.mxu0
    %v2673 = vadd.f32 %v2229, %v2672
    %2674 = vmatprep.mubr.f32.mxu0 %v2155
    %2675 = vmatmul.mubr.f32.gmra.mxu0 %v2154
    %v2676 = vpop.f32.mrf.mxu0
    %v2677 = vadd.f32 %v2225, %v2676
    %v2678 = vpop.f32.mrf.mxu0
    %v2679 = vadd.f32 %v2229, %v2678
    %2680 = vdwg.mxu0
    %2681 = vst [vmem:[#allocation10] sm:$0xff] %v2299
    %2682 = vst [vmem:[#allocation10 + $0x8] sm:$0xff] %v2301
    %2683 = vst [vmem:[#allocation10 + $0x10] sm:$0xff] %v2305
    %2684 = vst [vmem:[#allocation10 + $0x18] sm:$0xff] %v2307
    %2685 = vst [vmem:[#allocation10 + $0x20] sm:$0xff] %v2311
    %2686 = vst [vmem:[#allocation10 + $0x28] sm:$0xff] %v2313
    %2687 = vst [vmem:[#allocation10 + $0x30] sm:$0xff] %v2317
    %2688 = vst [vmem:[#allocation10 + $0x38] sm:$0xff] %v2319
    %2689 = vst [vmem:[#allocation10 + $0x40] sm:$0xff] %v2323
    %2690 = vst [vmem:[#allocation10 + $0x48] sm:$0xff] %v2325
    %2691 = vst [vmem:[#allocation10 + $0x50] sm:$0xff] %v2329
    %2692 = vst [vmem:[#allocation10 + $0x58] sm:$0xff] %v2331
    %2693 = vst [vmem:[#allocation10 + $0x60] sm:$0xff] %v2335
    %2694 = vst [vmem:[#allocation10 + $0x68] sm:$0xff] %v2337
    %2695 = vst [vmem:[#allocation10 + $0x70] sm:$0xff] %v2341
    %2696 = vst [vmem:[#allocation10 + $0x78] sm:$0xff] %v2343
    %2697 = vst [vmem:[#allocation10 + $0x80] sm:$0xff] %v2347
    %2698 = vst [vmem:[#allocation10 + $0x88] sm:$0xff] %v2349
    %2699 = vst [vmem:[#allocation10 + $0x90] sm:$0xff] %v2353
    %2700 = vst [vmem:[#allocation10 + $0x98] sm:$0xff] %v2355
    %2701 = vst [vmem:[#allocation10 + $0xa0] sm:$0xff] %v2359
    %2702 = vst [vmem:[#allocation10 + $0xa8] sm:$0xff] %v2361
    %2703 = vst [vmem:[#allocation10 + $0xb0] sm:$0xff] %v2365
    %2704 = vst [vmem:[#allocation10 + $0xb8] sm:$0xff] %v2367
    %2705 = vst [vmem:[#allocation10 + $0xc0] sm:$0xff] %v2371
    %2706 = vst [vmem:[#allocation10 + $0xc8] sm:$0xff] %v2373
    %2707 = vst [vmem:[#allocation10 + $0xd0] sm:$0xff] %v2377
    %2708 = vst [vmem:[#allocation10 + $0xd8] sm:$0xff] %v2379
    %2709 = vst [vmem:[#allocation10 + $0xe0] sm:$0xff] %v2383
    %2710 = vst [vmem:[#allocation10 + $0xe8] sm:$0xff] %v2385
    %2711 = vst [vmem:[#allocation10 + $0xf0] sm:$0xff] %v2389
    %2712 = vst [vmem:[#allocation10 + $0xf8] sm:$0xff] %v2391
    %2713 = vst [vmem:[#allocation10 + $0x100] sm:$0xff] %v2395
    %2714 = vst [vmem:[#allocation10 + $0x108] sm:$0xff] %v2397
    %2715 = vst [vmem:[#allocation10 + $0x110] sm:$0xff] %v2401
    %2716 = vst [vmem:[#allocation10 + $0x118] sm:$0xff] %v2403
    %2717 = vst [vmem:[#allocation10 + $0x120] sm:$0xff] %v2407
    %2718 = vst [vmem:[#allocation10 + $0x128] sm:$0xff] %v2409
    %2719 = vst [vmem:[#allocation10 + $0x130] sm:$0xff] %v2413
    %2720 = vst [vmem:[#allocation10 + $0x138] sm:$0xff] %v2415
    %2721 = vst [vmem:[#allocation10 + $0x140] sm:$0xff] %v2419
    %2722 = vst [vmem:[#allocation10 + $0x148] sm:$0xff] %v2421
    %2723 = vst [vmem:[#allocation10 + $0x150] sm:$0xff] %v2425
    %2724 = vst [vmem:[#allocation10 + $0x158] sm:$0xff] %v2427
    %2725 = vst [vmem:[#allocation10 + $0x160] sm:$0xff] %v2431
    %2726 = vst [vmem:[#allocation10 + $0x168] sm:$0xff] %v2433
    %2727 = vst [vmem:[#allocation10 + $0x170] sm:$0xff] %v2437
    %2728 = vst [vmem:[#allocation10 + $0x178] sm:$0xff] %v2439
    %2729 = vst [vmem:[#allocation10 + $0x180] sm:$0xff] %v2443
    %2730 = vst [vmem:[#allocation10 + $0x188] sm:$0xff] %v2445
    %2731 = vst [vmem:[#allocation10 + $0x190] sm:$0xff] %v2449
    %2732 = vst [vmem:[#allocation10 + $0x198] sm:$0xff] %v2451
    %2733 = vst [vmem:[#allocation10 + $0x1a0] sm:$0xff] %v2455
    %2734 = vst [vmem:[#allocation10 + $0x1a8] sm:$0xff] %v2457
    %2735 = vst [vmem:[#allocation10 + $0x1b0] sm:$0xff] %v2461
    %2736 = vst [vmem:[#allocation10 + $0x1b8] sm:$0xff] %v2463
    %2737 = vst [vmem:[#allocation10 + $0x1c0] sm:$0xff] %v2467
    %2738 = vst [vmem:[#allocation10 + $0x1c8] sm:$0xff] %v2469
    %2739 = vst [vmem:[#allocation10 + $0x1d0] sm:$0xff] %v2473
    %2740 = vst [vmem:[#allocation10 + $0x1d8] sm:$0xff] %v2475
    %2741 = vst [vmem:[#allocation10 + $0x1e0] sm:$0xff] %v2479
    %2742 = vst [vmem:[#allocation10 + $0x1e8] sm:$0xff] %v2481
    %2743 = vst [vmem:[#allocation10 + $0x1f0] sm:$0xff] %v2485
    %2744 = vst [vmem:[#allocation10 + $0x1f8] sm:$0xff] %v2487
    %2745 = vst [vmem:[#allocation10 + $0x200] sm:$0xff] %v2491
    %2746 = vst [vmem:[#allocation10 + $0x208] sm:$0xff] %v2493
    %2747 = vst [vmem:[#allocation10 + $0x210] sm:$0xff] %v2497
    %2748 = vst [vmem:[#allocation10 + $0x218] sm:$0xff] %v2499
    %2749 = vst [vmem:[#allocation10 + $0x220] sm:$0xff] %v2503
    %2750 = vst [vmem:[#allocation10 + $0x228] sm:$0xff] %v2505
    %2751 = vst [vmem:[#allocation10 + $0x230] sm:$0xff] %v2509
    %2752 = vst [vmem:[#allocation10 + $0x238] sm:$0xff] %v2511
    %2753 = vst [vmem:[#allocation10 + $0x240] sm:$0xff] %v2515
    %2754 = vst [vmem:[#allocation10 + $0x248] sm:$0xff] %v2517
    %2755 = vst [vmem:[#allocation10 + $0x250] sm:$0xff] %v2521
    %2756 = vst [vmem:[#allocation10 + $0x258] sm:$0xff] %v2523
    %2757 = vst [vmem:[#allocation10 + $0x260] sm:$0xff] %v2527
    %2758 = vst [vmem:[#allocation10 + $0x268] sm:$0xff] %v2529
    %2759 = vst [vmem:[#allocation10 + $0x270] sm:$0xff] %v2533
    %2760 = vst [vmem:[#allocation10 + $0x278] sm:$0xff] %v2535
    %2761 = vst [vmem:[#allocation10 + $0x280] sm:$0xff] %v2539
    %2762 = vst [vmem:[#allocation10 + $0x288] sm:$0xff] %v2541
    %2763 = vst [vmem:[#allocation10 + $0x290] sm:$0xff] %v2545
    %2764 = vst [vmem:[#allocation10 + $0x298] sm:$0xff] %v2547
    %2765 = vst [vmem:[#allocation10 + $0x2a0] sm:$0xff] %v2551
    %2766 = vst [vmem:[#allocation10 + $0x2a8] sm:$0xff] %v2553
    %2767 = vst [vmem:[#allocation10 + $0x2b0] sm:$0xff] %v2557
    %2768 = vst [vmem:[#allocation10 + $0x2b8] sm:$0xff] %v2559
    %2769 = vst [vmem:[#allocation10 + $0x2c0] sm:$0xff] %v2563
    %2770 = vst [vmem:[#allocation10 + $0x2c8] sm:$0xff] %v2565
    %2771 = vst [vmem:[#allocation10 + $0x2d0] sm:$0xff] %v2569
    %2772 = vst [vmem:[#allocation10 + $0x2d8] sm:$0xff] %v2571
    %2773 = vst [vmem:[#allocation10 + $0x2e0] sm:$0xff] %v2575
    %2774 = vst [vmem:[#allocation10 + $0x2e8] sm:$0xff] %v2577
    %2775 = vst [vmem:[#allocation10 + $0x2f0] sm:$0xff] %v2581
    %2776 = vst [vmem:[#allocation10 + $0x2f8] sm:$0xff] %v2583
    %2777 = vst [vmem:[#allocation10 + $0x300] sm:$0xff] %v2587
    %2778 = vst [vmem:[#allocation10 + $0x308] sm:$0xff] %v2589
    %2779 = vst [vmem:[#allocation10 + $0x310] sm:$0xff] %v2593
    %2780 = vst [vmem:[#allocation10 + $0x318] sm:$0xff] %v2595
    %2781 = vst [vmem:[#allocation10 + $0x320] sm:$0xff] %v2599
    %2782 = vst [vmem:[#allocation10 + $0x328] sm:$0xff] %v2601
    %2783 = vst [vmem:[#allocation10 + $0x330] sm:$0xff] %v2605
    %2784 = vst [vmem:[#allocation10 + $0x338] sm:$0xff] %v2607
    %2785 = vst [vmem:[#allocation10 + $0x340] sm:$0xff] %v2611
    %2786 = vst [vmem:[#allocation10 + $0x348] sm:$0xff] %v2613
    %2787 = vst [vmem:[#allocation10 + $0x350] sm:$0xff] %v2617
    %2788 = vst [vmem:[#allocation10 + $0x358] sm:$0xff] %v2619
    %2789 = vst [vmem:[#allocation10 + $0x360] sm:$0xff] %v2623
    %2790 = vst [vmem:[#allocation10 + $0x368] sm:$0xff] %v2625
    %2791 = vst [vmem:[#allocation10 + $0x370] sm:$0xff] %v2629
    %2792 = vst [vmem:[#allocation10 + $0x378] sm:$0xff] %v2631
    %2793 = vst [vmem:[#allocation10 + $0x380] sm:$0xff] %v2635
    %2794 = vst [vmem:[#allocation10 + $0x388] sm:$0xff] %v2637
    %2795 = vst [vmem:[#allocation10 + $0x390] sm:$0xff] %v2641
    %2796 = vst [vmem:[#allocation10 + $0x398] sm:$0xff] %v2643
    %2797 = vst [vmem:[#allocation10 + $0x3a0] sm:$0xff] %v2647
    %2798 = vst [vmem:[#allocation10 + $0x3a8] sm:$0xff] %v2649
    %2799 = vst [vmem:[#allocation10 + $0x3b0] sm:$0xff] %v2653
    %2800 = vst [vmem:[#allocation10 + $0x3b8] sm:$0xff] %v2655
    %2801 = vst [vmem:[#allocation10 + $0x3c0] sm:$0xff] %v2659
    %2802 = vst [vmem:[#allocation10 + $0x3c8] sm:$0xff] %v2661
    %2803 = vst [vmem:[#allocation10 + $0x3d0] sm:$0xff] %v2665
    %2804 = vst [vmem:[#allocation10 + $0x3d8] sm:$0xff] %v2667
    %2805 = vst [vmem:[#allocation10 + $0x3e0] sm:$0xff] %v2671
    %2806 = vst [vmem:[#allocation10 + $0x3e8] sm:$0xff] %v2673
    %2807 = vst [vmem:[#allocation10 + $0x3f0] sm:$0xff] %v2677
    %2808 = vst [vmem:[#allocation10 + $0x3f8] sm:$0xff] %v2679
    // Predicated region
    $region46: #{_swiglu_call.1} parent=1 // pred_check
      _
    $region47: #{_swiglu_call.1} parent=1 // pred_check_branch
      %2810 = sbr.rel (0) target = $region49
    $region48: #{_swiglu_call.1} parent=1 // pred_region
      %s2812 = ssub.s32 16384, 16384
      %2813 = vsyncadd [#allocation4], %s2812
      %s2814 = sshll.u32 [#allocation10], 4
      %s2815 = int_to_ptr.vmem [resolvable:$true] %s2814
      %2820 = dma.vmem_to_hbm [thread:$0]  %s2815, 16384, %s7, [#allocation4], 256, 256, 16
    $region49: #{_swiglu_call.1} parent=1 // pred_fallthru
      _
    // Predicated region
    $region50: #{_swiglu_call.1} parent=1 // pred_check
      _
    $region51: #{_swiglu_call.1} parent=1 // pred_check_branch
      %2822 = sbr.rel (0) target = $region53
    $region52: #{_swiglu_call.1} parent=1 // pred_region
      %2823 = dma.done [#allocation4], 16384
    $region53: #{_swiglu_call.1} parent=1 // pred_fallthru
      _
    %2824 = vsyncpa [#allocation3], 1
    %2825 = vsyncpa [#allocation6], 1
    %2826 = vsyncpa [#allocation9], 1
    %2827 = vsyncpa [#allocation4], 1

</llo_original>
